<compile_context>
chip_gen: v6e
topology: v6e:2x2x1
jax: 0.10.0
libtpu: 0.0.40
codegen_flags: <defaults>
</compile_context>

<pallas_src>
import jax
import jax.numpy as jnp
from jax.experimental import pallas as pl
from jax.experimental.pallas import tpu as pltpu

MM_TM_CAP = 512     # matmul row-tile cap
EW_ROW_CAP = 1024   # elementwise (lane-folded) row-tile cap
LANES = 128


def _pick_tile(n, cap):
    """Largest tile <= cap that divides n exactly (multiple of 8, or full dim)."""
    if n <= cap:
        return n                      # block == full dim -> always legal
    t = cap - (cap % 8)
    while t >= 8:
        if n % t == 0:
            return t
        t -= 8
    return n                          # fallback: one full-size block


# ------------------------------ Pallas kernels ------------------------------

def _mm_fused_stage1_kernel(a_ref, w_ref, bb_ref, o1_ref, ores_ref, st_ref):
    """One im2col read -> conv1 output (+ BN partial stats) and bridge output (+ bias)."""
    y = jnp.dot(a_ref[...], w_ref[...], preferred_element_type=jnp.float32)
    c1 = o1_ref.shape[-1]
    y1 = y[:, :c1]
    o1_ref[...] = y1
    ores_ref[...] = y[:, c1:] + bb_ref[...]
    cs = jnp.sum(y1, axis=0, keepdims=True)
    ss = jnp.sum(y1 * y1, axis=0, keepdims=True)
    st_ref[...] = jnp.concatenate([cs, ss], axis=0)[None]


def _mm_stats_kernel(a_ref, w_ref, o_ref, st_ref):
    """Matmul (no bias: cancelled by training-mode BN) + per-tile BN partial stats."""
    y = jnp.dot(a_ref[...], w_ref[...], preferred_element_type=jnp.float32)
    o_ref[...] = y
    cs = jnp.sum(y, axis=0, keepdims=True)
    ss = jnp.sum(y * y, axis=0, keepdims=True)
    st_ref[...] = jnp.concatenate([cs, ss], axis=0)[None]


def _bn_act_kernel(y_ref, sc_ref, sh_ref, al_ref, o_ref):
    y = y_ref[...] * sc_ref[...] + sh_ref[...]
    o_ref[...] = jnp.where(y >= 0, y, al_ref[...] * y)


def _bn_act_res_kernel(y_ref, res_ref, sc_ref, sh_ref, al_ref, o_ref):
    y = y_ref[...] * sc_ref[...] + sh_ref[...]
    o_ref[...] = jnp.where(y >= 0, y, al_ref[...] * y) + res_ref[...]


# ------------------------------ Pallas wrappers ------------------------------

def fused_stage1_matmul(a, wcat, bias_b, c1, cb):
    """(M,K) @ (K,c1+cb); split outputs: conv1 (stats, no bias) and bridge (+bias)."""
    m, k = a.shape
    tm = _pick_tile(m, MM_TM_CAP)
    g = m // tm
    return pl.pallas_call(
        _mm_fused_stage1_kernel,
        out_shape=(jax.ShapeDtypeStruct((m, c1), jnp.float32),
                   jax.ShapeDtypeStruct((m, cb), jnp.float32),
                   jax.ShapeDtypeStruct((g, 2, c1), jnp.float32)),
        grid=(g,),
        in_specs=[pl.BlockSpec((tm, k), lambda i: (i, 0)),
                  pl.BlockSpec((k, c1 + cb), lambda i: (0, 0)),
                  pl.BlockSpec((1, cb), lambda i: (0, 0))],
        out_specs=(pl.BlockSpec((tm, c1), lambda i: (i, 0)),
                   pl.BlockSpec((tm, cb), lambda i: (i, 0)),
                   pl.BlockSpec((1, 2, c1), lambda i: (i, 0, 0))),
        compiler_params=pltpu.CompilerParams(dimension_semantics=("parallel",)),
    )(a, wcat, bias_b.reshape(1, cb))


def conv_matmul_stats(a, wmat):
    """(M,K) @ (K,Cout) with fused per-tile BN partial statistics."""
    m, k = a.shape
    cout = wmat.shape[1]
    tm = _pick_tile(m, MM_TM_CAP)
    g = m // tm
    return pl.pallas_call(
        _mm_stats_kernel,
        out_shape=(jax.ShapeDtypeStruct((m, cout), jnp.float32),
                   jax.ShapeDtypeStruct((g, 2, cout), jnp.float32)),
        grid=(g,),
        in_specs=[pl.BlockSpec((tm, k), lambda i: (i, 0)),
                  pl.BlockSpec((k, cout), lambda i: (0, 0))],
        out_specs=(pl.BlockSpec((tm, cout), lambda i: (i, 0)),
                   pl.BlockSpec((1, 2, cout), lambda i: (i, 0, 0))),
        compiler_params=pltpu.CompilerParams(dimension_semantics=("parallel",)),
    )(a, wmat)


def bn_prelu(y, scale, shift, alpha, res=None):
    """Fused BN-affine + PReLU (+ optional residual) on an (M, C) matrix.

    When possible the matrix is folded to 128-wide lanes (channels replicated
    into lanes) so loads/stores are full-width instead of C/128 masked.
    """
    m, c = y.shape
    if (m * c) % LANES == 0 and LANES % c == 0:
        rep = LANES // c
        rows, width = (m * c) // LANES, LANES
        yf = y.reshape(rows, width)
        rf = None if res is None else res.reshape(rows, width)
        sf = jnp.tile(scale, rep).reshape(1, width)
        hf = jnp.tile(shift, rep).reshape(1, width)
        af = jnp.tile(alpha, rep).reshape(1, width)
    else:
        rows, width = m, c
        yf, rf = y, res
        sf, hf, af = scale.reshape(1, c), shift.reshape(1, c), alpha.reshape(1, c)

    te = _pick_tile(rows, EW_ROW_CAP)
    g = rows // te
    rowspec = pl.BlockSpec((te, width), lambda i: (i, 0))
    vecspec = pl.BlockSpec((1, width), lambda i: (0, 0))
    common = dict(
        out_shape=jax.ShapeDtypeStruct((rows, width), jnp.float32),
        grid=(g,),
        out_specs=pl.BlockSpec((te, width), lambda i: (i, 0)),
        compiler_params=pltpu.CompilerParams(dimension_semantics=("parallel",)),
    )
    if rf is None:
        out = pl.pallas_call(_bn_act_kernel,
                             in_specs=[rowspec, vecspec, vecspec, vecspec],
                             **common)(yf, sf, hf, af)
    else:
        out = pl.pallas_call(_bn_act_res_kernel,
                             in_specs=[rowspec, rowspec, vecspec, vecspec, vecspec],
                             **common)(yf, rf, sf, hf, af)
    return out.reshape(m, c)


# --------------------------------- JAX glue ----------------------------------

def im2col_3d_ndhwc(x, k, stride, pad):
    """x: (N, D, H, W, C) -> (N*Do*Ho*Wo, k^3*C); feature order (kd, kh, kw, c)."""
    n, d, h, w, c = x.shape
    xp = jnp.pad(x, ((0, 0), (pad, pad), (pad, pad), (pad, pad), (0, 0)))
    do = (d + 2 * pad - k) // stride + 1
    ho = (h + 2 * pad - k) // stride + 1
    wo = (w + 2 * pad - k) // stride + 1
    cols = []
    for kd in range(k):
        for kh in range(k):
            for kw in range(k):
                cols.append(xp[:,
                               kd: kd + stride * (do - 1) + 1: stride,
                               kh: kh + stride * (ho - 1) + 1: stride,
                               kw: kw + stride * (wo - 1) + 1: stride, :])
    pat = jnp.stack(cols, axis=4)                       # (n, do, ho, wo, k^3, c)
    return pat.reshape(n * do * ho * wo, k * k * k * c), (n, do, ho, wo)


def w_to_mat(w, ksz):
    """PyTorch (Cout, Cin, kd, kh, kw) -> (k^3*Cin, Cout) matching im2col order."""
    cout, cin = w.shape[0], w.shape[1]
    return w.transpose(2, 3, 4, 1, 0).reshape(ksz * ksz * ksz * cin, cout)


def bn_finalize(stats, m, gamma, beta, eps=1e-5):
    """stats: (grid, 2, C) partial [sum, sumsq] -> per-channel affine (scale, shift)."""
    s = jnp.sum(stats[:, 0, :], axis=0)
    ss = jnp.sum(stats[:, 1, :], axis=0)
    mean = s / m
    var = jnp.maximum(ss / m - mean * mean, 0.0)        # biased variance (training mode)
    scale = gamma / jnp.sqrt(var + eps)
    shift = beta - mean * scale
    return scale, shift


def init_params(key, kernel_size, de_kernel_size, channel_list):
    c0, c1, c2 = channel_list[0], channel_list[1], channel_list[2]
    cb = channel_list[-1]
    k, dk = kernel_size, de_kernel_size
    keys = jax.random.split(key, 8)

    def conv_w(kk, cout, cin, ksz):
        fan_in = cin * ksz ** 3
        return (jax.random.normal(kk, (cout, cin, ksz, ksz, ksz), jnp.float32)
                / jnp.sqrt(jnp.float32(fan_in)))

    return dict(
        w1=conv_w(keys[0], c1, c0, k),
        w2=conv_w(keys[1], c2, c1, k),
        wb=conv_w(keys[2], cb, c0, k),
        ws=conv_w(keys[3], c2, c2, dk),
        bb=jax.random.normal(keys[4], (cb,), jnp.float32) * 0.01,
        # b1/b2/bs exist in the PyTorch module but are exactly cancelled by
        # training-mode BatchNorm (mean subtraction) -> kept for interface
        # fidelity, intentionally NOT applied (dead work).
        b1=jax.random.normal(keys[5], (c1,), jnp.float32) * 0.01,
        b2=jax.random.normal(keys[6], (c2,), jnp.float32) * 0.01,
        bs=jax.random.normal(keys[7], (c2,), jnp.float32) * 0.01,
        gamma1=jnp.ones((c1,), jnp.float32), beta1=jnp.zeros((c1,), jnp.float32),
        gamma2=jnp.ones((c2,), jnp.float32), beta2=jnp.zeros((c2,), jnp.float32),
        gammas=jnp.ones((c2,), jnp.float32), betas=jnp.zeros((c2,), jnp.float32),
        # nn.PReLU() default: a single shared alpha = 0.25
        alpha1=jnp.full((1,), 0.25, jnp.float32),
        alpha2=jnp.full((1,), 0.25, jnp.float32),
        alphas=jnp.full((1,), 0.25, jnp.float32),
    )


def unet_module_forward(x_ncdhw, params, kernel_size, de_kernel_size):
    """Forward of Unet_module (down_up='down'). Returns (next_layer, x_out), NCDHW."""
    k, dk = kernel_size, de_kernel_size
    p, dp = (k - 1) // 2, (dk - 1) // 2
    c1 = params['w1'].shape[0]
    c2 = params['w2'].shape[0]
    cb = params['wb'].shape[0]

    x = jnp.transpose(x_ncdhw, (0, 2, 3, 4, 1))          # NDHWC internally

    # ---- stage 1: fused bridge_conv + conv1 over one shared im2col matrix ----
    a1, sp1 = im2col_3d_ndhwc(x, k, 1, p)
    wcat = jnp.concatenate([w_to_mat(params['w1'], k), w_to_mat(params['wb'], k)],
                           axis=1)                       # (K, c1+cb)
    y1, res_mat, st1 = fused_stage1_matmul(a1, wcat, params['bb'], c1, cb)
    sc1, sh1 = bn_finalize(st1, a1.shape[0], params['gamma1'], params['beta1'])
    a1v = params['alpha1'] * jnp.ones((c1,), jnp.float32)
    h1 = bn_prelu(y1, sc1, sh1, a1v)                     # no residual variant

    # ---- stage 2: conv2 -> bn2 -> prelu2 -> (+ res) ----
    h1_vol = h1.reshape(sp1 + (c1,))                     # free: already NDHWC row order
    a2, sp2 = im2col_3d_ndhwc(h1_vol, k, 1, p)
    y2, st2 = conv_matmul_stats(a2, w_to_mat(params['w2'], k))
    sc2, sh2 = bn_finalize(st2, a2.shape[0], params['gamma2'], params['beta2'])
    a2v = params['alpha2'] * jnp.ones((c2,), jnp.float32)
    x_out_mat = bn_prelu(y2, sc2, sh2, a2v, res=res_mat)

    # ---- stage 3: stride-2 conv -> bn -> prelu (downsample) ----
    xo_vol = x_out_mat.reshape(sp2 + (c2,))
    a3, sp3 = im2col_3d_ndhwc(xo_vol, dk, 2, dp)
    y3, st3 = conv_matmul_stats(a3, w_to_mat(params['ws'], dk))
    scs, shs = bn_finalize(st3, a3.shape[0], params['gammas'], params['betas'])
    asv = params['alphas'] * jnp.ones((c2,), jnp.float32)
    nxt_mat = bn_prelu(y3, scs, shs, asv)

    x_out = xo_vol.transpose(0, 4, 1, 2, 3)              # back to NCDHW
    next_layer = nxt_mat.reshape(sp3 + (c2,)).transpose(0, 4, 1, 2, 3)
    return next_layer, x_out


if __name__ == "__main__":
    kernel_size, de_kernel_size = 3, 3
    channel_list = [4, 8, 8]            # [C_in, C_mid, C_out]; bridge -> channel_list[-1]
    key = jax.random.PRNGKey(0)
    kx, kp = jax.random.split(key)
    x = jax.random.normal(kx, (2, 4, 8, 8, 8), jnp.float32)   # NCDHW
    params = init_params(kp, kernel_size, de_kernel_size, channel_list)

    fwd = jax.jit(unet_module_forward, static_argnums=(2, 3))
    next_layer, x_out = fwd(x, params, kernel_size, de_kernel_size)
    jax.block_until_ready((next_layer, x_out))

    assert x_out.shape == (2, 8, 8, 8, 8), x_out.shape
    assert next_layer.shape == (2, 8, 4, 4, 4), next_layer.shape
    assert bool(jnp.all(jnp.isfinite(x_out))) and bool(jnp.all(jnp.isfinite(next_layer)))
    print("KERNEL_OK")
</pallas_src>

<mosaic_0001>
module attributes {stable_mosaic.version = 11 : i64} {
  func.func @_mm_fused_stage1_kernel(%arg0: i32, %arg1: memref<512x108xf32, #tpu.memory_space<vmem>>, %arg2: memref<108x16xf32, #tpu.memory_space<vmem>>, %arg3: memref<1x8xf32, #tpu.memory_space<vmem>>, %arg4: memref<512x8xf32, #tpu.memory_space<vmem>>, %arg5: memref<512x8xf32, #tpu.memory_space<vmem>>, %arg6: memref<1x2x8xf32, #tpu.memory_space<vmem>>) attributes {dimension_semantics = [#tpu.dimension_semantics<parallel>], iteration_bounds = array<i64: 2>, scalar_prefetch = 0 : i64, scratch_operands = 0 : i64, tpu.core_type = #tpu.core_type<tc>, window_params = [{transform_indices = @transform_0, window_bounds = array<i64: 512, 108>}, {pipeline_mode = #tpu.pipeline_mode<synchronous>, transform_indices = @transform_1, window_bounds = array<i64: 108, 16>}, {pipeline_mode = #tpu.pipeline_mode<synchronous>, transform_indices = @transform_2, window_bounds = array<i64: 1, 8>}, {transform_indices = @transform_3, window_bounds = array<i64: 512, 8>}, {transform_indices = @transform_4, window_bounds = array<i64: 512, 8>}, {transform_indices = @transform_5, window_bounds = array<i64: 1, 2, 8>}]} {
    %c0 = arith.constant 0 : index
    %c0_0 = arith.constant 0 : index
    %0 = vector.load %arg1[%c0, %c0_0] : memref<512x108xf32, #tpu.memory_space<vmem>>, vector<512x108xf32>
    %c0_1 = arith.constant 0 : index
    %c0_2 = arith.constant 0 : index
    %1 = vector.load %arg2[%c0_1, %c0_2] : memref<108x16xf32, #tpu.memory_space<vmem>>, vector<108x16xf32>
    %cst = arith.constant dense<0.000000e+00> : vector<512x16xf32>
    %2 = tpu.matmul %0, %1, %cst {dimension_numbers = #tpu.dot_dimension_numbers<[1], [0], [0], [1], [0, 0, 1, 1], [], []>} : vector<512x108xf32>, vector<108x16xf32>, vector<512x16xf32> -> vector<512x16xf32>
    %3 = vector.extract_strided_slice %2 {offsets = [0, 0], sizes = [512, 8], strides = [1, 1]} : vector<512x16xf32> to vector<512x8xf32>
    %c0_3 = arith.constant 0 : index
    %c0_4 = arith.constant 0 : index
    %4 = vector.load %arg4[%c0_3, %c0_4] : memref<512x8xf32, #tpu.memory_space<vmem>>, vector<512x8xf32>
    tpu.vector_store %arg4[%c0_3, %c0_4], %3 {strides = array<i32>} : memref<512x8xf32, #tpu.memory_space<vmem>>, vector<512x8xf32>,
    %5 = vector.extract_strided_slice %2 {offsets = [0, 8], sizes = [512, 8], strides = [1, 1]} : vector<512x16xf32> to vector<512x8xf32>
    %c0_5 = arith.constant 0 : index
    %c0_6 = arith.constant 0 : index
    %6 = vector.load %arg3[%c0_5, %c0_6] : memref<1x8xf32, #tpu.memory_space<vmem>>, vector<1x8xf32>
    %7 = vector.broadcast %6 : vector<1x8xf32> to vector<512x8xf32>
    %8 = arith.addf %5, %7 : vector<512x8xf32>
    %c0_7 = arith.constant 0 : index
    %c0_8 = arith.constant 0 : index
    %9 = vector.load %arg5[%c0_7, %c0_8] : memref<512x8xf32, #tpu.memory_space<vmem>>, vector<512x8xf32>
    tpu.vector_store %arg5[%c0_7, %c0_8], %8 {strides = array<i32>} : memref<512x8xf32, #tpu.memory_space<vmem>>, vector<512x8xf32>,
    %cst_9 = arith.constant dense<0.000000e+00> : vector<8xf32>
    %10 = vector.multi_reduction <add>, %3, %cst_9 [0] : vector<512x8xf32> to vector<8xf32>
    %11 = vector.shape_cast %10 : vector<8xf32> to vector<1x8xf32>
    %12 = arith.mulf %3, %3 : vector<512x8xf32>
    %cst_10 = arith.constant dense<0.000000e+00> : vector<8xf32>
    %13 = vector.multi_reduction <add>, %12, %cst_10 [0] : vector<512x8xf32> to vector<8xf32>
    %14 = vector.shape_cast %13 : vector<8xf32> to vector<1x8xf32>
    %15 = tpu.concatenate %11, %14 in 0 : vector<1x8xf32>, vector<1x8xf32> -> vector<2x8xf32>
    %16 = vector.shape_cast %15 : vector<2x8xf32> to vector<1x2x8xf32>
    %c0_11 = arith.constant 0 : index
    %c0_12 = arith.constant 0 : index
    %c0_13 = arith.constant 0 : index
    %17 = vector.load %arg6[%c0_11, %c0_12, %c0_13] : memref<1x2x8xf32, #tpu.memory_space<vmem>>, vector<1x2x8xf32>
    tpu.vector_store %arg6[%c0_11, %c0_12, %c0_13], %16 {strides = array<i32>} : memref<1x2x8xf32, #tpu.memory_space<vmem>>, vector<1x2x8xf32>,
    return
  }
  func.func @transform_0(%arg0: i32) -> (i32, i32) {
    %c0_i32 = arith.constant 0 : i32
    %c0_i32_0 = arith.constant 0 : i32
    return %arg0, %c0_i32 : i32, i32
  }
  func.func @transform_1(%arg0: i32) -> (i32, i32) {
    %c0_i32 = arith.constant 0 : i32
    %c0_i32_0 = arith.constant 0 : i32
    %c0_i32_1 = arith.constant 0 : i32
    return %c0_i32, %c0_i32_0 : i32, i32
  }
  func.func @transform_2(%arg0: i32) -> (i32, i32) {
    %c0_i32 = arith.constant 0 : i32
    %c0_i32_0 = arith.constant 0 : i32
    %c0_i32_1 = arith.constant 0 : i32
    return %c0_i32, %c0_i32_0 : i32, i32
  }
  func.func @transform_3(%arg0: i32) -> (i32, i32) {
    %c0_i32 = arith.constant 0 : i32
    %c0_i32_0 = arith.constant 0 : i32
    return %arg0, %c0_i32 : i32, i32
  }
  func.func @transform_4(%arg0: i32) -> (i32, i32) {
    %c0_i32 = arith.constant 0 : i32
    %c0_i32_0 = arith.constant 0 : i32
    return %arg0, %c0_i32 : i32, i32
  }
  func.func @transform_5(%arg0: i32) -> (i32, i32, i32) {
    %c0_i32 = arith.constant 0 : i32
    %c0_i32_0 = arith.constant 0 : i32
    %c0_i32_1 = arith.constant 0 : i32
    return %arg0, %c0_i32, %c0_i32_0 : i32, i32, i32
  }
}

module attributes {stable_mosaic.version = 11 : i64} {
  func.func @_bn_act_kernel(%arg0: i32, %arg1: memref<64x128xf32, #tpu.memory_space<vmem>>, %arg2: memref<1x128xf32, #tpu.memory_space<vmem>>, %arg3: memref<1x128xf32, #tpu.memory_space<vmem>>, %arg4: memref<1x128xf32, #tpu.memory_space<vmem>>, %arg5: memref<64x128xf32, #tpu.memory_space<vmem>>) attributes {dimension_semantics = [#tpu.dimension_semantics<parallel>], iteration_bounds = array<i64: 1>, scalar_prefetch = 0 : i64, scratch_operands = 0 : i64, tpu.core_type = #tpu.core_type<tc>, window_params = [{transform_indices = @transform_0, window_bounds = array<i64: 64, 128>}, {pipeline_mode = #tpu.pipeline_mode<synchronous>, transform_indices = @transform_1, window_bounds = array<i64: 1, 128>}, {pipeline_mode = #tpu.pipeline_mode<synchronous>, transform_indices = @transform_2, window_bounds = array<i64: 1, 128>}, {pipeline_mode = #tpu.pipeline_mode<synchronous>, transform_indices = @transform_3, window_bounds = array<i64: 1, 128>}, {transform_indices = @transform_4, window_bounds = array<i64: 64, 128>}]} {
    %c0 = arith.constant 0 : index
    %c0_0 = arith.constant 0 : index
    %0 = vector.load %arg1[%c0, %c0_0] : memref<64x128xf32, #tpu.memory_space<vmem>>, vector<64x128xf32>
    %c0_1 = arith.constant 0 : index
    %c0_2 = arith.constant 0 : index
    %1 = vector.load %arg2[%c0_1, %c0_2] : memref<1x128xf32, #tpu.memory_space<vmem>>, vector<1x128xf32>
    %2 = vector.broadcast %1 : vector<1x128xf32> to vector<64x128xf32>
    %3 = arith.mulf %0, %2 : vector<64x128xf32>
    %c0_3 = arith.constant 0 : index
    %c0_4 = arith.constant 0 : index
    %4 = vector.load %arg3[%c0_3, %c0_4] : memref<1x128xf32, #tpu.memory_space<vmem>>, vector<1x128xf32>
    %5 = vector.broadcast %4 : vector<1x128xf32> to vector<64x128xf32>
    %6 = arith.addf %3, %5 : vector<64x128xf32>
    %cst = arith.constant 0.000000e+00 : f32
    %7 = vector.broadcast %cst : f32 to vector<64x128xf32>
    %8 = arith.cmpf oge, %6, %7 : vector<64x128xf32>
    %c0_5 = arith.constant 0 : index
    %c0_6 = arith.constant 0 : index
    %9 = vector.load %arg4[%c0_5, %c0_6] : memref<1x128xf32, #tpu.memory_space<vmem>>, vector<1x128xf32>
    %10 = vector.broadcast %9 : vector<1x128xf32> to vector<64x128xf32>
    %11 = arith.mulf %10, %6 : vector<64x128xf32>
    %12 = arith.select %8, %6, %11 : vector<64x128xi1>, vector<64x128xf32>
    %c0_7 = arith.constant 0 : index
    %c0_8 = arith.constant 0 : index
    %13 = vector.load %arg5[%c0_7, %c0_8] : memref<64x128xf32, #tpu.memory_space<vmem>>, vector<64x128xf32>
    tpu.vector_store %arg5[%c0_7, %c0_8], %12 {strides = array<i32>} : memref<64x128xf32, #tpu.memory_space<vmem>>, vector<64x128xf32>,
    return
  }
  func.func @transform_0(%arg0: i32) -> (i32, i32) {
    %c0_i32 = arith.constant 0 : i32
    %c0_i32_0 = arith.constant 0 : i32
    return %arg0, %c0_i32 : i32, i32
  }
  func.func @transform_1(%arg0: i32) -> (i32, i32) {
    %c0_i32 = arith.constant 0 : i32
    %c0_i32_0 = arith.constant 0 : i32
    %c0_i32_1 = arith.constant 0 : i32
    return %c0_i32, %c0_i32_0 : i32, i32
  }
  func.func @transform_2(%arg0: i32) -> (i32, i32) {
    %c0_i32 = arith.constant 0 : i32
    %c0_i32_0 = arith.constant 0 : i32
    %c0_i32_1 = arith.constant 0 : i32
    return %c0_i32, %c0_i32_0 : i32, i32
  }
  func.func @transform_3(%arg0: i32) -> (i32, i32) {
    %c0_i32 = arith.constant 0 : i32
    %c0_i32_0 = arith.constant 0 : i32
    %c0_i32_1 = arith.constant 0 : i32
    return %c0_i32, %c0_i32_0 : i32, i32
  }
  func.func @transform_4(%arg0: i32) -> (i32, i32) {
    %c0_i32 = arith.constant 0 : i32
    %c0_i32_0 = arith.constant 0 : i32
    return %arg0, %c0_i32 : i32, i32
  }
}

module attributes {stable_mosaic.version = 11 : i64} {
  func.func @_mm_stats_kernel(%arg0: i32, %arg1: memref<512x216xf32, #tpu.memory_space<vmem>>, %arg2: memref<216x8xf32, #tpu.memory_space<vmem>>, %arg3: memref<512x8xf32, #tpu.memory_space<vmem>>, %arg4: memref<1x2x8xf32, #tpu.memory_space<vmem>>) attributes {dimension_semantics = [#tpu.dimension_semantics<parallel>], iteration_bounds = array<i64: 2>, scalar_prefetch = 0 : i64, scratch_operands = 0 : i64, tpu.core_type = #tpu.core_type<tc>, window_params = [{transform_indices = @transform_0, window_bounds = array<i64: 512, 216>}, {pipeline_mode = #tpu.pipeline_mode<synchronous>, transform_indices = @transform_1, window_bounds = array<i64: 216, 8>}, {transform_indices = @transform_2, window_bounds = array<i64: 512, 8>}, {transform_indices = @transform_3, window_bounds = array<i64: 1, 2, 8>}]} {
    %c0 = arith.constant 0 : index
    %c0_0 = arith.constant 0 : index
    %0 = vector.load %arg1[%c0, %c0_0] : memref<512x216xf32, #tpu.memory_space<vmem>>, vector<512x216xf32>
    %c0_1 = arith.constant 0 : index
    %c0_2 = arith.constant 0 : index
    %1 = vector.load %arg2[%c0_1, %c0_2] : memref<216x8xf32, #tpu.memory_space<vmem>>, vector<216x8xf32>
    %cst = arith.constant dense<0.000000e+00> : vector<512x8xf32>
    %2 = tpu.matmul %0, %1, %cst {dimension_numbers = #tpu.dot_dimension_numbers<[1], [0], [0], [1], [0, 0, 1, 1], [], []>} : vector<512x216xf32>, vector<216x8xf32>, vector<512x8xf32> -> vector<512x8xf32>
    %c0_3 = arith.constant 0 : index
    %c0_4 = arith.constant 0 : index
    %3 = vector.load %arg3[%c0_3, %c0_4] : memref<512x8xf32, #tpu.memory_space<vmem>>, vector<512x8xf32>
    tpu.vector_store %arg3[%c0_3, %c0_4], %2 {strides = array<i32>} : memref<512x8xf32, #tpu.memory_space<vmem>>, vector<512x8xf32>,
    %cst_5 = arith.constant dense<0.000000e+00> : vector<8xf32>
    %4 = vector.multi_reduction <add>, %2, %cst_5 [0] : vector<512x8xf32> to vector<8xf32>
    %5 = vector.shape_cast %4 : vector<8xf32> to vector<1x8xf32>
    %6 = arith.mulf %2, %2 : vector<512x8xf32>
    %cst_6 = arith.constant dense<0.000000e+00> : vector<8xf32>
    %7 = vector.multi_reduction <add>, %6, %cst_6 [0] : vector<512x8xf32> to vector<8xf32>
    %8 = vector.shape_cast %7 : vector<8xf32> to vector<1x8xf32>
    %9 = tpu.concatenate %5, %8 in 0 : vector<1x8xf32>, vector<1x8xf32> -> vector<2x8xf32>
    %10 = vector.shape_cast %9 : vector<2x8xf32> to vector<1x2x8xf32>
    %c0_7 = arith.constant 0 : index
    %c0_8 = arith.constant 0 : index
    %c0_9 = arith.constant 0 : index
    %11 = vector.load %arg4[%c0_7, %c0_8, %c0_9] : memref<1x2x8xf32, #tpu.memory_space<vmem>>, vector<1x2x8xf32>
    tpu.vector_store %arg4[%c0_7, %c0_8, %c0_9], %10 {strides = array<i32>} : memref<1x2x8xf32, #tpu.memory_space<vmem>>, vector<1x2x8xf32>,
    return
  }
  func.func @transform_0(%arg0: i32) -> (i32, i32) {
    %c0_i32 = arith.constant 0 : i32
    %c0_i32_0 = arith.constant 0 : i32
    return %arg0, %c0_i32 : i32, i32
  }
  func.func @transform_1(%arg0: i32) -> (i32, i32) {
    %c0_i32 = arith.constant 0 : i32
    %c0_i32_0 = arith.constant 0 : i32
    %c0_i32_1 = arith.constant 0 : i32
    return %c0_i32, %c0_i32_0 : i32, i32
  }
  func.func @transform_2(%arg0: i32) -> (i32, i32) {
    %c0_i32 = arith.constant 0 : i32
    %c0_i32_0 = arith.constant 0 : i32
    return %arg0, %c0_i32 : i32, i32
  }
  func.func @transform_3(%arg0: i32) -> (i32, i32, i32) {
    %c0_i32 = arith.constant 0 : i32
    %c0_i32_0 = arith.constant 0 : i32
    %c0_i32_1 = arith.constant 0 : i32
    return %arg0, %c0_i32, %c0_i32_0 : i32, i32, i32
  }
}

module attributes {stable_mosaic.version = 11 : i64} {
  func.func @_bn_act_res_kernel(%arg0: i32, %arg1: memref<64x128xf32, #tpu.memory_space<vmem>>, %arg2: memref<64x128xf32, #tpu.memory_space<vmem>>, %arg3: memref<1x128xf32, #tpu.memory_space<vmem>>, %arg4: memref<1x128xf32, #tpu.memory_space<vmem>>, %arg5: memref<1x128xf32, #tpu.memory_space<vmem>>, %arg6: memref<64x128xf32, #tpu.memory_space<vmem>>) attributes {dimension_semantics = [#tpu.dimension_semantics<parallel>], iteration_bounds = array<i64: 1>, scalar_prefetch = 0 : i64, scratch_operands = 0 : i64, tpu.core_type = #tpu.core_type<tc>, window_params = [{transform_indices = @transform_0, window_bounds = array<i64: 64, 128>}, {transform_indices = @transform_1, window_bounds = array<i64: 64, 128>}, {pipeline_mode = #tpu.pipeline_mode<synchronous>, transform_indices = @transform_2, window_bounds = array<i64: 1, 128>}, {pipeline_mode = #tpu.pipeline_mode<synchronous>, transform_indices = @transform_3, window_bounds = array<i64: 1, 128>}, {pipeline_mode = #tpu.pipeline_mode<synchronous>, transform_indices = @transform_4, window_bounds = array<i64: 1, 128>}, {transform_indices = @transform_5, window_bounds = array<i64: 64, 128>}]} {
    %c0 = arith.constant 0 : index
    %c0_0 = arith.constant 0 : index
    %0 = vector.load %arg1[%c0, %c0_0] : memref<64x128xf32, #tpu.memory_space<vmem>>, vector<64x128xf32>
    %c0_1 = arith.constant 0 : index
    %c0_2 = arith.constant 0 : index
    %1 = vector.load %arg3[%c0_1, %c0_2] : memref<1x128xf32, #tpu.memory_space<vmem>>, vector<1x128xf32>
    %2 = vector.broadcast %1 : vector<1x128xf32> to vector<64x128xf32>
    %3 = arith.mulf %0, %2 : vector<64x128xf32>
    %c0_3 = arith.constant 0 : index
    %c0_4 = arith.constant 0 : index
    %4 = vector.load %arg4[%c0_3, %c0_4] : memref<1x128xf32, #tpu.memory_space<vmem>>, vector<1x128xf32>
    %5 = vector.broadcast %4 : vector<1x128xf32> to vector<64x128xf32>
    %6 = arith.addf %3, %5 : vector<64x128xf32>
    %cst = arith.constant 0.000000e+00 : f32
    %7 = vector.broadcast %cst : f32 to vector<64x128xf32>
    %8 = arith.cmpf oge, %6, %7 : vector<64x128xf32>
    %c0_5 = arith.constant 0 : index
    %c0_6 = arith.constant 0 : index
    %9 = vector.load %arg5[%c0_5, %c0_6] : memref<1x128xf32, #tpu.memory_space<vmem>>, vector<1x128xf32>
    %10 = vector.broadcast %9 : vector<1x128xf32> to vector<64x128xf32>
    %11 = arith.mulf %10, %6 : vector<64x128xf32>
    %12 = arith.select %8, %6, %11 : vector<64x128xi1>, vector<64x128xf32>
    %c0_7 = arith.constant 0 : index
    %c0_8 = arith.constant 0 : index
    %13 = vector.load %arg2[%c0_7, %c0_8] : memref<64x128xf32, #tpu.memory_space<vmem>>, vector<64x128xf32>
    %14 = arith.addf %12, %13 : vector<64x128xf32>
    %c0_9 = arith.constant 0 : index
    %c0_10 = arith.constant 0 : index
    %15 = vector.load %arg6[%c0_9, %c0_10] : memref<64x128xf32, #tpu.memory_space<vmem>>, vector<64x128xf32>
    tpu.vector_store %arg6[%c0_9, %c0_10], %14 {strides = array<i32>} : memref<64x128xf32, #tpu.memory_space<vmem>>, vector<64x128xf32>,
    return
  }
  func.func @transform_0(%arg0: i32) -> (i32, i32) {
    %c0_i32 = arith.constant 0 : i32
    %c0_i32_0 = arith.constant 0 : i32
    return %arg0, %c0_i32 : i32, i32
  }
  func.func @transform_1(%arg0: i32) -> (i32, i32) {
    %c0_i32 = arith.constant 0 : i32
    %c0_i32_0 = arith.constant 0 : i32
    return %arg0, %c0_i32 : i32, i32
  }
  func.func @transform_2(%arg0: i32) -> (i32, i32) {
    %c0_i32 = arith.constant 0 : i32
    %c0_i32_0 = arith.constant 0 : i32
    %c0_i32_1 = arith.constant 0 : i32
    return %c0_i32, %c0_i32_0 : i32, i32
  }
  func.func @transform_3(%arg0: i32) -> (i32, i32) {
    %c0_i32 = arith.constant 0 : i32
    %c0_i32_0 = arith.constant 0 : i32
    %c0_i32_1 = arith.constant 0 : i32
    return %c0_i32, %c0_i32_0 : i32, i32
  }
  func.func @transform_4(%arg0: i32) -> (i32, i32) {
    %c0_i32 = arith.constant 0 : i32
    %c0_i32_0 = arith.constant 0 : i32
    %c0_i32_1 = arith.constant 0 : i32
    return %c0_i32, %c0_i32_0 : i32, i32
  }
  func.func @transform_5(%arg0: i32) -> (i32, i32) {
    %c0_i32 = arith.constant 0 : i32
    %c0_i32_0 = arith.constant 0 : i32
    return %arg0, %c0_i32 : i32, i32
  }
}

module attributes {stable_mosaic.version = 11 : i64} {
  func.func @_mm_stats_kernel(%arg0: i32, %arg1: memref<128x216xf32, #tpu.memory_space<vmem>>, %arg2: memref<216x8xf32, #tpu.memory_space<vmem>>, %arg3: memref<128x8xf32, #tpu.memory_space<vmem>>, %arg4: memref<1x2x8xf32, #tpu.memory_space<vmem>>) attributes {dimension_semantics = [#tpu.dimension_semantics<parallel>], iteration_bounds = array<i64: 1>, scalar_prefetch = 0 : i64, scratch_operands = 0 : i64, tpu.core_type = #tpu.core_type<tc>, window_params = [{transform_indices = @transform_0, window_bounds = array<i64: 128, 216>}, {pipeline_mode = #tpu.pipeline_mode<synchronous>, transform_indices = @transform_1, window_bounds = array<i64: 216, 8>}, {transform_indices = @transform_2, window_bounds = array<i64: 128, 8>}, {transform_indices = @transform_3, window_bounds = array<i64: 1, 2, 8>}]} {
    %c0 = arith.constant 0 : index
    %c0_0 = arith.constant 0 : index
    %0 = vector.load %arg1[%c0, %c0_0] : memref<128x216xf32, #tpu.memory_space<vmem>>, vector<128x216xf32>
    %c0_1 = arith.constant 0 : index
    %c0_2 = arith.constant 0 : index
    %1 = vector.load %arg2[%c0_1, %c0_2] : memref<216x8xf32, #tpu.memory_space<vmem>>, vector<216x8xf32>
    %cst = arith.constant dense<0.000000e+00> : vector<128x8xf32>
    %2 = tpu.matmul %0, %1, %cst {dimension_numbers = #tpu.dot_dimension_numbers<[1], [0], [0], [1], [0, 0, 1, 1], [], []>} : vector<128x216xf32>, vector<216x8xf32>, vector<128x8xf32> -> vector<128x8xf32>
    %c0_3 = arith.constant 0 : index
    %c0_4 = arith.constant 0 : index
    %3 = vector.load %arg3[%c0_3, %c0_4] : memref<128x8xf32, #tpu.memory_space<vmem>>, vector<128x8xf32>
    tpu.vector_store %arg3[%c0_3, %c0_4], %2 {strides = array<i32>} : memref<128x8xf32, #tpu.memory_space<vmem>>, vector<128x8xf32>,
    %cst_5 = arith.constant dense<0.000000e+00> : vector<8xf32>
    %4 = vector.multi_reduction <add>, %2, %cst_5 [0] : vector<128x8xf32> to vector<8xf32>
    %5 = vector.shape_cast %4 : vector<8xf32> to vector<1x8xf32>
    %6 = arith.mulf %2, %2 : vector<128x8xf32>
    %cst_6 = arith.constant dense<0.000000e+00> : vector<8xf32>
    %7 = vector.multi_reduction <add>, %6, %cst_6 [0] : vector<128x8xf32> to vector<8xf32>
    %8 = vector.shape_cast %7 : vector<8xf32> to vector<1x8xf32>
    %9 = tpu.concatenate %5, %8 in 0 : vector<1x8xf32>, vector<1x8xf32> -> vector<2x8xf32>
    %10 = vector.shape_cast %9 : vector<2x8xf32> to vector<1x2x8xf32>
    %c0_7 = arith.constant 0 : index
    %c0_8 = arith.constant 0 : index
    %c0_9 = arith.constant 0 : index
    %11 = vector.load %arg4[%c0_7, %c0_8, %c0_9] : memref<1x2x8xf32, #tpu.memory_space<vmem>>, vector<1x2x8xf32>
    tpu.vector_store %arg4[%c0_7, %c0_8, %c0_9], %10 {strides = array<i32>} : memref<1x2x8xf32, #tpu.memory_space<vmem>>, vector<1x2x8xf32>,
    return
  }
  func.func @transform_0(%arg0: i32) -> (i32, i32) {
    %c0_i32 = arith.constant 0 : i32
    %c0_i32_0 = arith.constant 0 : i32
    return %arg0, %c0_i32 : i32, i32
  }
  func.func @transform_1(%arg0: i32) -> (i32, i32) {
    %c0_i32 = arith.constant 0 : i32
    %c0_i32_0 = arith.constant 0 : i32
    %c0_i32_1 = arith.constant 0 : i32
    return %c0_i32, %c0_i32_0 : i32, i32
  }
  func.func @transform_2(%arg0: i32) -> (i32, i32) {
    %c0_i32 = arith.constant 0 : i32
    %c0_i32_0 = arith.constant 0 : i32
    return %arg0, %c0_i32 : i32, i32
  }
  func.func @transform_3(%arg0: i32) -> (i32, i32, i32) {
    %c0_i32 = arith.constant 0 : i32
    %c0_i32_0 = arith.constant 0 : i32
    %c0_i32_1 = arith.constant 0 : i32
    return %arg0, %c0_i32, %c0_i32_0 : i32, i32, i32
  }
}

module attributes {stable_mosaic.version = 11 : i64} {
  func.func @_bn_act_kernel(%arg0: i32, %arg1: memref<8x128xf32, #tpu.memory_space<vmem>>, %arg2: memref<1x128xf32, #tpu.memory_space<vmem>>, %arg3: memref<1x128xf32, #tpu.memory_space<vmem>>, %arg4: memref<1x128xf32, #tpu.memory_space<vmem>>, %arg5: memref<8x128xf32, #tpu.memory_space<vmem>>) attributes {dimension_semantics = [#tpu.dimension_semantics<parallel>], iteration_bounds = array<i64: 1>, scalar_prefetch = 0 : i64, scratch_operands = 0 : i64, tpu.core_type = #tpu.core_type<tc>, window_params = [{transform_indices = @transform_0, window_bounds = array<i64: 8, 128>}, {pipeline_mode = #tpu.pipeline_mode<synchronous>, transform_indices = @transform_1, window_bounds = array<i64: 1, 128>}, {pipeline_mode = #tpu.pipeline_mode<synchronous>, transform_indices = @transform_2, window_bounds = array<i64: 1, 128>}, {pipeline_mode = #tpu.pipeline_mode<synchronous>, transform_indices = @transform_3, window_bounds = array<i64: 1, 128>}, {transform_indices = @transform_4, window_bounds = array<i64: 8, 128>}]} {
    %c0 = arith.constant 0 : index
    %c0_0 = arith.constant 0 : index
    %0 = vector.load %arg1[%c0, %c0_0] : memref<8x128xf32, #tpu.memory_space<vmem>>, vector<8x128xf32>
    %c0_1 = arith.constant 0 : index
    %c0_2 = arith.constant 0 : index
    %1 = vector.load %arg2[%c0_1, %c0_2] : memref<1x128xf32, #tpu.memory_space<vmem>>, vector<1x128xf32>
    %2 = vector.broadcast %1 : vector<1x128xf32> to vector<8x128xf32>
    %3 = arith.mulf %0, %2 : vector<8x128xf32>
    %c0_3 = arith.constant 0 : index
    %c0_4 = arith.constant 0 : index
    %4 = vector.load %arg3[%c0_3, %c0_4] : memref<1x128xf32, #tpu.memory_space<vmem>>, vector<1x128xf32>
    %5 = vector.broadcast %4 : vector<1x128xf32> to vector<8x128xf32>
    %6 = arith.addf %3, %5 : vector<8x128xf32>
    %cst = arith.constant 0.000000e+00 : f32
    %7 = vector.broadcast %cst : f32 to vector<8x128xf32>
    %8 = arith.cmpf oge, %6, %7 : vector<8x128xf32>
    %c0_5 = arith.constant 0 : index
    %c0_6 = arith.constant 0 : index
    %9 = vector.load %arg4[%c0_5, %c0_6] : memref<1x128xf32, #tpu.memory_space<vmem>>, vector<1x128xf32>
    %10 = vector.broadcast %9 : vector<1x128xf32> to vector<8x128xf32>
    %11 = arith.mulf %10, %6 : vector<8x128xf32>
    %12 = arith.select %8, %6, %11 : vector<8x128xi1>, vector<8x128xf32>
    %c0_7 = arith.constant 0 : index
    %c0_8 = arith.constant 0 : index
    %13 = vector.load %arg5[%c0_7, %c0_8] : memref<8x128xf32, #tpu.memory_space<vmem>>, vector<8x128xf32>
    tpu.vector_store %arg5[%c0_7, %c0_8], %12 {strides = array<i32>} : memref<8x128xf32, #tpu.memory_space<vmem>>, vector<8x128xf32>,
    return
  }
  func.func @transform_0(%arg0: i32) -> (i32, i32) {
    %c0_i32 = arith.constant 0 : i32
    %c0_i32_0 = arith.constant 0 : i32
    return %arg0, %c0_i32 : i32, i32
  }
  func.func @transform_1(%arg0: i32) -> (i32, i32) {
    %c0_i32 = arith.constant 0 : i32
    %c0_i32_0 = arith.constant 0 : i32
    %c0_i32_1 = arith.constant 0 : i32
    return %c0_i32, %c0_i32_0 : i32, i32
  }
  func.func @transform_2(%arg0: i32) -> (i32, i32) {
    %c0_i32 = arith.constant 0 : i32
    %c0_i32_0 = arith.constant 0 : i32
    %c0_i32_1 = arith.constant 0 : i32
    return %c0_i32, %c0_i32_0 : i32, i32
  }
  func.func @transform_3(%arg0: i32) -> (i32, i32) {
    %c0_i32 = arith.constant 0 : i32
    %c0_i32_0 = arith.constant 0 : i32
    %c0_i32_1 = arith.constant 0 : i32
    return %c0_i32, %c0_i32_0 : i32, i32
  }
  func.func @transform_4(%arg0: i32) -> (i32, i32) {
    %c0_i32 = arith.constant 0 : i32
    %c0_i32_0 = arith.constant 0 : i32
    return %arg0, %c0_i32 : i32, i32
  }
}

</mosaic_0001>

<llo_original>
// kernel: unet_module_forward.6
$region0: #{unet_module_forward.6}
  #allocation0 [shape = 'u32[]', space=smem, size = 0x4, offset = 0x4, fixed_abs, tag = 'smem constant byte address 0x4 - core index']
  #allocation1 [shape = 'u32[144,128]{1,0:T(1,128)}', space=vmem, size = 0x12000, scoped, tag = 'internal scratch']
  %s0 = inlined_call_operand.vmem [shape: f32[1024,108], index: 0, kind: input, shape index: {}]
  %s1 = inlined_call_operand.vmem [shape: f32[108,16], index: 1, kind: input, shape index: {}]
  %s2 = inlined_call_operand.vmem [shape: f32[1,8], index: 2, kind: input, shape index: {}]
  %s3 = inlined_call_operand.vmem [shape: f32[1024,8], index: 3, kind: output, shape index: {0}]
  %s4 = inlined_call_operand.vmem [shape: f32[1024,8], index: 4, kind: output, shape index: {1}]
  %s5 = inlined_call_operand.vmem [shape: f32[2,2,8], index: 5, kind: output, shape index: {2}]
  %6 = xla_tuple %s3, %s4, %s5
  %s7 = sld [smem:[#allocation0]]
  $region61: #{unet_module_forward.6} parent=0
    _
  %s9 = ssub.s32 1, %s7
  %s10 = scalar_select 0, %s9, %s7
  loop: start=0, step=1, limit=4
  $region2: #{unet_module_forward.6} parent=0 // loop_pre_header
    _
  $region3: #{unet_module_forward.6} parent=0 // loop_header
    %s12 = sphi 0, %s16
    %p13 = scmp.ge.s32.totalorder %s12, 4
    %s22 = sphi 0, %s24
    %s25 = sphi 0, %s22
    %s26 = sphi 0, %s25
    %s42 = sphi 0, %s26
    %s46 = sphi 0, %s46
    %s48 = sphi 0, %s46
    %s49 = sphi 0, %s48
    %s63 = sphi 0, %s49
    %s67 = sphi 0, %s67
    %s69 = sphi 0, %s67
    %s70 = sphi 0, %s69
    %s84 = sphi 0, %s70
    %s90 = sphi 0, %s92
    %s93 = sphi 0, %s90
    %s94 = sphi 0, %s93
    %s110 = sphi 0, %s94
    %s116 = sphi 0, %s118
    %s119 = sphi 0, %s116
    %s120 = sphi 0, %s119
    %s136 = sphi 0, %s120
    %s142 = sphi 0, %s144
    %s145 = sphi 0, %s142
    %s146 = sphi 0, %s145
    %s162 = sphi 0, %s146
  $region4: #{unet_module_forward.6} parent=0 // loop_header_branch
    %15 = sbr.rel (%p13) target = $region8
  $region5: #{unet_module_forward.6} parent=0 // loop_body
    %s17 = ssub.s32 %s12, 1
    %s18 = ssub.s32 %s12, 2
    %s19 = sadd.s32 %s12, 1
    %s20 = ssub.s32 %s12, %s19
    %p21 = scmp.eq.s32.totalorder %s20, 0
    %s23 = sadd.s32 %s22, 1
    %s24 = scalar_select %p21, %s22, %s23
    %p27 = pneg %p21
    %p28 = scmp.eq.s32.totalorder %s12, 1
    %p29 = por %p27, %p28
    %p30 = scmp.ne.s32.totalorder %s22, %s25
    %p31 = scmp.eq.s32.totalorder %s12, 0
    %p32 = por %p30, %p31
    %p33 = scmp.ne.s32.totalorder %s22, %s25
    %p34 = scmp.eq.s32.totalorder %s17, 1
    %p35 = por %p33, %p34
    %p36 = scmp.ne.s32.totalorder %s25, %s26
    %p37 = scmp.eq.s32.totalorder %s17, 0
    %p38 = por %p36, %p37
    %p39 = scmp.ne.s32.totalorder %s25, %s26
    %p40 = scmp.eq.s32.totalorder %s18, 1
    %p41 = por %p39, %p40
    %p43 = scmp.ne.s32.totalorder %s26, %s42
    %p44 = scmp.eq.s32.totalorder %s18, 0
    %p45 = por %p43, %p44
    %s47 = sadd.s32 %s46, 1
    %p50 = scmp.eq.s32.totalorder %s12, 1
    %p51 = scmp.ne.s32.totalorder %s46, %s48
    %p52 = scmp.eq.s32.totalorder %s12, 0
    %p53 = por %p51, %p52
    %p54 = scmp.ne.s32.totalorder %s46, %s48
    %p55 = scmp.eq.s32.totalorder %s17, 1
    %p56 = por %p54, %p55
    %p57 = scmp.ne.s32.totalorder %s48, %s49
    %p58 = scmp.eq.s32.totalorder %s17, 0
    %p59 = por %p57, %p58
    %p60 = scmp.ne.s32.totalorder %s48, %s49
    %p61 = scmp.eq.s32.totalorder %s18, 1
    %p62 = por %p60, %p61
    %p64 = scmp.ne.s32.totalorder %s49, %s63
    %p65 = scmp.eq.s32.totalorder %s18, 0
    %p66 = por %p64, %p65
    %s68 = sadd.s32 %s67, 1
    %p71 = scmp.eq.s32.totalorder %s12, 1
    %p72 = scmp.ne.s32.totalorder %s67, %s69
    %p73 = scmp.eq.s32.totalorder %s12, 0
    %p74 = por %p72, %p73
    %p75 = scmp.ne.s32.totalorder %s67, %s69
    %p76 = scmp.eq.s32.totalorder %s17, 1
    %p77 = por %p75, %p76
    %p78 = scmp.ne.s32.totalorder %s69, %s70
    %p79 = scmp.eq.s32.totalorder %s17, 0
    %p80 = por %p78, %p79
    %p81 = scmp.ne.s32.totalorder %s69, %s70
    %p82 = scmp.eq.s32.totalorder %s18, 1
    %p83 = por %p81, %p82
    %p85 = scmp.ne.s32.totalorder %s70, %s84
    %p86 = scmp.eq.s32.totalorder %s18, 0
    %p87 = por %p85, %p86
    %s88 = ssub.s32 %s12, %s19
    %p89 = scmp.eq.s32.totalorder %s88, 0
    %s91 = sadd.s32 %s90, 1
    %s92 = scalar_select %p89, %s90, %s91
    %p95 = pneg %p89
    %p96 = scmp.eq.s32.totalorder %s12, 1
    %p97 = por %p95, %p96
    %p98 = scmp.ne.s32.totalorder %s90, %s93
    %p99 = scmp.eq.s32.totalorder %s12, 0
    %p100 = por %p98, %p99
    %p101 = scmp.ne.s32.totalorder %s90, %s93
    %p102 = scmp.eq.s32.totalorder %s17, 1
    %p103 = por %p101, %p102
    %p104 = scmp.ne.s32.totalorder %s93, %s94
    %p105 = scmp.eq.s32.totalorder %s17, 0
    %p106 = por %p104, %p105
    %p107 = scmp.ne.s32.totalorder %s93, %s94
    %p108 = scmp.eq.s32.totalorder %s18, 1
    %p109 = por %p107, %p108
    %p111 = scmp.ne.s32.totalorder %s94, %s110
    %p112 = scmp.eq.s32.totalorder %s18, 0
    %p113 = por %p111, %p112
    %s114 = ssub.s32 %s12, %s19
    %p115 = scmp.eq.s32.totalorder %s114, 0
    %s117 = sadd.s32 %s116, 1
    %s118 = scalar_select %p115, %s116, %s117
    %p121 = pneg %p115
    %p122 = scmp.eq.s32.totalorder %s12, 1
    %p123 = por %p121, %p122
    %p124 = scmp.ne.s32.totalorder %s116, %s119
    %p125 = scmp.eq.s32.totalorder %s12, 0
    %p126 = por %p124, %p125
    %p127 = scmp.ne.s32.totalorder %s116, %s119
    %p128 = scmp.eq.s32.totalorder %s17, 1
    %p129 = por %p127, %p128
    %p130 = scmp.ne.s32.totalorder %s119, %s120
    %p131 = scmp.eq.s32.totalorder %s17, 0
    %p132 = por %p130, %p131
    %p133 = scmp.ne.s32.totalorder %s119, %s120
    %p134 = scmp.eq.s32.totalorder %s18, 1
    %p135 = por %p133, %p134
    %p137 = scmp.ne.s32.totalorder %s120, %s136
    %p138 = scmp.eq.s32.totalorder %s18, 0
    %p139 = por %p137, %p138
    %s140 = ssub.s32 %s12, %s19
    %p141 = scmp.eq.s32.totalorder %s140, 0
    %s143 = sadd.s32 %s142, 1
    %s144 = scalar_select %p141, %s142, %s143
    %p147 = pneg %p141
    %p148 = scmp.eq.s32.totalorder %s12, 1
    %p149 = por %p147, %p148
    %p150 = scmp.ne.s32.totalorder %s142, %s145
    %p151 = scmp.eq.s32.totalorder %s12, 0
    %p152 = por %p150, %p151
    %p153 = scmp.ne.s32.totalorder %s142, %s145
    %p154 = scmp.eq.s32.totalorder %s17, 1
    %p155 = por %p153, %p154
    %p156 = scmp.ne.s32.totalorder %s145, %s146
    %p157 = scmp.eq.s32.totalorder %s17, 0
    %p158 = por %p156, %p157
    %p159 = scmp.ne.s32.totalorder %s145, %s146
    %p160 = scmp.eq.s32.totalorder %s18, 1
    %p161 = por %p159, %p160
    %p163 = scmp.ne.s32.totalorder %s146, %s162
    %p164 = scmp.eq.s32.totalorder %s18, 0
    %p165 = por %p163, %p164
    %p166 = scmp.le.s32.totalorder 1, %s12
    %p167 = scmp.lt.s32.totalorder %s12, 3
    %p168 = pnand %p166, %p167
    %p169 = pneg %p168
    // Predicated region
    $region9: #{unet_module_forward.6} parent=5 // pred_check
      _
    $region10: #{unet_module_forward.6} parent=5 // pred_check_branch
      %171 = sbr.rel (%p168) target = $region12
    $region11: #{unet_module_forward.6} parent=5 // pred_region
      %s172 = ssub.s32 %s12, 1
      // Predicated region
      $region13: #{unet_module_forward.6} parent=11 // pred_check
        %p173 = pneg %p59
      $region14: #{unet_module_forward.6} parent=11 // pred_check_branch
        %175 = sbr.rel (%p173) target = $region16
      $region15: #{unet_module_forward.6} parent=11 // pred_region
        _
      $region16: #{unet_module_forward.6} parent=11 // pred_fallthru
        _
      // Predicated region
      $region17: #{unet_module_forward.6} parent=11 // pred_check
        %p176 = pneg %p80
      $region18: #{unet_module_forward.6} parent=11 // pred_check_branch
        %178 = sbr.rel (%p176) target = $region20
      $region19: #{unet_module_forward.6} parent=11 // pred_region
        _
      $region20: #{unet_module_forward.6} parent=11 // pred_fallthru
        _
    $region12: #{unet_module_forward.6} parent=5 // pred_fallthru
      _
    %p179 = scmp.lt.s32.totalorder %s12, 2
    // Predicated region
    $region21: #{unet_module_forward.6} parent=5 // pred_check
      %p180 = pneg %p179
    $region22: #{unet_module_forward.6} parent=5 // pred_check_branch
      %182 = sbr.rel (%p180) target = $region24
    $region23: #{unet_module_forward.6} parent=5 // pred_region
      // Predicated region
      $region25: #{unet_module_forward.6} parent=23 // pred_check
        %p183 = pneg %p32
      $region26: #{unet_module_forward.6} parent=23 // pred_check_branch
        %185 = sbr.rel (%p183) target = $region28
      $region27: #{unet_module_forward.6} parent=23 // pred_region
        %s186 = smul.u32 64, %s12
        %p187 = scmp.lt.s32.totalorder %s186, 127
        %s188 = scalar_select %p187, %s186, 127
        %s189 = smul.addr %s188, 8
        %s190 = scalar_lea.vmem %s0, %s189
        %s191 = smul.u32 64, %s12
      $region28: #{unet_module_forward.6} parent=23 // pred_fallthru
        _
    $region24: #{unet_module_forward.6} parent=5 // pred_fallthru
      _
    %p192 = scmp.le.s32.totalorder 1, %s12
    %p193 = scmp.lt.s32.totalorder %s12, 3
    %p194 = pnand %p192, %p193
    %p195 = pneg %p194
    // Predicated region
    $region29: #{unet_module_forward.6} parent=5 // pred_check
      _
    $region30: #{unet_module_forward.6} parent=5 // pred_check_branch
      %197 = sbr.rel (%p194) target = $region32
    $region31: #{unet_module_forward.6} parent=5 // pred_region
      %s198 = ssub.s32 %s12, 1
      %s199 = smul.u32 64, %s17
      %p200 = scmp.lt.s32.totalorder %s199, 127
      %s201 = scalar_select %p200, %s199, 127
      %s202 = smul.addr %s201, 8
      %s203 = scalar_lea.vmem %s0, %s202
      %p204 = pneg %p38
      %p205 = pneg %p35
      %p206 = pneg %p59
      %p207 = pneg %p56
      %p208 = pneg %p80
      %p209 = pneg %p77
      %p210 = pneg %p106
      %p211 = pneg %p103
      %s212 = smul.u32 64, %s17
      %p213 = scmp.lt.s32.totalorder %s212, 127
      %s214 = scalar_select %p213, %s212, 127
      %s215 = smul.addr %s214, 8
      %s216 = scalar_lea.vmem %s3, %s215
      %p217 = pneg %p132
      %p218 = pneg %p129
      %s219 = smul.u32 64, %s17
      %p220 = scmp.lt.s32.totalorder %s219, 127
      %s221 = scalar_select %p220, %s219, 127
      %s222 = smul.addr %s221, 8
      %s223 = scalar_lea.vmem %s4, %s222
      %p224 = pneg %p158
      %p225 = pneg %p155
      %p226 = scmp.lt.s32.totalorder %s17, 1
      %s227 = scalar_select %p226, %s17, 1
      %s228 = smul.addr %s227, 2
      %s229 = scalar_lea.vmem %s5, %s228
      %s230 = smul.u32 64, %s17
      %p231 = scmp.lt.s32.totalorder %s230, 127
      %s232 = scalar_select %p231, %s230, 127
      %s233 = smul.addr %s232, 8
      %s234 = scalar_lea.vmem %s0, %s233
      %s235 = smul.u32 64, %s17
      %s236 = smul.u32 64, %s17
      %p237 = scmp.lt.s32.totalorder %s236, 127
      %s238 = scalar_select %p237, %s236, 127
      %s239 = smul.addr %s238, 8
      %s240 = scalar_lea.vmem %s3, %s239
      %s241 = smul.u32 64, %s17
      %s242 = smul.u32 64, %s17
      %p243 = scmp.lt.s32.totalorder %s242, 127
      %s244 = scalar_select %p243, %s242, 127
      %s245 = smul.addr %s244, 8
      %s246 = scalar_lea.vmem %s4, %s245
      %s247 = smul.u32 64, %s17
      %p248 = scmp.lt.s32.totalorder %s17, 1
      %s249 = scalar_select %p248, %s17, 1
      %s250 = smul.addr %s249, 2
      %s251 = scalar_lea.vmem %s5, %s250
      %v252 = vld [vmem:[%s234] sm:$0xff]
      %v253 = vld [vmem:[%s234 + $0x8] sm:$0xff]
      %v254 = vld [vmem:[%s234 + $0x10] sm:$0xff]
      %v255 = vld [vmem:[%s234 + $0x18] sm:$0xff]
      %v256 = vld [vmem:[%s234 + $0x20] sm:$0xff]
      %v257 = vld [vmem:[%s234 + $0x28] sm:$0xff]
      %v258 = vld [vmem:[%s234 + $0x30] sm:$0xff]
      %v259 = vld [vmem:[%s234 + $0x38] sm:$0xff]
      %v260 = vld [vmem:[%s234 + $0x40] sm:$0xff]
      %v261 = vld [vmem:[%s234 + $0x48] sm:$0xff]
      %v262 = vld [vmem:[%s234 + $0x50] sm:$0xff]
      %v263 = vld [vmem:[%s234 + $0x58] sm:$0xff]
      %v264 = vld [vmem:[%s234 + $0x60] sm:$0xff]
      %v265 = vld [vmem:[%s234 + $0x68] sm:$0xff]
      %v266 = vld [vmem:[%s234 + $0x70] sm:$0xff]
      %v267 = vld [vmem:[%s234 + $0x78] sm:$0xff]
      %v268 = vld [vmem:[%s234 + $0x80] sm:$0xff]
      %v269 = vld [vmem:[%s234 + $0x88] sm:$0xff]
      %v270 = vld [vmem:[%s234 + $0x90] sm:$0xff]
      %v271 = vld [vmem:[%s234 + $0x98] sm:$0xff]
      %v272 = vld [vmem:[%s234 + $0xa0] sm:$0xff]
      %v273 = vld [vmem:[%s234 + $0xa8] sm:$0xff]
      %v274 = vld [vmem:[%s234 + $0xb0] sm:$0xff]
      %v275 = vld [vmem:[%s234 + $0xb8] sm:$0xff]
      %v276 = vld [vmem:[%s234 + $0xc0] sm:$0xff]
      %v277 = vld [vmem:[%s234 + $0xc8] sm:$0xff]
      %v278 = vld [vmem:[%s234 + $0xd0] sm:$0xff]
      %v279 = vld [vmem:[%s234 + $0xd8] sm:$0xff]
      %v280 = vld [vmem:[%s234 + $0xe0] sm:$0xff]
      %v281 = vld [vmem:[%s234 + $0xe8] sm:$0xff]
      %v282 = vld [vmem:[%s234 + $0xf0] sm:$0xff]
      %v283 = vld [vmem:[%s234 + $0xf8] sm:$0xff]
      %v284 = vld [vmem:[%s234 + $0x100] sm:$0xff]
      %v285 = vld [vmem:[%s234 + $0x108] sm:$0xff]
      %v286 = vld [vmem:[%s234 + $0x110] sm:$0xff]
      %v287 = vld [vmem:[%s234 + $0x118] sm:$0xff]
      %v288 = vld [vmem:[%s234 + $0x120] sm:$0xff]
      %v289 = vld [vmem:[%s234 + $0x128] sm:$0xff]
      %v290 = vld [vmem:[%s234 + $0x130] sm:$0xff]
      %v291 = vld [vmem:[%s234 + $0x138] sm:$0xff]
      %v292 = vld [vmem:[%s234 + $0x140] sm:$0xff]
      %v293 = vld [vmem:[%s234 + $0x148] sm:$0xff]
      %v294 = vld [vmem:[%s234 + $0x150] sm:$0xff]
      %v295 = vld [vmem:[%s234 + $0x158] sm:$0xff]
      %v296 = vld [vmem:[%s234 + $0x160] sm:$0xff]
      %v297 = vld [vmem:[%s234 + $0x168] sm:$0xff]
      %v298 = vld [vmem:[%s234 + $0x170] sm:$0xff]
      %v299 = vld [vmem:[%s234 + $0x178] sm:$0xff]
      %v300 = vld [vmem:[%s234 + $0x180] sm:$0xff]
      %v301 = vld [vmem:[%s234 + $0x188] sm:$0xff]
      %v302 = vld [vmem:[%s234 + $0x190] sm:$0xff]
      %v303 = vld [vmem:[%s234 + $0x198] sm:$0xff]
      %v304 = vld [vmem:[%s234 + $0x1a0] sm:$0xff]
      %v305 = vld [vmem:[%s234 + $0x1a8] sm:$0xff]
      %v306 = vld [vmem:[%s234 + $0x1b0] sm:$0xff]
      %v307 = vld [vmem:[%s234 + $0x1b8] sm:$0xff]
      %v308 = vld [vmem:[%s234 + $0x1c0] sm:$0xff]
      %v309 = vld [vmem:[%s234 + $0x1c8] sm:$0xff]
      %v310 = vld [vmem:[%s234 + $0x1d0] sm:$0xff]
      %v311 = vld [vmem:[%s234 + $0x1d8] sm:$0xff]
      %v312 = vld [vmem:[%s234 + $0x1e0] sm:$0xff]
      %v313 = vld [vmem:[%s234 + $0x1e8] sm:$0xff]
      %v314 = vld [vmem:[%s234 + $0x1f0] sm:$0xff]
      %v315 = vld [vmem:[%s234 + $0x1f8] sm:$0xff]
      %v316 = vld [vmem:[%s1] sm:$0xff]
      %v317 = vld [vmem:[%s1 + $0x8] sm:$0xff]
      %v318 = vld [vmem:[%s1 + $0x10] sm:$0xff]
      %v319 = vld [vmem:[%s1 + $0x18] sm:$0xff]
      %v320 = vld [vmem:[%s1 + $0x20] sm:$0xff]
      %v321 = vld [vmem:[%s1 + $0x28] sm:$0xff]
      %v322 = vld [vmem:[%s1 + $0x30] sm:$0xff]
      %v323 = vld [vmem:[%s1 + $0x38] sm:$0xff]
      %v324 = vld [vmem:[%s1 + $0x40] sm:$0xff]
      %v325 = vld [vmem:[%s1 + $0x48] sm:$0xff]
      %v326 = vld [vmem:[%s1 + $0x50] sm:$0xff]
      %v327 = vld [vmem:[%s1 + $0x58] sm:$0xff]
      %v328 = vld [vmem:[%s1 + $0x60] sm:$0xff]
      %v329 = vld [vmem:[%s1 + $0x68] sm:$0xf]
      %vm330 = vcmask 883712
      %v332 = vsel %vm330, %v252, 0
      %v335 = vsel %vm330, %v253, 0
      %v338 = vsel %vm330, %v254, 0
      %v341 = vsel %vm330, %v255, 0
      %v344 = vsel %vm330, %v256, 0
      %v347 = vsel %vm330, %v257, 0
      %v350 = vsel %vm330, %v258, 0
      %v353 = vsel %vm330, %v259, 0
      %v356 = vsel %vm330, %v260, 0
      %v359 = vsel %vm330, %v261, 0
      %v362 = vsel %vm330, %v262, 0
      %v365 = vsel %vm330, %v263, 0
      %v368 = vsel %vm330, %v264, 0
      %v371 = vsel %vm330, %v265, 0
      %v374 = vsel %vm330, %v266, 0
      %v377 = vsel %vm330, %v267, 0
      %v380 = vsel %vm330, %v268, 0
      %v383 = vsel %vm330, %v269, 0
      %v386 = vsel %vm330, %v270, 0
      %v389 = vsel %vm330, %v271, 0
      %v392 = vsel %vm330, %v272, 0
      %v395 = vsel %vm330, %v273, 0
      %v398 = vsel %vm330, %v274, 0
      %v401 = vsel %vm330, %v275, 0
      %v404 = vsel %vm330, %v276, 0
      %v407 = vsel %vm330, %v277, 0
      %v410 = vsel %vm330, %v278, 0
      %v413 = vsel %vm330, %v279, 0
      %v416 = vsel %vm330, %v280, 0
      %v419 = vsel %vm330, %v281, 0
      %v422 = vsel %vm330, %v282, 0
      %v425 = vsel %vm330, %v283, 0
      %v428 = vsel %vm330, %v284, 0
      %v431 = vsel %vm330, %v285, 0
      %v434 = vsel %vm330, %v286, 0
      %v437 = vsel %vm330, %v287, 0
      %v440 = vsel %vm330, %v288, 0
      %v443 = vsel %vm330, %v289, 0
      %v446 = vsel %vm330, %v290, 0
      %v449 = vsel %vm330, %v291, 0
      %v452 = vsel %vm330, %v292, 0
      %v455 = vsel %vm330, %v293, 0
      %v458 = vsel %vm330, %v294, 0
      %v461 = vsel %vm330, %v295, 0
      %v464 = vsel %vm330, %v296, 0
      %v467 = vsel %vm330, %v297, 0
      %v470 = vsel %vm330, %v298, 0
      %v473 = vsel %vm330, %v299, 0
      %v476 = vsel %vm330, %v300, 0
      %v479 = vsel %vm330, %v301, 0
      %v482 = vsel %vm330, %v302, 0
      %v485 = vsel %vm330, %v303, 0
      %v488 = vsel %vm330, %v304, 0
      %v491 = vsel %vm330, %v305, 0
      %v494 = vsel %vm330, %v306, 0
      %v497 = vsel %vm330, %v307, 0
      %v500 = vsel %vm330, %v308, 0
      %v503 = vsel %vm330, %v309, 0
      %v506 = vsel %vm330, %v310, 0
      %v509 = vsel %vm330, %v311, 0
      %v512 = vsel %vm330, %v312, 0
      %v515 = vsel %vm330, %v313, 0
      %v518 = vsel %vm330, %v314, 0
      %v521 = vsel %vm330, %v315, 0
      %vm523 = vcmask 1043456
      %v525 = vsel %vm523, %v329, 0
      %527 = vmatprep.subr.mxu0 0.0
      %528 = vmatpush1.msra.mxu0 0.0
      %529 = vmatprep.subr.mxu0 0.0
      %530 = vmatpush1.msra.mxu0 0.0
      %531 = vmatprep.subr.mxu0 0.0
      %532 = vmatpush1.msra.mxu0 %v525
      %533 = vmatprep.subr.mxu0 0.0
      %534 = vmatpush1.msra.mxu0 %v328
      %535 = vmatprep.subr.mxu0 0.0
      %536 = vmatpush1.msra.mxu0 %v327
      %537 = vmatprep.subr.mxu0 0.0
      %538 = vmatpush1.msra.mxu0 %v326
      %539 = vmatprep.subr.mxu0 0.0
      %540 = vmatpush1.msra.mxu0 %v325
      %541 = vmatprep.subr.mxu0 0.0
      %542 = vmatpush1.msra.mxu0 %v324
      %543 = vmatprep.subr.mxu0 0.0
      %544 = vmatpush1.msra.mxu0 %v323
      %545 = vmatprep.subr.mxu0 0.0
      %546 = vmatpush1.msra.mxu0 %v322
      %547 = vmatprep.subr.mxu0 0.0
      %548 = vmatpush1.msra.mxu0 %v321
      %549 = vmatprep.subr.mxu0 0.0
      %550 = vmatpush1.msra.mxu0 %v320
      %551 = vmatprep.subr.mxu0 0.0
      %552 = vmatpush1.msra.mxu0 %v319
      %553 = vmatprep.subr.mxu0 0.0
      %554 = vmatpush1.msra.mxu0 %v318
      %555 = vmatprep.subr.mxu0 0.0
      %556 = vmatpush1.msra.mxu0 %v317
      %557 = vmatprep.subr.mxu0 0.0
      %558 = vmatpush1.msra.mxu0 %v316
      %559 = vmatprep.subr.mxu0 0.0
      %560 = vmatpush2.msra.mxu0 0.0
      %561 = vmatprep.subr.mxu0 0.0
      %562 = vmatpush2.msra.mxu0 0.0
      %563 = vmatprep.subr.mxu0 0.0
      %564 = vmatpush2.msra.mxu0 0.0
      %565 = vmatprep.subr.mxu0 0.0
      %566 = vmatpush2.msra.mxu0 0.0
      %567 = vmatprep.subr.mxu0 0.0
      %568 = vmatpush2.msra.mxu0 0.0
      %569 = vmatprep.subr.mxu0 0.0
      %570 = vmatpush2.msra.mxu0 0.0
      %571 = vmatprep.subr.mxu0 0.0
      %572 = vmatpush2.msra.mxu0 0.0
      %573 = vmatprep.subr.mxu0 0.0
      %574 = vmatpush2.msra.mxu0 0.0
      %575 = vmatprep.subr.mxu0 0.0
      %576 = vmatpush2.msra.mxu0 0.0
      %577 = vmatprep.subr.mxu0 0.0
      %578 = vmatpush2.msra.mxu0 0.0
      %579 = vmatprep.subr.mxu0 0.0
      %580 = vmatpush2.msra.mxu0 0.0
      %581 = vmatprep.subr.mxu0 0.0
      %582 = vmatpush2.msra.mxu0 0.0
      %583 = vmatprep.subr.mxu0 0.0
      %584 = vmatpush2.msra.mxu0 0.0
      %585 = vmatprep.subr.mxu0 0.0
      %586 = vmatpush2.msra.mxu0 0.0
      %587 = vmatprep.subr.mxu0 0.0
      %588 = vmatpush2.msra.mxu0 0.0
      %589 = vmatprep.subr.mxu0 0.0
      %590 = vmatpush2.msra.mxu0 0.0
      %591 = vmatprep.mubr.f32.mxu0 0.0
      %592 = vmatmul.mubr.f32.gmra.mxu0 %v332
      %v593 = vpop.f32.mrf.mxu0
      %v594 = vadd.f32 0.0, %v593
      %v595 = vpop.f32.mrf.mxu0
      %596 = vmatprep.mubr.f32.mxu0 0.0
      %597 = vmatmul.mubr.f32.gmra.mxu0 %v335
      %v598 = vpop.f32.mrf.mxu0
      %v599 = vadd.f32 0.0, %v598
      %v600 = vpop.f32.mrf.mxu0
      %601 = vmatprep.mubr.f32.mxu0 0.0
      %602 = vmatmul.mubr.f32.gmra.mxu0 %v338
      %v603 = vpop.f32.mrf.mxu0
      %v604 = vadd.f32 0.0, %v603
      %v605 = vpop.f32.mrf.mxu0
      %606 = vmatprep.mubr.f32.mxu0 0.0
      %607 = vmatmul.mubr.f32.gmra.mxu0 %v341
      %v608 = vpop.f32.mrf.mxu0
      %v609 = vadd.f32 0.0, %v608
      %v610 = vpop.f32.mrf.mxu0
      %611 = vmatprep.mubr.f32.mxu0 0.0
      %612 = vmatmul.mubr.f32.gmra.mxu0 %v344
      %v613 = vpop.f32.mrf.mxu0
      %v614 = vadd.f32 0.0, %v613
      %v615 = vpop.f32.mrf.mxu0
      %616 = vmatprep.mubr.f32.mxu0 0.0
      %617 = vmatmul.mubr.f32.gmra.mxu0 %v347
      %v618 = vpop.f32.mrf.mxu0
      %v619 = vadd.f32 0.0, %v618
      %v620 = vpop.f32.mrf.mxu0
      %621 = vmatprep.mubr.f32.mxu0 0.0
      %622 = vmatmul.mubr.f32.gmra.mxu0 %v350
      %v623 = vpop.f32.mrf.mxu0
      %v624 = vadd.f32 0.0, %v623
      %v625 = vpop.f32.mrf.mxu0
      %626 = vmatprep.mubr.f32.mxu0 0.0
      %627 = vmatmul.mubr.f32.gmra.mxu0 %v353
      %v628 = vpop.f32.mrf.mxu0
      %v629 = vadd.f32 0.0, %v628
      %v630 = vpop.f32.mrf.mxu0
      %631 = vmatprep.mubr.f32.mxu0 0.0
      %632 = vmatmul.mubr.f32.gmra.mxu0 %v356
      %v633 = vpop.f32.mrf.mxu0
      %v634 = vadd.f32 0.0, %v633
      %v635 = vpop.f32.mrf.mxu0
      %636 = vmatprep.mubr.f32.mxu0 0.0
      %637 = vmatmul.mubr.f32.gmra.mxu0 %v359
      %v638 = vpop.f32.mrf.mxu0
      %v639 = vadd.f32 0.0, %v638
      %v640 = vpop.f32.mrf.mxu0
      %641 = vmatprep.mubr.f32.mxu0 0.0
      %642 = vmatmul.mubr.f32.gmra.mxu0 %v362
      %v643 = vpop.f32.mrf.mxu0
      %v644 = vadd.f32 0.0, %v643
      %v645 = vpop.f32.mrf.mxu0
      %646 = vmatprep.mubr.f32.mxu0 0.0
      %647 = vmatmul.mubr.f32.gmra.mxu0 %v365
      %v648 = vpop.f32.mrf.mxu0
      %v649 = vadd.f32 0.0, %v648
      %v650 = vpop.f32.mrf.mxu0
      %651 = vmatprep.mubr.f32.mxu0 0.0
      %652 = vmatmul.mubr.f32.gmra.mxu0 %v368
      %v653 = vpop.f32.mrf.mxu0
      %v654 = vadd.f32 0.0, %v653
      %v655 = vpop.f32.mrf.mxu0
      %656 = vmatprep.mubr.f32.mxu0 0.0
      %657 = vmatmul.mubr.f32.gmra.mxu0 %v371
      %v658 = vpop.f32.mrf.mxu0
      %v659 = vadd.f32 0.0, %v658
      %v660 = vpop.f32.mrf.mxu0
      %661 = vmatprep.mubr.f32.mxu0 0.0
      %662 = vmatmul.mubr.f32.gmra.mxu0 %v374
      %v663 = vpop.f32.mrf.mxu0
      %v664 = vadd.f32 0.0, %v663
      %v665 = vpop.f32.mrf.mxu0
      %666 = vmatprep.mubr.f32.mxu0 0.0
      %667 = vmatmul.mubr.f32.gmra.mxu0 %v377
      %v668 = vpop.f32.mrf.mxu0
      %v669 = vadd.f32 0.0, %v668
      %v670 = vpop.f32.mrf.mxu0
      %671 = vmatprep.mubr.f32.mxu0 0.0
      %672 = vmatmul.mubr.f32.gmra.mxu0 %v380
      %v673 = vpop.f32.mrf.mxu0
      %v674 = vadd.f32 0.0, %v673
      %v675 = vpop.f32.mrf.mxu0
      %676 = vmatprep.mubr.f32.mxu0 0.0
      %677 = vmatmul.mubr.f32.gmra.mxu0 %v383
      %v678 = vpop.f32.mrf.mxu0
      %v679 = vadd.f32 0.0, %v678
      %v680 = vpop.f32.mrf.mxu0
      %681 = vmatprep.mubr.f32.mxu0 0.0
      %682 = vmatmul.mubr.f32.gmra.mxu0 %v386
      %v683 = vpop.f32.mrf.mxu0
      %v684 = vadd.f32 0.0, %v683
      %v685 = vpop.f32.mrf.mxu0
      %686 = vmatprep.mubr.f32.mxu0 0.0
      %687 = vmatmul.mubr.f32.gmra.mxu0 %v389
      %v688 = vpop.f32.mrf.mxu0
      %v689 = vadd.f32 0.0, %v688
      %v690 = vpop.f32.mrf.mxu0
      %691 = vmatprep.mubr.f32.mxu0 0.0
      %692 = vmatmul.mubr.f32.gmra.mxu0 %v392
      %v693 = vpop.f32.mrf.mxu0
      %v694 = vadd.f32 0.0, %v693
      %v695 = vpop.f32.mrf.mxu0
      %696 = vmatprep.mubr.f32.mxu0 0.0
      %697 = vmatmul.mubr.f32.gmra.mxu0 %v395
      %v698 = vpop.f32.mrf.mxu0
      %v699 = vadd.f32 0.0, %v698
      %v700 = vpop.f32.mrf.mxu0
      %701 = vmatprep.mubr.f32.mxu0 0.0
      %702 = vmatmul.mubr.f32.gmra.mxu0 %v398
      %v703 = vpop.f32.mrf.mxu0
      %v704 = vadd.f32 0.0, %v703
      %v705 = vpop.f32.mrf.mxu0
      %706 = vmatprep.mubr.f32.mxu0 0.0
      %707 = vmatmul.mubr.f32.gmra.mxu0 %v401
      %v708 = vpop.f32.mrf.mxu0
      %v709 = vadd.f32 0.0, %v708
      %v710 = vpop.f32.mrf.mxu0
      %711 = vmatprep.mubr.f32.mxu0 0.0
      %712 = vmatmul.mubr.f32.gmra.mxu0 %v404
      %v713 = vpop.f32.mrf.mxu0
      %v714 = vadd.f32 0.0, %v713
      %v715 = vpop.f32.mrf.mxu0
      %716 = vmatprep.mubr.f32.mxu0 0.0
      %717 = vmatmul.mubr.f32.gmra.mxu0 %v407
      %v718 = vpop.f32.mrf.mxu0
      %v719 = vadd.f32 0.0, %v718
      %v720 = vpop.f32.mrf.mxu0
      %721 = vmatprep.mubr.f32.mxu0 0.0
      %722 = vmatmul.mubr.f32.gmra.mxu0 %v410
      %v723 = vpop.f32.mrf.mxu0
      %v724 = vadd.f32 0.0, %v723
      %v725 = vpop.f32.mrf.mxu0
      %726 = vmatprep.mubr.f32.mxu0 0.0
      %727 = vmatmul.mubr.f32.gmra.mxu0 %v413
      %v728 = vpop.f32.mrf.mxu0
      %v729 = vadd.f32 0.0, %v728
      %v730 = vpop.f32.mrf.mxu0
      %731 = vmatprep.mubr.f32.mxu0 0.0
      %732 = vmatmul.mubr.f32.gmra.mxu0 %v416
      %v733 = vpop.f32.mrf.mxu0
      %v734 = vadd.f32 0.0, %v733
      %v735 = vpop.f32.mrf.mxu0
      %736 = vmatprep.mubr.f32.mxu0 0.0
      %737 = vmatmul.mubr.f32.gmra.mxu0 %v419
      %v738 = vpop.f32.mrf.mxu0
      %v739 = vadd.f32 0.0, %v738
      %v740 = vpop.f32.mrf.mxu0
      %741 = vmatprep.mubr.f32.mxu0 0.0
      %742 = vmatmul.mubr.f32.gmra.mxu0 %v422
      %v743 = vpop.f32.mrf.mxu0
      %v744 = vadd.f32 0.0, %v743
      %v745 = vpop.f32.mrf.mxu0
      %746 = vmatprep.mubr.f32.mxu0 0.0
      %747 = vmatmul.mubr.f32.gmra.mxu0 %v425
      %v748 = vpop.f32.mrf.mxu0
      %v749 = vadd.f32 0.0, %v748
      %v750 = vpop.f32.mrf.mxu0
      %751 = vmatprep.mubr.f32.mxu0 0.0
      %752 = vmatmul.mubr.f32.gmra.mxu0 %v428
      %v753 = vpop.f32.mrf.mxu0
      %v754 = vadd.f32 0.0, %v753
      %v755 = vpop.f32.mrf.mxu0
      %756 = vmatprep.mubr.f32.mxu0 0.0
      %757 = vmatmul.mubr.f32.gmra.mxu0 %v431
      %v758 = vpop.f32.mrf.mxu0
      %v759 = vadd.f32 0.0, %v758
      %v760 = vpop.f32.mrf.mxu0
      %761 = vmatprep.mubr.f32.mxu0 0.0
      %762 = vmatmul.mubr.f32.gmra.mxu0 %v434
      %v763 = vpop.f32.mrf.mxu0
      %v764 = vadd.f32 0.0, %v763
      %v765 = vpop.f32.mrf.mxu0
      %766 = vmatprep.mubr.f32.mxu0 0.0
      %767 = vmatmul.mubr.f32.gmra.mxu0 %v437
      %v768 = vpop.f32.mrf.mxu0
      %v769 = vadd.f32 0.0, %v768
      %v770 = vpop.f32.mrf.mxu0
      %771 = vmatprep.mubr.f32.mxu0 0.0
      %772 = vmatmul.mubr.f32.gmra.mxu0 %v440
      %v773 = vpop.f32.mrf.mxu0
      %v774 = vadd.f32 0.0, %v773
      %v775 = vpop.f32.mrf.mxu0
      %776 = vmatprep.mubr.f32.mxu0 0.0
      %777 = vmatmul.mubr.f32.gmra.mxu0 %v443
      %v778 = vpop.f32.mrf.mxu0
      %v779 = vadd.f32 0.0, %v778
      %v780 = vpop.f32.mrf.mxu0
      %781 = vmatprep.mubr.f32.mxu0 0.0
      %782 = vmatmul.mubr.f32.gmra.mxu0 %v446
      %v783 = vpop.f32.mrf.mxu0
      %v784 = vadd.f32 0.0, %v783
      %v785 = vpop.f32.mrf.mxu0
      %786 = vmatprep.mubr.f32.mxu0 0.0
      %787 = vmatmul.mubr.f32.gmra.mxu0 %v449
      %v788 = vpop.f32.mrf.mxu0
      %v789 = vadd.f32 0.0, %v788
      %v790 = vpop.f32.mrf.mxu0
      %791 = vmatprep.mubr.f32.mxu0 0.0
      %792 = vmatmul.mubr.f32.gmra.mxu0 %v452
      %v793 = vpop.f32.mrf.mxu0
      %v794 = vadd.f32 0.0, %v793
      %v795 = vpop.f32.mrf.mxu0
      %796 = vmatprep.mubr.f32.mxu0 0.0
      %797 = vmatmul.mubr.f32.gmra.mxu0 %v455
      %v798 = vpop.f32.mrf.mxu0
      %v799 = vadd.f32 0.0, %v798
      %v800 = vpop.f32.mrf.mxu0
      %801 = vmatprep.mubr.f32.mxu0 0.0
      %802 = vmatmul.mubr.f32.gmra.mxu0 %v458
      %v803 = vpop.f32.mrf.mxu0
      %v804 = vadd.f32 0.0, %v803
      %v805 = vpop.f32.mrf.mxu0
      %806 = vmatprep.mubr.f32.mxu0 0.0
      %807 = vmatmul.mubr.f32.gmra.mxu0 %v461
      %v808 = vpop.f32.mrf.mxu0
      %v809 = vadd.f32 0.0, %v808
      %v810 = vpop.f32.mrf.mxu0
      %811 = vmatprep.mubr.f32.mxu0 0.0
      %812 = vmatmul.mubr.f32.gmra.mxu0 %v464
      %v813 = vpop.f32.mrf.mxu0
      %v814 = vadd.f32 0.0, %v813
      %v815 = vpop.f32.mrf.mxu0
      %816 = vmatprep.mubr.f32.mxu0 0.0
      %817 = vmatmul.mubr.f32.gmra.mxu0 %v467
      %v818 = vpop.f32.mrf.mxu0
      %v819 = vadd.f32 0.0, %v818
      %v820 = vpop.f32.mrf.mxu0
      %821 = vmatprep.mubr.f32.mxu0 0.0
      %822 = vmatmul.mubr.f32.gmra.mxu0 %v470
      %v823 = vpop.f32.mrf.mxu0
      %v824 = vadd.f32 0.0, %v823
      %v825 = vpop.f32.mrf.mxu0
      %826 = vmatprep.mubr.f32.mxu0 0.0
      %827 = vmatmul.mubr.f32.gmra.mxu0 %v473
      %v828 = vpop.f32.mrf.mxu0
      %v829 = vadd.f32 0.0, %v828
      %v830 = vpop.f32.mrf.mxu0
      %831 = vmatprep.mubr.f32.mxu0 0.0
      %832 = vmatmul.mubr.f32.gmra.mxu0 %v476
      %v833 = vpop.f32.mrf.mxu0
      %v834 = vadd.f32 0.0, %v833
      %v835 = vpop.f32.mrf.mxu0
      %836 = vmatprep.mubr.f32.mxu0 0.0
      %837 = vmatmul.mubr.f32.gmra.mxu0 %v479
      %v838 = vpop.f32.mrf.mxu0
      %v839 = vadd.f32 0.0, %v838
      %v840 = vpop.f32.mrf.mxu0
      %841 = vmatprep.mubr.f32.mxu0 0.0
      %842 = vmatmul.mubr.f32.gmra.mxu0 %v482
      %v843 = vpop.f32.mrf.mxu0
      %v844 = vadd.f32 0.0, %v843
      %v845 = vpop.f32.mrf.mxu0
      %846 = vmatprep.mubr.f32.mxu0 0.0
      %847 = vmatmul.mubr.f32.gmra.mxu0 %v485
      %v848 = vpop.f32.mrf.mxu0
      %v849 = vadd.f32 0.0, %v848
      %v850 = vpop.f32.mrf.mxu0
      %851 = vmatprep.mubr.f32.mxu0 0.0
      %852 = vmatmul.mubr.f32.gmra.mxu0 %v488
      %v853 = vpop.f32.mrf.mxu0
      %v854 = vadd.f32 0.0, %v853
      %v855 = vpop.f32.mrf.mxu0
      %856 = vmatprep.mubr.f32.mxu0 0.0
      %857 = vmatmul.mubr.f32.gmra.mxu0 %v491
      %v858 = vpop.f32.mrf.mxu0
      %v859 = vadd.f32 0.0, %v858
      %v860 = vpop.f32.mrf.mxu0
      %861 = vmatprep.mubr.f32.mxu0 0.0
      %862 = vmatmul.mubr.f32.gmra.mxu0 %v494
      %v863 = vpop.f32.mrf.mxu0
      %v864 = vadd.f32 0.0, %v863
      %v865 = vpop.f32.mrf.mxu0
      %866 = vmatprep.mubr.f32.mxu0 0.0
      %867 = vmatmul.mubr.f32.gmra.mxu0 %v497
      %v868 = vpop.f32.mrf.mxu0
      %v869 = vadd.f32 0.0, %v868
      %v870 = vpop.f32.mrf.mxu0
      %871 = vmatprep.mubr.f32.mxu0 0.0
      %872 = vmatmul.mubr.f32.gmra.mxu0 %v500
      %v873 = vpop.f32.mrf.mxu0
      %v874 = vadd.f32 0.0, %v873
      %v875 = vpop.f32.mrf.mxu0
      %876 = vmatprep.mubr.f32.mxu0 0.0
      %877 = vmatmul.mubr.f32.gmra.mxu0 %v503
      %v878 = vpop.f32.mrf.mxu0
      %v879 = vadd.f32 0.0, %v878
      %v880 = vpop.f32.mrf.mxu0
      %881 = vmatprep.mubr.f32.mxu0 0.0
      %882 = vmatmul.mubr.f32.gmra.mxu0 %v506
      %v883 = vpop.f32.mrf.mxu0
      %v884 = vadd.f32 0.0, %v883
      %v885 = vpop.f32.mrf.mxu0
      %886 = vmatprep.mubr.f32.mxu0 0.0
      %887 = vmatmul.mubr.f32.gmra.mxu0 %v509
      %v888 = vpop.f32.mrf.mxu0
      %v889 = vadd.f32 0.0, %v888
      %v890 = vpop.f32.mrf.mxu0
      %891 = vmatprep.mubr.f32.mxu0 0.0
      %892 = vmatmul.mubr.f32.gmra.mxu0 %v512
      %v893 = vpop.f32.mrf.mxu0
      %v894 = vadd.f32 0.0, %v893
      %v895 = vpop.f32.mrf.mxu0
      %896 = vmatprep.mubr.f32.mxu0 0.0
      %897 = vmatmul.mubr.f32.gmra.mxu0 %v515
      %v898 = vpop.f32.mrf.mxu0
      %v899 = vadd.f32 0.0, %v898
      %v900 = vpop.f32.mrf.mxu0
      %901 = vmatprep.mubr.f32.mxu0 0.0
      %902 = vmatmul.mubr.f32.gmra.mxu0 %v518
      %v903 = vpop.f32.mrf.mxu0
      %v904 = vadd.f32 0.0, %v903
      %v905 = vpop.f32.mrf.mxu0
      %906 = vmatprep.mubr.f32.mxu0 0.0
      %907 = vmatmul.mubr.f32.gmra.mxu0 %v521
      %v908 = vpop.f32.mrf.mxu0
      %v909 = vadd.f32 0.0, %v908
      %v910 = vpop.f32.mrf.mxu0
      %911 = vdwg.mxu0
      %vm912 = vcmask 64512
      %913 = vst.msk [vmem:[%s240] sm:$0xff] %vm912, %v594
      %914 = vst.msk [vmem:[%s240 + $0x8] sm:$0xff] %vm912, %v599
      %915 = vst.msk [vmem:[%s240 + $0x10] sm:$0xff] %vm912, %v604
      %916 = vst.msk [vmem:[%s240 + $0x18] sm:$0xff] %vm912, %v609
      %917 = vst.msk [vmem:[%s240 + $0x20] sm:$0xff] %vm912, %v614
      %918 = vst.msk [vmem:[%s240 + $0x28] sm:$0xff] %vm912, %v619
      %919 = vst.msk [vmem:[%s240 + $0x30] sm:$0xff] %vm912, %v624
      %920 = vst.msk [vmem:[%s240 + $0x38] sm:$0xff] %vm912, %v629
      %921 = vst.msk [vmem:[%s240 + $0x40] sm:$0xff] %vm912, %v634
      %922 = vst.msk [vmem:[%s240 + $0x48] sm:$0xff] %vm912, %v639
      %923 = vst.msk [vmem:[%s240 + $0x50] sm:$0xff] %vm912, %v644
      %924 = vst.msk [vmem:[%s240 + $0x58] sm:$0xff] %vm912, %v649
      %925 = vst.msk [vmem:[%s240 + $0x60] sm:$0xff] %vm912, %v654
      %926 = vst.msk [vmem:[%s240 + $0x68] sm:$0xff] %vm912, %v659
      %927 = vst.msk [vmem:[%s240 + $0x70] sm:$0xff] %vm912, %v664
      %928 = vst.msk [vmem:[%s240 + $0x78] sm:$0xff] %vm912, %v669
      %929 = vst.msk [vmem:[%s240 + $0x80] sm:$0xff] %vm912, %v674
      %930 = vst.msk [vmem:[%s240 + $0x88] sm:$0xff] %vm912, %v679
      %931 = vst.msk [vmem:[%s240 + $0x90] sm:$0xff] %vm912, %v684
      %932 = vst.msk [vmem:[%s240 + $0x98] sm:$0xff] %vm912, %v689
      %933 = vst.msk [vmem:[%s240 + $0xa0] sm:$0xff] %vm912, %v694
      %934 = vst.msk [vmem:[%s240 + $0xa8] sm:$0xff] %vm912, %v699
      %935 = vst.msk [vmem:[%s240 + $0xb0] sm:$0xff] %vm912, %v704
      %936 = vst.msk [vmem:[%s240 + $0xb8] sm:$0xff] %vm912, %v709
      %937 = vst.msk [vmem:[%s240 + $0xc0] sm:$0xff] %vm912, %v714
      %938 = vst.msk [vmem:[%s240 + $0xc8] sm:$0xff] %vm912, %v719
      %939 = vst.msk [vmem:[%s240 + $0xd0] sm:$0xff] %vm912, %v724
      %940 = vst.msk [vmem:[%s240 + $0xd8] sm:$0xff] %vm912, %v729
      %941 = vst.msk [vmem:[%s240 + $0xe0] sm:$0xff] %vm912, %v734
      %942 = vst.msk [vmem:[%s240 + $0xe8] sm:$0xff] %vm912, %v739
      %943 = vst.msk [vmem:[%s240 + $0xf0] sm:$0xff] %vm912, %v744
      %944 = vst.msk [vmem:[%s240 + $0xf8] sm:$0xff] %vm912, %v749
      %945 = vst.msk [vmem:[%s240 + $0x100] sm:$0xff] %vm912, %v754
      %946 = vst.msk [vmem:[%s240 + $0x108] sm:$0xff] %vm912, %v759
      %947 = vst.msk [vmem:[%s240 + $0x110] sm:$0xff] %vm912, %v764
      %948 = vst.msk [vmem:[%s240 + $0x118] sm:$0xff] %vm912, %v769
      %949 = vst.msk [vmem:[%s240 + $0x120] sm:$0xff] %vm912, %v774
      %950 = vst.msk [vmem:[%s240 + $0x128] sm:$0xff] %vm912, %v779
      %951 = vst.msk [vmem:[%s240 + $0x130] sm:$0xff] %vm912, %v784
      %952 = vst.msk [vmem:[%s240 + $0x138] sm:$0xff] %vm912, %v789
      %953 = vst.msk [vmem:[%s240 + $0x140] sm:$0xff] %vm912, %v794
      %954 = vst.msk [vmem:[%s240 + $0x148] sm:$0xff] %vm912, %v799
      %955 = vst.msk [vmem:[%s240 + $0x150] sm:$0xff] %vm912, %v804
      %956 = vst.msk [vmem:[%s240 + $0x158] sm:$0xff] %vm912, %v809
      %957 = vst.msk [vmem:[%s240 + $0x160] sm:$0xff] %vm912, %v814
      %958 = vst.msk [vmem:[%s240 + $0x168] sm:$0xff] %vm912, %v819
      %959 = vst.msk [vmem:[%s240 + $0x170] sm:$0xff] %vm912, %v824
      %960 = vst.msk [vmem:[%s240 + $0x178] sm:$0xff] %vm912, %v829
      %961 = vst.msk [vmem:[%s240 + $0x180] sm:$0xff] %vm912, %v834
      %962 = vst.msk [vmem:[%s240 + $0x188] sm:$0xff] %vm912, %v839
      %963 = vst.msk [vmem:[%s240 + $0x190] sm:$0xff] %vm912, %v844
      %964 = vst.msk [vmem:[%s240 + $0x198] sm:$0xff] %vm912, %v849
      %965 = vst.msk [vmem:[%s240 + $0x1a0] sm:$0xff] %vm912, %v854
      %966 = vst.msk [vmem:[%s240 + $0x1a8] sm:$0xff] %vm912, %v859
      %967 = vst.msk [vmem:[%s240 + $0x1b0] sm:$0xff] %vm912, %v864
      %968 = vst.msk [vmem:[%s240 + $0x1b8] sm:$0xff] %vm912, %v869
      %969 = vst.msk [vmem:[%s240 + $0x1c0] sm:$0xff] %vm912, %v874
      %970 = vst.msk [vmem:[%s240 + $0x1c8] sm:$0xff] %vm912, %v879
      %971 = vst.msk [vmem:[%s240 + $0x1d0] sm:$0xff] %vm912, %v884
      %972 = vst.msk [vmem:[%s240 + $0x1d8] sm:$0xff] %vm912, %v889
      %973 = vst.msk [vmem:[%s240 + $0x1e0] sm:$0xff] %vm912, %v894
      %974 = vst.msk [vmem:[%s240 + $0x1e8] sm:$0xff] %vm912, %v899
      %975 = vst.msk [vmem:[%s240 + $0x1f0] sm:$0xff] %vm912, %v904
      %976 = vst.msk [vmem:[%s240 + $0x1f8] sm:$0xff] %vm912, %v909
      %v977 = vld [vmem:[%s2] sm:$0x1]
      %v979 = vlaneseq
      %v980 = vshrl.u32 %v979, 7
      %v981 = vsub.s32 0, %v980
      %v982 = vrot.slane %v977, %v981
      %983 = vrot.lane.b32.xlu0 %v982, 8
      %v984 = vpop.permute.xlu0 %983
      %v986 = vadd.f32 %v594, %v984
      %v987 = vadd.f32 %v599, %v984
      %v988 = vadd.f32 %v604, %v984
      %v989 = vadd.f32 %v609, %v984
      %v990 = vadd.f32 %v614, %v984
      %v991 = vadd.f32 %v619, %v984
      %v992 = vadd.f32 %v624, %v984
      %v993 = vadd.f32 %v629, %v984
      %v994 = vadd.f32 %v634, %v984
      %v995 = vadd.f32 %v639, %v984
      %v996 = vadd.f32 %v644, %v984
      %v997 = vadd.f32 %v649, %v984
      %v998 = vadd.f32 %v654, %v984
      %v999 = vadd.f32 %v659, %v984
      %v1000 = vadd.f32 %v664, %v984
      %v1001 = vadd.f32 %v669, %v984
      %v1002 = vadd.f32 %v674, %v984
      %v1003 = vadd.f32 %v679, %v984
      %v1004 = vadd.f32 %v684, %v984
      %v1005 = vadd.f32 %v689, %v984
      %v1006 = vadd.f32 %v694, %v984
      %v1007 = vadd.f32 %v699, %v984
      %v1008 = vadd.f32 %v704, %v984
      %v1009 = vadd.f32 %v709, %v984
      %v1010 = vadd.f32 %v714, %v984
      %v1011 = vadd.f32 %v719, %v984
      %v1012 = vadd.f32 %v724, %v984
      %v1013 = vadd.f32 %v729, %v984
      %v1014 = vadd.f32 %v734, %v984
      %v1015 = vadd.f32 %v739, %v984
      %v1016 = vadd.f32 %v744, %v984
      %v1017 = vadd.f32 %v749, %v984
      %v1018 = vadd.f32 %v754, %v984
      %v1019 = vadd.f32 %v759, %v984
      %v1020 = vadd.f32 %v764, %v984
      %v1021 = vadd.f32 %v769, %v984
      %v1022 = vadd.f32 %v774, %v984
      %v1023 = vadd.f32 %v779, %v984
      %v1024 = vadd.f32 %v784, %v984
      %v1025 = vadd.f32 %v789, %v984
      %v1026 = vadd.f32 %v794, %v984
      %v1027 = vadd.f32 %v799, %v984
      %v1028 = vadd.f32 %v804, %v984
      %v1029 = vadd.f32 %v809, %v984
      %v1030 = vadd.f32 %v814, %v984
      %v1031 = vadd.f32 %v819, %v984
      %v1032 = vadd.f32 %v824, %v984
      %v1033 = vadd.f32 %v829, %v984
      %v1034 = vadd.f32 %v834, %v984
      %v1035 = vadd.f32 %v839, %v984
      %v1036 = vadd.f32 %v844, %v984
      %v1037 = vadd.f32 %v849, %v984
      %v1038 = vadd.f32 %v854, %v984
      %v1039 = vadd.f32 %v859, %v984
      %v1040 = vadd.f32 %v864, %v984
      %v1041 = vadd.f32 %v869, %v984
      %v1042 = vadd.f32 %v874, %v984
      %v1043 = vadd.f32 %v879, %v984
      %v1044 = vadd.f32 %v884, %v984
      %v1045 = vadd.f32 %v889, %v984
      %v1046 = vadd.f32 %v894, %v984
      %v1047 = vadd.f32 %v899, %v984
      %v1048 = vadd.f32 %v904, %v984
      %v1049 = vadd.f32 %v909, %v984
      %1114 = vrot.lane.b32.xlu0 %v986, 120
      %v1115 = vpop.permute.xlu0 %1114
      %1116 = vrot.lane.b32.xlu0 %v987, 120
      %v1117 = vpop.permute.xlu0 %1116
      %1118 = vrot.lane.b32.xlu0 %v988, 120
      %v1119 = vpop.permute.xlu0 %1118
      %1120 = vrot.lane.b32.xlu0 %v989, 120
      %v1121 = vpop.permute.xlu0 %1120
      %1122 = vrot.lane.b32.xlu0 %v990, 120
      %v1123 = vpop.permute.xlu0 %1122
      %1124 = vrot.lane.b32.xlu0 %v991, 120
      %v1125 = vpop.permute.xlu0 %1124
      %1126 = vrot.lane.b32.xlu0 %v992, 120
      %v1127 = vpop.permute.xlu0 %1126
      %1128 = vrot.lane.b32.xlu0 %v993, 120
      %v1129 = vpop.permute.xlu0 %1128
      %1130 = vrot.lane.b32.xlu0 %v994, 120
      %v1131 = vpop.permute.xlu0 %1130
      %1132 = vrot.lane.b32.xlu0 %v995, 120
      %v1133 = vpop.permute.xlu0 %1132
      %1134 = vrot.lane.b32.xlu0 %v996, 120
      %v1135 = vpop.permute.xlu0 %1134
      %1136 = vrot.lane.b32.xlu0 %v997, 120
      %v1137 = vpop.permute.xlu0 %1136
      %1138 = vrot.lane.b32.xlu0 %v998, 120
      %v1139 = vpop.permute.xlu0 %1138
      %1140 = vrot.lane.b32.xlu0 %v999, 120
      %v1141 = vpop.permute.xlu0 %1140
      %1142 = vrot.lane.b32.xlu0 %v1000, 120
      %v1143 = vpop.permute.xlu0 %1142
      %1144 = vrot.lane.b32.xlu0 %v1001, 120
      %v1145 = vpop.permute.xlu0 %1144
      %1146 = vrot.lane.b32.xlu0 %v1002, 120
      %v1147 = vpop.permute.xlu0 %1146
      %1148 = vrot.lane.b32.xlu0 %v1003, 120
      %v1149 = vpop.permute.xlu0 %1148
      %1150 = vrot.lane.b32.xlu0 %v1004, 120
      %v1151 = vpop.permute.xlu0 %1150
      %1152 = vrot.lane.b32.xlu0 %v1005, 120
      %v1153 = vpop.permute.xlu0 %1152
      %1154 = vrot.lane.b32.xlu0 %v1006, 120
      %v1155 = vpop.permute.xlu0 %1154
      %1156 = vrot.lane.b32.xlu0 %v1007, 120
      %v1157 = vpop.permute.xlu0 %1156
      %1158 = vrot.lane.b32.xlu0 %v1008, 120
      %v1159 = vpop.permute.xlu0 %1158
      %1160 = vrot.lane.b32.xlu0 %v1009, 120
      %v1161 = vpop.permute.xlu0 %1160
      %1162 = vrot.lane.b32.xlu0 %v1010, 120
      %v1163 = vpop.permute.xlu0 %1162
      %1164 = vrot.lane.b32.xlu0 %v1011, 120
      %v1165 = vpop.permute.xlu0 %1164
      %1166 = vrot.lane.b32.xlu0 %v1012, 120
      %v1167 = vpop.permute.xlu0 %1166
      %1168 = vrot.lane.b32.xlu0 %v1013, 120
      %v1169 = vpop.permute.xlu0 %1168
      %1170 = vrot.lane.b32.xlu0 %v1014, 120
      %v1171 = vpop.permute.xlu0 %1170
      %1172 = vrot.lane.b32.xlu0 %v1015, 120
      %v1173 = vpop.permute.xlu0 %1172
      %1174 = vrot.lane.b32.xlu0 %v1016, 120
      %v1175 = vpop.permute.xlu0 %1174
      %1176 = vrot.lane.b32.xlu0 %v1017, 120
      %v1177 = vpop.permute.xlu0 %1176
      %1178 = vrot.lane.b32.xlu0 %v1018, 120
      %v1179 = vpop.permute.xlu0 %1178
      %1180 = vrot.lane.b32.xlu0 %v1019, 120
      %v1181 = vpop.permute.xlu0 %1180
      %1182 = vrot.lane.b32.xlu0 %v1020, 120
      %v1183 = vpop.permute.xlu0 %1182
      %1184 = vrot.lane.b32.xlu0 %v1021, 120
      %v1185 = vpop.permute.xlu0 %1184
      %1186 = vrot.lane.b32.xlu0 %v1022, 120
      %v1187 = vpop.permute.xlu0 %1186
      %1188 = vrot.lane.b32.xlu0 %v1023, 120
      %v1189 = vpop.permute.xlu0 %1188
      %1190 = vrot.lane.b32.xlu0 %v1024, 120
      %v1191 = vpop.permute.xlu0 %1190
      %1192 = vrot.lane.b32.xlu0 %v1025, 120
      %v1193 = vpop.permute.xlu0 %1192
      %1194 = vrot.lane.b32.xlu0 %v1026, 120
      %v1195 = vpop.permute.xlu0 %1194
      %1196 = vrot.lane.b32.xlu0 %v1027, 120
      %v1197 = vpop.permute.xlu0 %1196
      %1198 = vrot.lane.b32.xlu0 %v1028, 120
      %v1199 = vpop.permute.xlu0 %1198
      %1200 = vrot.lane.b32.xlu0 %v1029, 120
      %v1201 = vpop.permute.xlu0 %1200
      %1202 = vrot.lane.b32.xlu0 %v1030, 120
      %v1203 = vpop.permute.xlu0 %1202
      %1204 = vrot.lane.b32.xlu0 %v1031, 120
      %v1205 = vpop.permute.xlu0 %1204
      %1206 = vrot.lane.b32.xlu0 %v1032, 120
      %v1207 = vpop.permute.xlu0 %1206
      %1208 = vrot.lane.b32.xlu0 %v1033, 120
      %v1209 = vpop.permute.xlu0 %1208
      %1210 = vrot.lane.b32.xlu0 %v1034, 120
      %v1211 = vpop.permute.xlu0 %1210
      %1212 = vrot.lane.b32.xlu0 %v1035, 120
      %v1213 = vpop.permute.xlu0 %1212
      %1214 = vrot.lane.b32.xlu0 %v1036, 120
      %v1215 = vpop.permute.xlu0 %1214
      %1216 = vrot.lane.b32.xlu0 %v1037, 120
      %v1217 = vpop.permute.xlu0 %1216
      %1218 = vrot.lane.b32.xlu0 %v1038, 120
      %v1219 = vpop.permute.xlu0 %1218
      %1220 = vrot.lane.b32.xlu0 %v1039, 120
      %v1221 = vpop.permute.xlu0 %1220
      %1222 = vrot.lane.b32.xlu0 %v1040, 120
      %v1223 = vpop.permute.xlu0 %1222
      %1224 = vrot.lane.b32.xlu0 %v1041, 120
      %v1225 = vpop.permute.xlu0 %1224
      %1226 = vrot.lane.b32.xlu0 %v1042, 120
      %v1227 = vpop.permute.xlu0 %1226
      %1228 = vrot.lane.b32.xlu0 %v1043, 120
      %v1229 = vpop.permute.xlu0 %1228
      %1230 = vrot.lane.b32.xlu0 %v1044, 120
      %v1231 = vpop.permute.xlu0 %1230
      %1232 = vrot.lane.b32.xlu0 %v1045, 120
      %v1233 = vpop.permute.xlu0 %1232
      %1234 = vrot.lane.b32.xlu0 %v1046, 120
      %v1235 = vpop.permute.xlu0 %1234
      %1236 = vrot.lane.b32.xlu0 %v1047, 120
      %v1237 = vpop.permute.xlu0 %1236
      %1238 = vrot.lane.b32.xlu0 %v1048, 120
      %v1239 = vpop.permute.xlu0 %1238
      %1240 = vrot.lane.b32.xlu0 %v1049, 120
      %v1241 = vpop.permute.xlu0 %1240
      %1306 = vst.msk [vmem:[%s246] sm:$0xff] %vm912, %v1115
      %1307 = vst.msk [vmem:[%s246 + $0x8] sm:$0xff] %vm912, %v1117
      %1308 = vst.msk [vmem:[%s246 + $0x10] sm:$0xff] %vm912, %v1119
      %1309 = vst.msk [vmem:[%s246 + $0x18] sm:$0xff] %vm912, %v1121
      %1310 = vst.msk [vmem:[%s246 + $0x20] sm:$0xff] %vm912, %v1123
      %1311 = vst.msk [vmem:[%s246 + $0x28] sm:$0xff] %vm912, %v1125
      %1312 = vst.msk [vmem:[%s246 + $0x30] sm:$0xff] %vm912, %v1127
      %1313 = vst.msk [vmem:[%s246 + $0x38] sm:$0xff] %vm912, %v1129
      %1314 = vst.msk [vmem:[%s246 + $0x40] sm:$0xff] %vm912, %v1131
      %1315 = vst.msk [vmem:[%s246 + $0x48] sm:$0xff] %vm912, %v1133
      %1316 = vst.msk [vmem:[%s246 + $0x50] sm:$0xff] %vm912, %v1135
      %1317 = vst.msk [vmem:[%s246 + $0x58] sm:$0xff] %vm912, %v1137
      %1318 = vst.msk [vmem:[%s246 + $0x60] sm:$0xff] %vm912, %v1139
      %1319 = vst.msk [vmem:[%s246 + $0x68] sm:$0xff] %vm912, %v1141
      %1320 = vst.msk [vmem:[%s246 + $0x70] sm:$0xff] %vm912, %v1143
      %1321 = vst.msk [vmem:[%s246 + $0x78] sm:$0xff] %vm912, %v1145
      %1322 = vst.msk [vmem:[%s246 + $0x80] sm:$0xff] %vm912, %v1147
      %1323 = vst.msk [vmem:[%s246 + $0x88] sm:$0xff] %vm912, %v1149
      %1324 = vst.msk [vmem:[%s246 + $0x90] sm:$0xff] %vm912, %v1151
      %1325 = vst.msk [vmem:[%s246 + $0x98] sm:$0xff] %vm912, %v1153
      %1326 = vst.msk [vmem:[%s246 + $0xa0] sm:$0xff] %vm912, %v1155
      %1327 = vst.msk [vmem:[%s246 + $0xa8] sm:$0xff] %vm912, %v1157
      %1328 = vst.msk [vmem:[%s246 + $0xb0] sm:$0xff] %vm912, %v1159
      %1329 = vst.msk [vmem:[%s246 + $0xb8] sm:$0xff] %vm912, %v1161
      %1330 = vst.msk [vmem:[%s246 + $0xc0] sm:$0xff] %vm912, %v1163
      %1331 = vst.msk [vmem:[%s246 + $0xc8] sm:$0xff] %vm912, %v1165
      %1332 = vst.msk [vmem:[%s246 + $0xd0] sm:$0xff] %vm912, %v1167
      %1333 = vst.msk [vmem:[%s246 + $0xd8] sm:$0xff] %vm912, %v1169
      %1334 = vst.msk [vmem:[%s246 + $0xe0] sm:$0xff] %vm912, %v1171
      %1335 = vst.msk [vmem:[%s246 + $0xe8] sm:$0xff] %vm912, %v1173
      %1336 = vst.msk [vmem:[%s246 + $0xf0] sm:$0xff] %vm912, %v1175
      %1337 = vst.msk [vmem:[%s246 + $0xf8] sm:$0xff] %vm912, %v1177
      %1338 = vst.msk [vmem:[%s246 + $0x100] sm:$0xff] %vm912, %v1179
      %1339 = vst.msk [vmem:[%s246 + $0x108] sm:$0xff] %vm912, %v1181
      %1340 = vst.msk [vmem:[%s246 + $0x110] sm:$0xff] %vm912, %v1183
      %1341 = vst.msk [vmem:[%s246 + $0x118] sm:$0xff] %vm912, %v1185
      %1342 = vst.msk [vmem:[%s246 + $0x120] sm:$0xff] %vm912, %v1187
      %1343 = vst.msk [vmem:[%s246 + $0x128] sm:$0xff] %vm912, %v1189
      %1344 = vst.msk [vmem:[%s246 + $0x130] sm:$0xff] %vm912, %v1191
      %1345 = vst.msk [vmem:[%s246 + $0x138] sm:$0xff] %vm912, %v1193
      %1346 = vst.msk [vmem:[%s246 + $0x140] sm:$0xff] %vm912, %v1195
      %1347 = vst.msk [vmem:[%s246 + $0x148] sm:$0xff] %vm912, %v1197
      %1348 = vst.msk [vmem:[%s246 + $0x150] sm:$0xff] %vm912, %v1199
      %1349 = vst.msk [vmem:[%s246 + $0x158] sm:$0xff] %vm912, %v1201
      %1350 = vst.msk [vmem:[%s246 + $0x160] sm:$0xff] %vm912, %v1203
      %1351 = vst.msk [vmem:[%s246 + $0x168] sm:$0xff] %vm912, %v1205
      %1352 = vst.msk [vmem:[%s246 + $0x170] sm:$0xff] %vm912, %v1207
      %1353 = vst.msk [vmem:[%s246 + $0x178] sm:$0xff] %vm912, %v1209
      %1354 = vst.msk [vmem:[%s246 + $0x180] sm:$0xff] %vm912, %v1211
      %1355 = vst.msk [vmem:[%s246 + $0x188] sm:$0xff] %vm912, %v1213
      %1356 = vst.msk [vmem:[%s246 + $0x190] sm:$0xff] %vm912, %v1215
      %1357 = vst.msk [vmem:[%s246 + $0x198] sm:$0xff] %vm912, %v1217
      %1358 = vst.msk [vmem:[%s246 + $0x1a0] sm:$0xff] %vm912, %v1219
      %1359 = vst.msk [vmem:[%s246 + $0x1a8] sm:$0xff] %vm912, %v1221
      %1360 = vst.msk [vmem:[%s246 + $0x1b0] sm:$0xff] %vm912, %v1223
      %1361 = vst.msk [vmem:[%s246 + $0x1b8] sm:$0xff] %vm912, %v1225
      %1362 = vst.msk [vmem:[%s246 + $0x1c0] sm:$0xff] %vm912, %v1227
      %1363 = vst.msk [vmem:[%s246 + $0x1c8] sm:$0xff] %vm912, %v1229
      %1364 = vst.msk [vmem:[%s246 + $0x1d0] sm:$0xff] %vm912, %v1231
      %1365 = vst.msk [vmem:[%s246 + $0x1d8] sm:$0xff] %vm912, %v1233
      %1366 = vst.msk [vmem:[%s246 + $0x1e0] sm:$0xff] %vm912, %v1235
      %1367 = vst.msk [vmem:[%s246 + $0x1e8] sm:$0xff] %vm912, %v1237
      %1368 = vst.msk [vmem:[%s246 + $0x1f0] sm:$0xff] %vm912, %v1239
      %1369 = vst.msk [vmem:[%s246 + $0x1f8] sm:$0xff] %vm912, %v1241
      %v1370 = vsel %vm912, %v594, 0.0
      %v1371 = vsel %vm912, %v599, 0.0
      %v1372 = vadd.f32 %v1370, %v1371
      %v1373 = vsel %vm912, %v604, 0.0
      %v1374 = vadd.f32 %v1372, %v1373
      %v1375 = vsel %vm912, %v609, 0.0
      %v1376 = vadd.f32 %v1374, %v1375
      %v1377 = vsel %vm912, %v614, 0.0
      %v1378 = vadd.f32 %v1376, %v1377
      %v1379 = vsel %vm912, %v619, 0.0
      %v1380 = vadd.f32 %v1378, %v1379
      %v1381 = vsel %vm912, %v624, 0.0
      %v1382 = vadd.f32 %v1380, %v1381
      %v1383 = vsel %vm912, %v629, 0.0
      %v1384 = vadd.f32 %v1382, %v1383
      %v1385 = vsel %vm912, %v634, 0.0
      %v1386 = vadd.f32 %v1384, %v1385
      %v1387 = vsel %vm912, %v639, 0.0
      %v1388 = vadd.f32 %v1386, %v1387
      %v1389 = vsel %vm912, %v644, 0.0
      %v1390 = vadd.f32 %v1388, %v1389
      %v1391 = vsel %vm912, %v649, 0.0
      %v1392 = vadd.f32 %v1390, %v1391
      %v1393 = vsel %vm912, %v654, 0.0
      %v1394 = vadd.f32 %v1392, %v1393
      %v1395 = vsel %vm912, %v659, 0.0
      %v1396 = vadd.f32 %v1394, %v1395
      %v1397 = vsel %vm912, %v664, 0.0
      %v1398 = vadd.f32 %v1396, %v1397
      %v1399 = vsel %vm912, %v669, 0.0
      %v1400 = vadd.f32 %v1398, %v1399
      %v1401 = vsel %vm912, %v674, 0.0
      %v1402 = vadd.f32 %v1400, %v1401
      %v1403 = vsel %vm912, %v679, 0.0
      %v1404 = vadd.f32 %v1402, %v1403
      %v1405 = vsel %vm912, %v684, 0.0
      %v1406 = vadd.f32 %v1404, %v1405
      %v1407 = vsel %vm912, %v689, 0.0
      %v1408 = vadd.f32 %v1406, %v1407
      %v1409 = vsel %vm912, %v694, 0.0
      %v1410 = vadd.f32 %v1408, %v1409
      %v1411 = vsel %vm912, %v699, 0.0
      %v1412 = vadd.f32 %v1410, %v1411
      %v1413 = vsel %vm912, %v704, 0.0
      %v1414 = vadd.f32 %v1412, %v1413
      %v1415 = vsel %vm912, %v709, 0.0
      %v1416 = vadd.f32 %v1414, %v1415
      %v1417 = vsel %vm912, %v714, 0.0
      %v1418 = vadd.f32 %v1416, %v1417
      %v1419 = vsel %vm912, %v719, 0.0
      %v1420 = vadd.f32 %v1418, %v1419
      %v1421 = vsel %vm912, %v724, 0.0
      %v1422 = vadd.f32 %v1420, %v1421
      %v1423 = vsel %vm912, %v729, 0.0
      %v1424 = vadd.f32 %v1422, %v1423
      %v1425 = vsel %vm912, %v734, 0.0
      %v1426 = vadd.f32 %v1424, %v1425
      %v1427 = vsel %vm912, %v739, 0.0
      %v1428 = vadd.f32 %v1426, %v1427
      %v1429 = vsel %vm912, %v744, 0.0
      %v1430 = vadd.f32 %v1428, %v1429
      %v1431 = vsel %vm912, %v749, 0.0
      %v1432 = vadd.f32 %v1430, %v1431
      %v1433 = vsel %vm912, %v754, 0.0
      %v1434 = vadd.f32 %v1432, %v1433
      %v1435 = vsel %vm912, %v759, 0.0
      %v1436 = vadd.f32 %v1434, %v1435
      %v1437 = vsel %vm912, %v764, 0.0
      %v1438 = vadd.f32 %v1436, %v1437
      %v1439 = vsel %vm912, %v769, 0.0
      %v1440 = vadd.f32 %v1438, %v1439
      %v1441 = vsel %vm912, %v774, 0.0
      %v1442 = vadd.f32 %v1440, %v1441
      %v1443 = vsel %vm912, %v779, 0.0
      %v1444 = vadd.f32 %v1442, %v1443
      %v1445 = vsel %vm912, %v784, 0.0
      %v1446 = vadd.f32 %v1444, %v1445
      %v1447 = vsel %vm912, %v789, 0.0
      %v1448 = vadd.f32 %v1446, %v1447
      %v1449 = vsel %vm912, %v794, 0.0
      %v1450 = vadd.f32 %v1448, %v1449
      %v1451 = vsel %vm912, %v799, 0.0
      %v1452 = vadd.f32 %v1450, %v1451
      %v1453 = vsel %vm912, %v804, 0.0
      %v1454 = vadd.f32 %v1452, %v1453
      %v1455 = vsel %vm912, %v809, 0.0
      %v1456 = vadd.f32 %v1454, %v1455
      %v1457 = vsel %vm912, %v814, 0.0
      %v1458 = vadd.f32 %v1456, %v1457
      %v1459 = vsel %vm912, %v819, 0.0
      %v1460 = vadd.f32 %v1458, %v1459
      %v1461 = vsel %vm912, %v824, 0.0
      %v1462 = vadd.f32 %v1460, %v1461
      %v1463 = vsel %vm912, %v829, 0.0
      %v1464 = vadd.f32 %v1462, %v1463
      %v1465 = vsel %vm912, %v834, 0.0
      %v1466 = vadd.f32 %v1464, %v1465
      %v1467 = vsel %vm912, %v839, 0.0
      %v1468 = vadd.f32 %v1466, %v1467
      %v1469 = vsel %vm912, %v844, 0.0
      %v1470 = vadd.f32 %v1468, %v1469
      %v1471 = vsel %vm912, %v849, 0.0
      %v1472 = vadd.f32 %v1470, %v1471
      %v1473 = vsel %vm912, %v854, 0.0
      %v1474 = vadd.f32 %v1472, %v1473
      %v1475 = vsel %vm912, %v859, 0.0
      %v1476 = vadd.f32 %v1474, %v1475
      %v1477 = vsel %vm912, %v864, 0.0
      %v1478 = vadd.f32 %v1476, %v1477
      %v1479 = vsel %vm912, %v869, 0.0
      %v1480 = vadd.f32 %v1478, %v1479
      %v1481 = vsel %vm912, %v874, 0.0
      %v1482 = vadd.f32 %v1480, %v1481
      %v1483 = vsel %vm912, %v879, 0.0
      %v1484 = vadd.f32 %v1482, %v1483
      %v1485 = vsel %vm912, %v884, 0.0
      %v1486 = vadd.f32 %v1484, %v1485
      %v1487 = vsel %vm912, %v889, 0.0
      %v1488 = vadd.f32 %v1486, %v1487
      %v1489 = vsel %vm912, %v894, 0.0
      %v1490 = vadd.f32 %v1488, %v1489
      %v1491 = vsel %vm912, %v899, 0.0
      %v1492 = vadd.f32 %v1490, %v1491
      %v1493 = vsel %vm912, %v904, 0.0
      %v1494 = vadd.f32 %v1492, %v1493
      %v1495 = vsel %vm912, %v909, 0.0
      %v1496 = vadd.f32 %v1494, %v1495
      %v1497 = vrot.slane %v1496, 4
      %v1498 = vadd.f32 %v1496, %v1497
      %v1499 = vrot.slane %v1498, 2
      %v1500 = vadd.f32 %v1498, %v1499
      %v1501 = vrot.slane %v1500, 1
      %v1502 = vadd.f32 %v1500, %v1501
      %v1503 = vmul.f32 %v594, %v594
      %v1504 = vmul.f32 %v599, %v599
      %v1505 = vmul.f32 %v604, %v604
      %v1506 = vmul.f32 %v609, %v609
      %v1507 = vmul.f32 %v614, %v614
      %v1508 = vmul.f32 %v619, %v619
      %v1509 = vmul.f32 %v624, %v624
      %v1510 = vmul.f32 %v629, %v629
      %v1511 = vmul.f32 %v634, %v634
      %v1512 = vmul.f32 %v639, %v639
      %v1513 = vmul.f32 %v644, %v644
      %v1514 = vmul.f32 %v649, %v649
      %v1515 = vmul.f32 %v654, %v654
      %v1516 = vmul.f32 %v659, %v659
      %v1517 = vmul.f32 %v664, %v664
      %v1518 = vmul.f32 %v669, %v669
      %v1519 = vmul.f32 %v674, %v674
      %v1520 = vmul.f32 %v679, %v679
      %v1521 = vmul.f32 %v684, %v684
      %v1522 = vmul.f32 %v689, %v689
      %v1523 = vmul.f32 %v694, %v694
      %v1524 = vmul.f32 %v699, %v699
      %v1525 = vmul.f32 %v704, %v704
      %v1526 = vmul.f32 %v709, %v709
      %v1527 = vmul.f32 %v714, %v714
      %v1528 = vmul.f32 %v719, %v719
      %v1529 = vmul.f32 %v724, %v724
      %v1530 = vmul.f32 %v729, %v729
      %v1531 = vmul.f32 %v734, %v734
      %v1532 = vmul.f32 %v739, %v739
      %v1533 = vmul.f32 %v744, %v744
      %v1534 = vmul.f32 %v749, %v749
      %v1535 = vmul.f32 %v754, %v754
      %v1536 = vmul.f32 %v759, %v759
      %v1537 = vmul.f32 %v764, %v764
      %v1538 = vmul.f32 %v769, %v769
      %v1539 = vmul.f32 %v774, %v774
      %v1540 = vmul.f32 %v779, %v779
      %v1541 = vmul.f32 %v784, %v784
      %v1542 = vmul.f32 %v789, %v789
      %v1543 = vmul.f32 %v794, %v794
      %v1544 = vmul.f32 %v799, %v799
      %v1545 = vmul.f32 %v804, %v804
      %v1546 = vmul.f32 %v809, %v809
      %v1547 = vmul.f32 %v814, %v814
      %v1548 = vmul.f32 %v819, %v819
      %v1549 = vmul.f32 %v824, %v824
      %v1550 = vmul.f32 %v829, %v829
      %v1551 = vmul.f32 %v834, %v834
      %v1552 = vmul.f32 %v839, %v839
      %v1553 = vmul.f32 %v844, %v844
      %v1554 = vmul.f32 %v849, %v849
      %v1555 = vmul.f32 %v854, %v854
      %v1556 = vmul.f32 %v859, %v859
      %v1557 = vmul.f32 %v864, %v864
      %v1558 = vmul.f32 %v869, %v869
      %v1559 = vmul.f32 %v874, %v874
      %v1560 = vmul.f32 %v879, %v879
      %v1561 = vmul.f32 %v884, %v884
      %v1562 = vmul.f32 %v889, %v889
      %v1563 = vmul.f32 %v894, %v894
      %v1564 = vmul.f32 %v899, %v899
      %v1565 = vmul.f32 %v904, %v904
      %v1566 = vmul.f32 %v909, %v909
      %v1567 = vsel %vm912, %v1503, 0.0
      %v1568 = vsel %vm912, %v1504, 0.0
      %v1569 = vadd.f32 %v1567, %v1568
      %v1570 = vsel %vm912, %v1505, 0.0
      %v1571 = vadd.f32 %v1569, %v1570
      %v1572 = vsel %vm912, %v1506, 0.0
      %v1573 = vadd.f32 %v1571, %v1572
      %v1574 = vsel %vm912, %v1507, 0.0
      %v1575 = vadd.f32 %v1573, %v1574
      %v1576 = vsel %vm912, %v1508, 0.0
      %v1577 = vadd.f32 %v1575, %v1576
      %v1578 = vsel %vm912, %v1509, 0.0
      %v1579 = vadd.f32 %v1577, %v1578
      %v1580 = vsel %vm912, %v1510, 0.0
      %v1581 = vadd.f32 %v1579, %v1580
      %v1582 = vsel %vm912, %v1511, 0.0
      %v1583 = vadd.f32 %v1581, %v1582
      %v1584 = vsel %vm912, %v1512, 0.0
      %v1585 = vadd.f32 %v1583, %v1584
      %v1586 = vsel %vm912, %v1513, 0.0
      %v1587 = vadd.f32 %v1585, %v1586
      %v1588 = vsel %vm912, %v1514, 0.0
      %v1589 = vadd.f32 %v1587, %v1588
      %v1590 = vsel %vm912, %v1515, 0.0
      %v1591 = vadd.f32 %v1589, %v1590
      %v1592 = vsel %vm912, %v1516, 0.0
      %v1593 = vadd.f32 %v1591, %v1592
      %v1594 = vsel %vm912, %v1517, 0.0
      %v1595 = vadd.f32 %v1593, %v1594
      %v1596 = vsel %vm912, %v1518, 0.0
      %v1597 = vadd.f32 %v1595, %v1596
      %v1598 = vsel %vm912, %v1519, 0.0
      %v1599 = vadd.f32 %v1597, %v1598
      %v1600 = vsel %vm912, %v1520, 0.0
      %v1601 = vadd.f32 %v1599, %v1600
      %v1602 = vsel %vm912, %v1521, 0.0
      %v1603 = vadd.f32 %v1601, %v1602
      %v1604 = vsel %vm912, %v1522, 0.0
      %v1605 = vadd.f32 %v1603, %v1604
      %v1606 = vsel %vm912, %v1523, 0.0
      %v1607 = vadd.f32 %v1605, %v1606
      %v1608 = vsel %vm912, %v1524, 0.0
      %v1609 = vadd.f32 %v1607, %v1608
      %v1610 = vsel %vm912, %v1525, 0.0
      %v1611 = vadd.f32 %v1609, %v1610
      %v1612 = vsel %vm912, %v1526, 0.0
      %v1613 = vadd.f32 %v1611, %v1612
      %v1614 = vsel %vm912, %v1527, 0.0
      %v1615 = vadd.f32 %v1613, %v1614
      %v1616 = vsel %vm912, %v1528, 0.0
      %v1617 = vadd.f32 %v1615, %v1616
      %v1618 = vsel %vm912, %v1529, 0.0
      %v1619 = vadd.f32 %v1617, %v1618
      %v1620 = vsel %vm912, %v1530, 0.0
      %v1621 = vadd.f32 %v1619, %v1620
      %v1622 = vsel %vm912, %v1531, 0.0
      %v1623 = vadd.f32 %v1621, %v1622
      %v1624 = vsel %vm912, %v1532, 0.0
      %v1625 = vadd.f32 %v1623, %v1624
      %v1626 = vsel %vm912, %v1533, 0.0
      %v1627 = vadd.f32 %v1625, %v1626
      %v1628 = vsel %vm912, %v1534, 0.0
      %v1629 = vadd.f32 %v1627, %v1628
      %v1630 = vsel %vm912, %v1535, 0.0
      %v1631 = vadd.f32 %v1629, %v1630
      %v1632 = vsel %vm912, %v1536, 0.0
      %v1633 = vadd.f32 %v1631, %v1632
      %v1634 = vsel %vm912, %v1537, 0.0
      %v1635 = vadd.f32 %v1633, %v1634
      %v1636 = vsel %vm912, %v1538, 0.0
      %v1637 = vadd.f32 %v1635, %v1636
      %v1638 = vsel %vm912, %v1539, 0.0
      %v1639 = vadd.f32 %v1637, %v1638
      %v1640 = vsel %vm912, %v1540, 0.0
      %v1641 = vadd.f32 %v1639, %v1640
      %v1642 = vsel %vm912, %v1541, 0.0
      %v1643 = vadd.f32 %v1641, %v1642
      %v1644 = vsel %vm912, %v1542, 0.0
      %v1645 = vadd.f32 %v1643, %v1644
      %v1646 = vsel %vm912, %v1543, 0.0
      %v1647 = vadd.f32 %v1645, %v1646
      %v1648 = vsel %vm912, %v1544, 0.0
      %v1649 = vadd.f32 %v1647, %v1648
      %v1650 = vsel %vm912, %v1545, 0.0
      %v1651 = vadd.f32 %v1649, %v1650
      %v1652 = vsel %vm912, %v1546, 0.0
      %v1653 = vadd.f32 %v1651, %v1652
      %v1654 = vsel %vm912, %v1547, 0.0
      %v1655 = vadd.f32 %v1653, %v1654
      %v1656 = vsel %vm912, %v1548, 0.0
      %v1657 = vadd.f32 %v1655, %v1656
      %v1658 = vsel %vm912, %v1549, 0.0
      %v1659 = vadd.f32 %v1657, %v1658
      %v1660 = vsel %vm912, %v1550, 0.0
      %v1661 = vadd.f32 %v1659, %v1660
      %v1662 = vsel %vm912, %v1551, 0.0
      %v1663 = vadd.f32 %v1661, %v1662
      %v1664 = vsel %vm912, %v1552, 0.0
      %v1665 = vadd.f32 %v1663, %v1664
      %v1666 = vsel %vm912, %v1553, 0.0
      %v1667 = vadd.f32 %v1665, %v1666
      %v1668 = vsel %vm912, %v1554, 0.0
      %v1669 = vadd.f32 %v1667, %v1668
      %v1670 = vsel %vm912, %v1555, 0.0
      %v1671 = vadd.f32 %v1669, %v1670
      %v1672 = vsel %vm912, %v1556, 0.0
      %v1673 = vadd.f32 %v1671, %v1672
      %v1674 = vsel %vm912, %v1557, 0.0
      %v1675 = vadd.f32 %v1673, %v1674
      %v1676 = vsel %vm912, %v1558, 0.0
      %v1677 = vadd.f32 %v1675, %v1676
      %v1678 = vsel %vm912, %v1559, 0.0
      %v1679 = vadd.f32 %v1677, %v1678
      %v1680 = vsel %vm912, %v1560, 0.0
      %v1681 = vadd.f32 %v1679, %v1680
      %v1682 = vsel %vm912, %v1561, 0.0
      %v1683 = vadd.f32 %v1681, %v1682
      %v1684 = vsel %vm912, %v1562, 0.0
      %v1685 = vadd.f32 %v1683, %v1684
      %v1686 = vsel %vm912, %v1563, 0.0
      %v1687 = vadd.f32 %v1685, %v1686
      %v1688 = vsel %vm912, %v1564, 0.0
      %v1689 = vadd.f32 %v1687, %v1688
      %v1690 = vsel %vm912, %v1565, 0.0
      %v1691 = vadd.f32 %v1689, %v1690
      %v1692 = vsel %vm912, %v1566, 0.0
      %v1693 = vadd.f32 %v1691, %v1692
      %v1694 = vrot.slane %v1693, 4
      %v1695 = vadd.f32 %v1693, %v1694
      %v1696 = vrot.slane %v1695, 2
      %v1697 = vadd.f32 %v1695, %v1696
      %v1698 = vrot.slane %v1697, 1
      %v1699 = vadd.f32 %v1697, %v1698
      %vm1700 = vcmask 1040384
      %v1701 = vsel %vm1700, %v1502, %v1699
      %vm1702 = vcmask 58368
      %1703 = vst.msk [vmem:[%s251] sm:$0x3] %vm1702, %v1701
      %s1704 = smul.u32 64, %s17
      %p1705 = scmp.lt.s32.totalorder %s1704, 127
      %s1706 = scalar_select %p1705, %s1704, 127
      %s1707 = smul.addr %s1706, 8
      %s1708 = scalar_lea.vmem %s3, %s1707
      %s1709 = smul.u32 64, %s17
      %p1710 = scmp.lt.s32.totalorder %s1709, 127
      %s1711 = scalar_select %p1710, %s1709, 127
      %s1712 = smul.addr %s1711, 8
      %s1713 = scalar_lea.vmem %s4, %s1712
      %p1714 = scmp.lt.s32.totalorder %s17, 1
      %s1715 = scalar_select %p1714, %s17, 1
      %s1716 = smul.addr %s1715, 2
      %s1717 = scalar_lea.vmem %s5, %s1716
      // Predicated region
      $region33: #{unet_module_forward.6} parent=31 // pred_check
        %p1718 = pneg %p103
      $region34: #{unet_module_forward.6} parent=31 // pred_check_branch
        %1720 = sbr.rel (%p1718) target = $region36
      $region35: #{unet_module_forward.6} parent=31 // pred_region
        %s1721 = smul.u32 64, %s17
      $region36: #{unet_module_forward.6} parent=31 // pred_fallthru
        _
      // Predicated region
      $region37: #{unet_module_forward.6} parent=31 // pred_check
        %p1722 = pneg %p129
      $region38: #{unet_module_forward.6} parent=31 // pred_check_branch
        %1724 = sbr.rel (%p1722) target = $region40
      $region39: #{unet_module_forward.6} parent=31 // pred_region
        %s1725 = smul.u32 64, %s17
      $region40: #{unet_module_forward.6} parent=31 // pred_fallthru
        _
      // Predicated region
      $region41: #{unet_module_forward.6} parent=31 // pred_check
        %p1726 = pneg %p155
      $region42: #{unet_module_forward.6} parent=31 // pred_check_branch
        %1728 = sbr.rel (%p1726) target = $region44
      $region43: #{unet_module_forward.6} parent=31 // pred_region
        _
      $region44: #{unet_module_forward.6} parent=31 // pred_fallthru
        _
    $region32: #{unet_module_forward.6} parent=5 // pred_fallthru
      _
    %p1729 = scmp.le.s32.totalorder 2, %s12
    // Predicated region
    $region45: #{unet_module_forward.6} parent=5 // pred_check
      %p1730 = pneg %p1729
    $region46: #{unet_module_forward.6} parent=5 // pred_check_branch
      %1732 = sbr.rel (%p1730) target = $region48
    $region47: #{unet_module_forward.6} parent=5 // pred_region
      %s1733 = ssub.s32 %s12, 2
      // Predicated region
      $region49: #{unet_module_forward.6} parent=47 // pred_check
        %p1734 = pneg %p109
      $region50: #{unet_module_forward.6} parent=47 // pred_check_branch
        %1736 = sbr.rel (%p1734) target = $region52
      $region51: #{unet_module_forward.6} parent=47 // pred_region
        %s1737 = smul.u32 64, %s18
        %p1738 = scmp.lt.s32.totalorder %s1737, 127
        %s1739 = scalar_select %p1738, %s1737, 127
        %s1740 = smul.addr %s1739, 8
        %s1741 = scalar_lea.vmem %s3, %s1740
      $region52: #{unet_module_forward.6} parent=47 // pred_fallthru
        _
      // Predicated region
      $region53: #{unet_module_forward.6} parent=47 // pred_check
        %p1742 = pneg %p135
      $region54: #{unet_module_forward.6} parent=47 // pred_check_branch
        %1744 = sbr.rel (%p1742) target = $region56
      $region55: #{unet_module_forward.6} parent=47 // pred_region
        %s1745 = smul.u32 64, %s18
        %p1746 = scmp.lt.s32.totalorder %s1745, 127
        %s1747 = scalar_select %p1746, %s1745, 127
        %s1748 = smul.addr %s1747, 8
        %s1749 = scalar_lea.vmem %s4, %s1748
      $region56: #{unet_module_forward.6} parent=47 // pred_fallthru
        _
      // Predicated region
      $region57: #{unet_module_forward.6} parent=47 // pred_check
        %p1750 = pneg %p161
      $region58: #{unet_module_forward.6} parent=47 // pred_check_branch
        %1752 = sbr.rel (%p1750) target = $region60
      $region59: #{unet_module_forward.6} parent=47 // pred_region
        %p1753 = scmp.lt.s32.totalorder %s18, 1
        %s1754 = scalar_select %p1753, %s18, 1
        %s1755 = smul.addr %s1754, 2
        %s1756 = scalar_lea.vmem %s5, %s1755
      $region60: #{unet_module_forward.6} parent=47 // pred_fallthru
        _
    $region48: #{unet_module_forward.6} parent=5 // pred_fallthru
      _
  $region6: #{unet_module_forward.6} parent=0 // loop_footer
    %s16 = sadd.s32 1, %s12
  $region7: #{unet_module_forward.6} parent=0 // loop_footer_branch
    %11 = sbr.rel target = $region3
  $region8: #{unet_module_forward.6} parent=0 // loop_exit
    _

// kernel: tile.53
$region0: #{tile.53}
  #allocation0 [shape = 's32[1]{0}', space=sflag, size = 0x4, scoped, tag = 'scoped memory for tile.53']
  %s0 = inlined_call_operand.vmem [shape: f32[8], index: 0, kind: input, shape index: {}]
  %s1 = inlined_call_operand.vmem [shape: f32[16,8], index: 1, kind: output, shape index: {}]
  // Predicated region
  $region2: #{tile.53} parent=0 // pred_check
    _
  $region3: #{tile.53} parent=0 // pred_check_branch
    %3 = sbr.rel (0) target = $region5
  $region4: #{tile.53} parent=0 // pred_region
    _
  $region5: #{tile.53} parent=0 // pred_fallthru
    _
  %v4 = vld [vmem:[%s0] ss:$0 sm:$0xff]
  %5 = vst [vmem:[%s1] sm:$0xff] %v4
  %s6 = scalar_lea.vmem %s1, 8
  %7 = vst [vmem:[%s6] sm:$0xff] %v4

// kernel: tile.54
$region0: #{tile.54}
  %s0 = inlined_call_operand.vmem [shape: f32[16,8], index: 0, kind: input, shape index: {}]
  %s1 = inlined_call_operand.vmem [shape: f32[1,128], index: 1, kind: output, shape index: {}]
  $region1: #{tile.54} parent=0
    #allocation0 [shape = 'u8[4096]{0}', space=vmem, size = 0x1000, scoped, tag = 'scoped mem for output reshape']
    %v2 = vld [vmem:[%s0] sm:$0x1]
    %vm3 = vcmask 64512
    %4 = vst.msk [vmem:[#allocation0] sm:$0x1] %vm3, %v2
    %s5 = scalar_lea.vmem %s0, 15
    %v6 = vld [vmem:[%s5] sm:$0x1]
    %7 = vrot.lane.b32.xlu0 %v6, 120
    %v8 = vpop.permute.xlu0 %7
    %vm9 = vcmask 1048512
    %10 = vst.msk [vmem:[#allocation0] sm:$0x1] %vm9, %v8
    %s11 = scalar_lea.vmem %s0, 14
    %v12 = vld [vmem:[%s11] sm:$0x1]
    %13 = vrot.lane.b32.xlu0 %v12, 112
    %v14 = vpop.permute.xlu0 %13
    %vm15 = vcmask 982912
    %16 = vst.msk [vmem:[#allocation0] sm:$0x1] %vm15, %v14
    %s17 = scalar_lea.vmem %s0, 13
    %v18 = vld [vmem:[%s17] sm:$0x1]
    %19 = vrot.lane.b32.xlu0 %v18, 104
    %v20 = vpop.permute.xlu0 %19
    %vm21 = vcmask 917312
    %22 = vst.msk [vmem:[#allocation0] sm:$0x1] %vm21, %v20
    %s23 = scalar_lea.vmem %s0, 12
    %v24 = vld [vmem:[%s23] sm:$0x1]
    %25 = vrot.lane.b32.xlu0 %v24, 96
    %v26 = vpop.permute.xlu0 %25
    %vm27 = vcmask 851712
    %28 = vst.msk [vmem:[#allocation0] sm:$0x1] %vm27, %v26
    %s29 = scalar_lea.vmem %s0, 11
    %v30 = vld [vmem:[%s29] sm:$0x1]
    %31 = vrot.lane.b32.xlu0 %v30, 88
    %v32 = vpop.permute.xlu0 %31
    %vm33 = vcmask 786112
    %34 = vst.msk [vmem:[#allocation0] sm:$0x1] %vm33, %v32
    %s35 = scalar_lea.vmem %s0, 10
    %v36 = vld [vmem:[%s35] sm:$0x1]
    %37 = vrot.lane.b32.xlu0 %v36, 80
    %v38 = vpop.permute.xlu0 %37
    %vm39 = vcmask 720512
    %40 = vst.msk [vmem:[#allocation0] sm:$0x1] %vm39, %v38
    %s41 = scalar_lea.vmem %s0, 9
    %v42 = vld [vmem:[%s41] sm:$0x1]
    %43 = vrot.lane.b32.xlu0 %v42, 72
    %v44 = vpop.permute.xlu0 %43
    %vm45 = vcmask 654912
    %46 = vst.msk [vmem:[#allocation0] sm:$0x1] %vm45, %v44
    %s47 = scalar_lea.vmem %s0, 8
    %v48 = vld [vmem:[%s47] sm:$0x1]
    %49 = vrot.lane.b32.xlu0 %v48, 64
    %v50 = vpop.permute.xlu0 %49
    %vm51 = vcmask 589312
    %52 = vst.msk [vmem:[#allocation0] sm:$0x1] %vm51, %v50
    %s53 = scalar_lea.vmem %s0, 7
    %v54 = vld [vmem:[%s53] sm:$0x1]
    %55 = vrot.lane.b32.xlu0 %v54, 56
    %v56 = vpop.permute.xlu0 %55
    %vm57 = vcmask 523712
    %58 = vst.msk [vmem:[#allocation0] sm:$0x1] %vm57, %v56
    %s59 = scalar_lea.vmem %s0, 6
    %v60 = vld [vmem:[%s59] sm:$0x1]
    %61 = vrot.lane.b32.xlu0 %v60, 48
    %v62 = vpop.permute.xlu0 %61
    %vm63 = vcmask 458112
    %64 = vst.msk [vmem:[#allocation0] sm:$0x1] %vm63, %v62
    %s65 = scalar_lea.vmem %s0, 5
    %v66 = vld [vmem:[%s65] sm:$0x1]
    %67 = vrot.lane.b32.xlu0 %v66, 40
    %v68 = vpop.permute.xlu0 %67
    %vm69 = vcmask 392512
    %70 = vst.msk [vmem:[#allocation0] sm:$0x1] %vm69, %v68
    %s71 = scalar_lea.vmem %s0, 4
    %v72 = vld [vmem:[%s71] sm:$0x1]
    %73 = vrot.lane.b32.xlu0 %v72, 32
    %v74 = vpop.permute.xlu0 %73
    %vm75 = vcmask 326912
    %76 = vst.msk [vmem:[#allocation0] sm:$0x1] %vm75, %v74
    %s77 = scalar_lea.vmem %s0, 3
    %v78 = vld [vmem:[%s77] sm:$0x1]
    %79 = vrot.lane.b32.xlu0 %v78, 24
    %v80 = vpop.permute.xlu0 %79
    %vm81 = vcmask 261312
    %82 = vst.msk [vmem:[#allocation0] sm:$0x1] %vm81, %v80
    %s83 = scalar_lea.vmem %s0, 2
    %v84 = vld [vmem:[%s83] sm:$0x1]
    %85 = vrot.lane.b32.xlu0 %v84, 16
    %v86 = vpop.permute.xlu0 %85
    %vm87 = vcmask 195712
    %88 = vst.msk [vmem:[#allocation0] sm:$0x1] %vm87, %v86
    %s89 = scalar_lea.vmem %s0, 1
    %v90 = vld [vmem:[%s89] sm:$0x1]
    %91 = vrot.lane.b32.xlu0 %v90, 8
    %v92 = vpop.permute.xlu0 %91
    %vm93 = vcmask 130112
    %94 = vst.msk [vmem:[#allocation0] sm:$0x1] %vm93, %v92
    %s96 = sshll.u32 1, 1
    %s97 = ssub.s32 %s96, 1
    %v99 = vld [vmem:[#allocation0] sm:%s97]
    %s100 = sshll.u32 1, 1
    %s101 = ssub.s32 %s100, 1
    %102 = vst [vmem:[%s1] sm:%s101] %v99

// kernel: unet_module_forward.7
$region0: #{unet_module_forward.7}
  #allocation0 [shape = 'u32[]', space=smem, size = 0x4, offset = 0x4, fixed_abs, tag = 'smem constant byte address 0x4 - core index']
  #allocation1 [shape = 'u32[144,128]{1,0:T(1,128)}', space=vmem, size = 0x12000, scoped, tag = 'internal scratch']
  %s0 = inlined_call_operand.vmem [shape: f32[64,128], index: 0, kind: input, shape index: {}]
  %s1 = inlined_call_operand.vmem [shape: f32[1,128], index: 1, kind: input, shape index: {}]
  %s2 = inlined_call_operand.vmem [shape: f32[1,128], index: 2, kind: input, shape index: {}]
  %s3 = inlined_call_operand.vmem [shape: f32[1,128], index: 3, kind: input, shape index: {}]
  %s4 = inlined_call_operand.vmem [shape: f32[64,128], index: 4, kind: output, shape index: {}]
  %s5 = sld [smem:[#allocation0]]
  $region26: #{unet_module_forward.7} parent=0
    _
  %s7 = ssub.s32 1, %s5
  %s8 = scalar_select 0, %s7, %s5
  // Predicated region
  $region2: #{unet_module_forward.7} parent=0 // pred_check
    _
  $region3: #{unet_module_forward.7} parent=0 // pred_check_branch
    %10 = sbr.rel (0) target = $region5
  $region4: #{unet_module_forward.7} parent=0 // pred_region
    _
  $region5: #{unet_module_forward.7} parent=0 // pred_fallthru
    _
  // Predicated region
  $region6: #{unet_module_forward.7} parent=0 // pred_check
    _
  $region7: #{unet_module_forward.7} parent=0 // pred_check_branch
    %12 = sbr.rel (0) target = $region9
  $region8: #{unet_module_forward.7} parent=0 // pred_region
    _
  $region9: #{unet_module_forward.7} parent=0 // pred_fallthru
    _
  // Predicated region
  $region10: #{unet_module_forward.7} parent=0 // pred_check
    _
  $region11: #{unet_module_forward.7} parent=0 // pred_check_branch
    %14 = sbr.rel (0) target = $region13
  $region12: #{unet_module_forward.7} parent=0 // pred_region
    _
  $region13: #{unet_module_forward.7} parent=0 // pred_fallthru
    _
  // Predicated region
  $region14: #{unet_module_forward.7} parent=0 // pred_check
    _
  $region15: #{unet_module_forward.7} parent=0 // pred_check_branch
    %16 = sbr.rel (0) target = $region17
  $region16: #{unet_module_forward.7} parent=0 // pred_region
    _
  $region17: #{unet_module_forward.7} parent=0 // pred_fallthru
    _
  %v17 = vld [vmem:[%s0] sm:$0xff]
  %v18 = vld [vmem:[%s0 + $0x8] sm:$0xff]
  %v19 = vld [vmem:[%s0 + $0x10] sm:$0xff]
  %v20 = vld [vmem:[%s0 + $0x18] sm:$0xff]
  %v21 = vld [vmem:[%s0 + $0x20] sm:$0xff]
  %v22 = vld [vmem:[%s0 + $0x28] sm:$0xff]
  %v23 = vld [vmem:[%s0 + $0x30] sm:$0xff]
  %v24 = vld [vmem:[%s0 + $0x38] sm:$0xff]
  %v25 = vld [vmem:[%s1] sm:$0x1]
  %v27 = vlaneseq
  %v28 = vshrl.u32 %v27, 7
  %v29 = vsub.s32 0, %v28
  %v30 = vrot.slane %v25, %v29
  %v32 = vmul.f32 %v17, %v30
  %v33 = vmul.f32 %v18, %v30
  %v34 = vmul.f32 %v19, %v30
  %v35 = vmul.f32 %v20, %v30
  %v36 = vmul.f32 %v21, %v30
  %v37 = vmul.f32 %v22, %v30
  %v38 = vmul.f32 %v23, %v30
  %v39 = vmul.f32 %v24, %v30
  %v40 = vld [vmem:[%s2] sm:$0x1]
  %v42 = vlaneseq
  %v43 = vshrl.u32 %v42, 7
  %v44 = vsub.s32 0, %v43
  %v45 = vrot.slane %v40, %v44
  %v47 = vadd.f32 %v32, %v45
  %v48 = vadd.f32 %v33, %v45
  %v49 = vadd.f32 %v34, %v45
  %v50 = vadd.f32 %v35, %v45
  %v51 = vadd.f32 %v36, %v45
  %v52 = vadd.f32 %v37, %v45
  %v53 = vadd.f32 %v38, %v45
  %v54 = vadd.f32 %v39, %v45
  %vm55 = vcmp.ge.f32.partialorder %v47, 0.0
  %vm56 = vcmp.ge.f32.partialorder %v48, 0.0
  %vm57 = vcmp.ge.f32.partialorder %v49, 0.0
  %vm58 = vcmp.ge.f32.partialorder %v50, 0.0
  %vm59 = vcmp.ge.f32.partialorder %v51, 0.0
  %vm60 = vcmp.ge.f32.partialorder %v52, 0.0
  %vm61 = vcmp.ge.f32.partialorder %v53, 0.0
  %vm62 = vcmp.ge.f32.partialorder %v54, 0.0
  %v63 = vld [vmem:[%s3] sm:$0x1]
  %v65 = vlaneseq
  %v66 = vshrl.u32 %v65, 7
  %v67 = vsub.s32 0, %v66
  %v68 = vrot.slane %v63, %v67
  %v70 = vmul.f32 %v68, %v47
  %v71 = vmul.f32 %v68, %v48
  %v72 = vmul.f32 %v68, %v49
  %v73 = vmul.f32 %v68, %v50
  %v74 = vmul.f32 %v68, %v51
  %v75 = vmul.f32 %v68, %v52
  %v76 = vmul.f32 %v68, %v53
  %v77 = vmul.f32 %v68, %v54
  %v78 = vsel %vm55, %v47, %v70
  %v79 = vsel %vm56, %v48, %v71
  %v80 = vsel %vm57, %v49, %v72
  %v81 = vsel %vm58, %v50, %v73
  %v82 = vsel %vm59, %v51, %v74
  %v83 = vsel %vm60, %v52, %v75
  %v84 = vsel %vm61, %v53, %v76
  %v85 = vsel %vm62, %v54, %v77
  %86 = vst [vmem:[%s4] sm:$0xff] %v78
  %87 = vst [vmem:[%s4 + $0x8] sm:$0xff] %v79
  %88 = vst [vmem:[%s4 + $0x10] sm:$0xff] %v80
  %89 = vst [vmem:[%s4 + $0x18] sm:$0xff] %v81
  %90 = vst [vmem:[%s4 + $0x20] sm:$0xff] %v82
  %91 = vst [vmem:[%s4 + $0x28] sm:$0xff] %v83
  %92 = vst [vmem:[%s4 + $0x30] sm:$0xff] %v84
  %93 = vst [vmem:[%s4 + $0x38] sm:$0xff] %v85
  // Predicated region
  $region18: #{unet_module_forward.7} parent=0 // pred_check
    _
  $region19: #{unet_module_forward.7} parent=0 // pred_check_branch
    %95 = sbr.rel (0) target = $region21
  $region20: #{unet_module_forward.7} parent=0 // pred_region
    _
  $region21: #{unet_module_forward.7} parent=0 // pred_fallthru
    _
  // Predicated region
  $region22: #{unet_module_forward.7} parent=0 // pred_check
    _
  $region23: #{unet_module_forward.7} parent=0 // pred_check_branch
    %97 = sbr.rel (0) target = $region25
  $region24: #{unet_module_forward.7} parent=0 // pred_region
    _
  $region25: #{unet_module_forward.7} parent=0 // pred_fallthru
    _

// kernel: unet_module_forward.8
$region0: #{unet_module_forward.8}
  #allocation0 [shape = 'u32[]', space=smem, size = 0x4, offset = 0x4, fixed_abs, tag = 'smem constant byte address 0x4 - core index']
  #allocation1 [shape = 'u32[144,128]{1,0:T(1,128)}', space=vmem, size = 0x12000, scoped, tag = 'internal scratch']
  %s0 = inlined_call_operand.vmem [shape: f32[1024,216], index: 0, kind: input, shape index: {}]
  %s1 = inlined_call_operand.vmem [shape: f32[216,8], index: 1, kind: input, shape index: {}]
  %s2 = inlined_call_operand.vmem [shape: f32[1024,8], index: 2, kind: output, shape index: {0}]
  %s3 = inlined_call_operand.vmem [shape: f32[2,2,8], index: 3, kind: output, shape index: {1}]
  %4 = xla_tuple %s2, %s3
  %s5 = sld [smem:[#allocation0]]
  $region49: #{unet_module_forward.8} parent=0
    _
  %s7 = ssub.s32 1, %s5
  %s8 = scalar_select 0, %s7, %s5
  loop: start=0, step=1, limit=4
  $region2: #{unet_module_forward.8} parent=0 // loop_pre_header
    _
  $region3: #{unet_module_forward.8} parent=0 // loop_header
    %s10 = sphi 0, %s14
    %p11 = scmp.ge.s32.totalorder %s10, 4
    %s20 = sphi 0, %s22
    %s23 = sphi 0, %s20
    %s24 = sphi 0, %s23
    %s40 = sphi 0, %s24
    %s44 = sphi 0, %s44
    %s46 = sphi 0, %s44
    %s47 = sphi 0, %s46
    %s61 = sphi 0, %s47
    %s67 = sphi 0, %s69
    %s70 = sphi 0, %s67
    %s71 = sphi 0, %s70
    %s87 = sphi 0, %s71
    %s93 = sphi 0, %s95
    %s96 = sphi 0, %s93
    %s97 = sphi 0, %s96
    %s113 = sphi 0, %s97
  $region4: #{unet_module_forward.8} parent=0 // loop_header_branch
    %13 = sbr.rel (%p11) target = $region8
  $region5: #{unet_module_forward.8} parent=0 // loop_body
    %s15 = ssub.s32 %s10, 1
    %s16 = ssub.s32 %s10, 2
    %s17 = sadd.s32 %s10, 1
    %s18 = ssub.s32 %s10, %s17
    %p19 = scmp.eq.s32.totalorder %s18, 0
    %s21 = sadd.s32 %s20, 1
    %s22 = scalar_select %p19, %s20, %s21
    %p25 = pneg %p19
    %p26 = scmp.eq.s32.totalorder %s10, 1
    %p27 = por %p25, %p26
    %p28 = scmp.ne.s32.totalorder %s20, %s23
    %p29 = scmp.eq.s32.totalorder %s10, 0
    %p30 = por %p28, %p29
    %p31 = scmp.ne.s32.totalorder %s20, %s23
    %p32 = scmp.eq.s32.totalorder %s15, 1
    %p33 = por %p31, %p32
    %p34 = scmp.ne.s32.totalorder %s23, %s24
    %p35 = scmp.eq.s32.totalorder %s15, 0
    %p36 = por %p34, %p35
    %p37 = scmp.ne.s32.totalorder %s23, %s24
    %p38 = scmp.eq.s32.totalorder %s16, 1
    %p39 = por %p37, %p38
    %p41 = scmp.ne.s32.totalorder %s24, %s40
    %p42 = scmp.eq.s32.totalorder %s16, 0
    %p43 = por %p41, %p42
    %s45 = sadd.s32 %s44, 1
    %p48 = scmp.eq.s32.totalorder %s10, 1
    %p49 = scmp.ne.s32.totalorder %s44, %s46
    %p50 = scmp.eq.s32.totalorder %s10, 0
    %p51 = por %p49, %p50
    %p52 = scmp.ne.s32.totalorder %s44, %s46
    %p53 = scmp.eq.s32.totalorder %s15, 1
    %p54 = por %p52, %p53
    %p55 = scmp.ne.s32.totalorder %s46, %s47
    %p56 = scmp.eq.s32.totalorder %s15, 0
    %p57 = por %p55, %p56
    %p58 = scmp.ne.s32.totalorder %s46, %s47
    %p59 = scmp.eq.s32.totalorder %s16, 1
    %p60 = por %p58, %p59
    %p62 = scmp.ne.s32.totalorder %s47, %s61
    %p63 = scmp.eq.s32.totalorder %s16, 0
    %p64 = por %p62, %p63
    %s65 = ssub.s32 %s10, %s17
    %p66 = scmp.eq.s32.totalorder %s65, 0
    %s68 = sadd.s32 %s67, 1
    %s69 = scalar_select %p66, %s67, %s68
    %p72 = pneg %p66
    %p73 = scmp.eq.s32.totalorder %s10, 1
    %p74 = por %p72, %p73
    %p75 = scmp.ne.s32.totalorder %s67, %s70
    %p76 = scmp.eq.s32.totalorder %s10, 0
    %p77 = por %p75, %p76
    %p78 = scmp.ne.s32.totalorder %s67, %s70
    %p79 = scmp.eq.s32.totalorder %s15, 1
    %p80 = por %p78, %p79
    %p81 = scmp.ne.s32.totalorder %s70, %s71
    %p82 = scmp.eq.s32.totalorder %s15, 0
    %p83 = por %p81, %p82
    %p84 = scmp.ne.s32.totalorder %s70, %s71
    %p85 = scmp.eq.s32.totalorder %s16, 1
    %p86 = por %p84, %p85
    %p88 = scmp.ne.s32.totalorder %s71, %s87
    %p89 = scmp.eq.s32.totalorder %s16, 0
    %p90 = por %p88, %p89
    %s91 = ssub.s32 %s10, %s17
    %p92 = scmp.eq.s32.totalorder %s91, 0
    %s94 = sadd.s32 %s93, 1
    %s95 = scalar_select %p92, %s93, %s94
    %p98 = pneg %p92
    %p99 = scmp.eq.s32.totalorder %s10, 1
    %p100 = por %p98, %p99
    %p101 = scmp.ne.s32.totalorder %s93, %s96
    %p102 = scmp.eq.s32.totalorder %s10, 0
    %p103 = por %p101, %p102
    %p104 = scmp.ne.s32.totalorder %s93, %s96
    %p105 = scmp.eq.s32.totalorder %s15, 1
    %p106 = por %p104, %p105
    %p107 = scmp.ne.s32.totalorder %s96, %s97
    %p108 = scmp.eq.s32.totalorder %s15, 0
    %p109 = por %p107, %p108
    %p110 = scmp.ne.s32.totalorder %s96, %s97
    %p111 = scmp.eq.s32.totalorder %s16, 1
    %p112 = por %p110, %p111
    %p114 = scmp.ne.s32.totalorder %s97, %s113
    %p115 = scmp.eq.s32.totalorder %s16, 0
    %p116 = por %p114, %p115
    %p117 = scmp.le.s32.totalorder 1, %s10
    %p118 = scmp.lt.s32.totalorder %s10, 3
    %p119 = pnand %p117, %p118
    %p120 = pneg %p119
    // Predicated region
    $region9: #{unet_module_forward.8} parent=5 // pred_check
      _
    $region10: #{unet_module_forward.8} parent=5 // pred_check_branch
      %122 = sbr.rel (%p119) target = $region12
    $region11: #{unet_module_forward.8} parent=5 // pred_region
      %s123 = ssub.s32 %s10, 1
      // Predicated region
      $region13: #{unet_module_forward.8} parent=11 // pred_check
        %p124 = pneg %p57
      $region14: #{unet_module_forward.8} parent=11 // pred_check_branch
        %126 = sbr.rel (%p124) target = $region16
      $region15: #{unet_module_forward.8} parent=11 // pred_region
        _
      $region16: #{unet_module_forward.8} parent=11 // pred_fallthru
        _
    $region12: #{unet_module_forward.8} parent=5 // pred_fallthru
      _
    %p127 = scmp.lt.s32.totalorder %s10, 2
    // Predicated region
    $region17: #{unet_module_forward.8} parent=5 // pred_check
      %p128 = pneg %p127
    $region18: #{unet_module_forward.8} parent=5 // pred_check_branch
      %130 = sbr.rel (%p128) target = $region20
    $region19: #{unet_module_forward.8} parent=5 // pred_region
      // Predicated region
      $region21: #{unet_module_forward.8} parent=19 // pred_check
        %p131 = pneg %p30
      $region22: #{unet_module_forward.8} parent=19 // pred_check_branch
        %133 = sbr.rel (%p131) target = $region24
      $region23: #{unet_module_forward.8} parent=19 // pred_region
        %s134 = smul.u32 64, %s10
        %p135 = scmp.lt.s32.totalorder %s134, 127
        %s136 = scalar_select %p135, %s134, 127
        %s137 = smul.addr %s136, 2
        %s138 = smul.addr %s137, 8
        %s139 = scalar_lea.vmem %s0, %s138
        %s140 = smul.u32 64, %s10
      $region24: #{unet_module_forward.8} parent=19 // pred_fallthru
        _
    $region20: #{unet_module_forward.8} parent=5 // pred_fallthru
      _
    %p141 = scmp.le.s32.totalorder 1, %s10
    %p142 = scmp.lt.s32.totalorder %s10, 3
    %p143 = pnand %p141, %p142
    %p144 = pneg %p143
    // Predicated region
    $region25: #{unet_module_forward.8} parent=5 // pred_check
      _
    $region26: #{unet_module_forward.8} parent=5 // pred_check_branch
      %146 = sbr.rel (%p143) target = $region28
    $region27: #{unet_module_forward.8} parent=5 // pred_region
      %s147 = ssub.s32 %s10, 1
      %s148 = smul.u32 64, %s15
      %p149 = scmp.lt.s32.totalorder %s148, 127
      %s150 = scalar_select %p149, %s148, 127
      %s151 = smul.addr %s150, 2
      %s152 = smul.addr %s151, 8
      %s153 = scalar_lea.vmem %s0, %s152
      %p154 = pneg %p36
      %p155 = pneg %p33
      %p156 = pneg %p57
      %p157 = pneg %p54
      %p158 = pneg %p83
      %p159 = pneg %p80
      %s160 = smul.u32 64, %s15
      %p161 = scmp.lt.s32.totalorder %s160, 127
      %s162 = scalar_select %p161, %s160, 127
      %s163 = smul.addr %s162, 8
      %s164 = scalar_lea.vmem %s2, %s163
      %p165 = pneg %p109
      %p166 = pneg %p106
      %p167 = scmp.lt.s32.totalorder %s15, 1
      %s168 = scalar_select %p167, %s15, 1
      %s169 = smul.addr %s168, 2
      %s170 = scalar_lea.vmem %s3, %s169
      %s171 = smul.u32 64, %s15
      %p172 = scmp.lt.s32.totalorder %s171, 127
      %s173 = scalar_select %p172, %s171, 127
      %s174 = smul.addr %s173, 2
      %s175 = smul.addr %s174, 8
      %s176 = scalar_lea.vmem %s0, %s175
      %s177 = smul.u32 64, %s15
      %s178 = smul.u32 64, %s15
      %p179 = scmp.lt.s32.totalorder %s178, 127
      %s180 = scalar_select %p179, %s178, 127
      %s181 = smul.addr %s180, 8
      %s182 = scalar_lea.vmem %s2, %s181
      %s183 = smul.u32 64, %s15
      %p184 = scmp.lt.s32.totalorder %s15, 1
      %s185 = scalar_select %p184, %s15, 1
      %s186 = smul.addr %s185, 2
      %s187 = scalar_lea.vmem %s3, %s186
      %v188 = vld [vmem:[%s176] sm:$0xff]
      %v189 = vld [vmem:[%s176 + $0x8] sm:$0xff]
      %v190 = vld [vmem:[%s176 + $0x10] sm:$0xff]
      %v191 = vld [vmem:[%s176 + $0x18] sm:$0xff]
      %v192 = vld [vmem:[%s176 + $0x20] sm:$0xff]
      %v193 = vld [vmem:[%s176 + $0x28] sm:$0xff]
      %v194 = vld [vmem:[%s176 + $0x30] sm:$0xff]
      %v195 = vld [vmem:[%s176 + $0x38] sm:$0xff]
      %v196 = vld [vmem:[%s176 + $0x40] sm:$0xff]
      %v197 = vld [vmem:[%s176 + $0x48] sm:$0xff]
      %v198 = vld [vmem:[%s176 + $0x50] sm:$0xff]
      %v199 = vld [vmem:[%s176 + $0x58] sm:$0xff]
      %v200 = vld [vmem:[%s176 + $0x60] sm:$0xff]
      %v201 = vld [vmem:[%s176 + $0x68] sm:$0xff]
      %v202 = vld [vmem:[%s176 + $0x70] sm:$0xff]
      %v203 = vld [vmem:[%s176 + $0x78] sm:$0xff]
      %v204 = vld [vmem:[%s176 + $0x80] sm:$0xff]
      %v205 = vld [vmem:[%s176 + $0x88] sm:$0xff]
      %v206 = vld [vmem:[%s176 + $0x90] sm:$0xff]
      %v207 = vld [vmem:[%s176 + $0x98] sm:$0xff]
      %v208 = vld [vmem:[%s176 + $0xa0] sm:$0xff]
      %v209 = vld [vmem:[%s176 + $0xa8] sm:$0xff]
      %v210 = vld [vmem:[%s176 + $0xb0] sm:$0xff]
      %v211 = vld [vmem:[%s176 + $0xb8] sm:$0xff]
      %v212 = vld [vmem:[%s176 + $0xc0] sm:$0xff]
      %v213 = vld [vmem:[%s176 + $0xc8] sm:$0xff]
      %v214 = vld [vmem:[%s176 + $0xd0] sm:$0xff]
      %v215 = vld [vmem:[%s176 + $0xd8] sm:$0xff]
      %v216 = vld [vmem:[%s176 + $0xe0] sm:$0xff]
      %v217 = vld [vmem:[%s176 + $0xe8] sm:$0xff]
      %v218 = vld [vmem:[%s176 + $0xf0] sm:$0xff]
      %v219 = vld [vmem:[%s176 + $0xf8] sm:$0xff]
      %v220 = vld [vmem:[%s176 + $0x100] sm:$0xff]
      %v221 = vld [vmem:[%s176 + $0x108] sm:$0xff]
      %v222 = vld [vmem:[%s176 + $0x110] sm:$0xff]
      %v223 = vld [vmem:[%s176 + $0x118] sm:$0xff]
      %v224 = vld [vmem:[%s176 + $0x120] sm:$0xff]
      %v225 = vld [vmem:[%s176 + $0x128] sm:$0xff]
      %v226 = vld [vmem:[%s176 + $0x130] sm:$0xff]
      %v227 = vld [vmem:[%s176 + $0x138] sm:$0xff]
      %v228 = vld [vmem:[%s176 + $0x140] sm:$0xff]
      %v229 = vld [vmem:[%s176 + $0x148] sm:$0xff]
      %v230 = vld [vmem:[%s176 + $0x150] sm:$0xff]
      %v231 = vld [vmem:[%s176 + $0x158] sm:$0xff]
      %v232 = vld [vmem:[%s176 + $0x160] sm:$0xff]
      %v233 = vld [vmem:[%s176 + $0x168] sm:$0xff]
      %v234 = vld [vmem:[%s176 + $0x170] sm:$0xff]
      %v235 = vld [vmem:[%s176 + $0x178] sm:$0xff]
      %v236 = vld [vmem:[%s176 + $0x180] sm:$0xff]
      %v237 = vld [vmem:[%s176 + $0x188] sm:$0xff]
      %v238 = vld [vmem:[%s176 + $0x190] sm:$0xff]
      %v239 = vld [vmem:[%s176 + $0x198] sm:$0xff]
      %v240 = vld [vmem:[%s176 + $0x1a0] sm:$0xff]
      %v241 = vld [vmem:[%s176 + $0x1a8] sm:$0xff]
      %v242 = vld [vmem:[%s176 + $0x1b0] sm:$0xff]
      %v243 = vld [vmem:[%s176 + $0x1b8] sm:$0xff]
      %v244 = vld [vmem:[%s176 + $0x1c0] sm:$0xff]
      %v245 = vld [vmem:[%s176 + $0x1c8] sm:$0xff]
      %v246 = vld [vmem:[%s176 + $0x1d0] sm:$0xff]
      %v247 = vld [vmem:[%s176 + $0x1d8] sm:$0xff]
      %v248 = vld [vmem:[%s176 + $0x1e0] sm:$0xff]
      %v249 = vld [vmem:[%s176 + $0x1e8] sm:$0xff]
      %v250 = vld [vmem:[%s176 + $0x1f0] sm:$0xff]
      %v251 = vld [vmem:[%s176 + $0x1f8] sm:$0xff]
      %v252 = vld [vmem:[%s176 + $0x200] sm:$0xff]
      %v253 = vld [vmem:[%s176 + $0x208] sm:$0xff]
      %v254 = vld [vmem:[%s176 + $0x210] sm:$0xff]
      %v255 = vld [vmem:[%s176 + $0x218] sm:$0xff]
      %v256 = vld [vmem:[%s176 + $0x220] sm:$0xff]
      %v257 = vld [vmem:[%s176 + $0x228] sm:$0xff]
      %v258 = vld [vmem:[%s176 + $0x230] sm:$0xff]
      %v259 = vld [vmem:[%s176 + $0x238] sm:$0xff]
      %v260 = vld [vmem:[%s176 + $0x240] sm:$0xff]
      %v261 = vld [vmem:[%s176 + $0x248] sm:$0xff]
      %v262 = vld [vmem:[%s176 + $0x250] sm:$0xff]
      %v263 = vld [vmem:[%s176 + $0x258] sm:$0xff]
      %v264 = vld [vmem:[%s176 + $0x260] sm:$0xff]
      %v265 = vld [vmem:[%s176 + $0x268] sm:$0xff]
      %v266 = vld [vmem:[%s176 + $0x270] sm:$0xff]
      %v267 = vld [vmem:[%s176 + $0x278] sm:$0xff]
      %v268 = vld [vmem:[%s176 + $0x280] sm:$0xff]
      %v269 = vld [vmem:[%s176 + $0x288] sm:$0xff]
      %v270 = vld [vmem:[%s176 + $0x290] sm:$0xff]
      %v271 = vld [vmem:[%s176 + $0x298] sm:$0xff]
      %v272 = vld [vmem:[%s176 + $0x2a0] sm:$0xff]
      %v273 = vld [vmem:[%s176 + $0x2a8] sm:$0xff]
      %v274 = vld [vmem:[%s176 + $0x2b0] sm:$0xff]
      %v275 = vld [vmem:[%s176 + $0x2b8] sm:$0xff]
      %v276 = vld [vmem:[%s176 + $0x2c0] sm:$0xff]
      %v277 = vld [vmem:[%s176 + $0x2c8] sm:$0xff]
      %v278 = vld [vmem:[%s176 + $0x2d0] sm:$0xff]
      %v279 = vld [vmem:[%s176 + $0x2d8] sm:$0xff]
      %v280 = vld [vmem:[%s176 + $0x2e0] sm:$0xff]
      %v281 = vld [vmem:[%s176 + $0x2e8] sm:$0xff]
      %v282 = vld [vmem:[%s176 + $0x2f0] sm:$0xff]
      %v283 = vld [vmem:[%s176 + $0x2f8] sm:$0xff]
      %v284 = vld [vmem:[%s176 + $0x300] sm:$0xff]
      %v285 = vld [vmem:[%s176 + $0x308] sm:$0xff]
      %v286 = vld [vmem:[%s176 + $0x310] sm:$0xff]
      %v287 = vld [vmem:[%s176 + $0x318] sm:$0xff]
      %v288 = vld [vmem:[%s176 + $0x320] sm:$0xff]
      %v289 = vld [vmem:[%s176 + $0x328] sm:$0xff]
      %v290 = vld [vmem:[%s176 + $0x330] sm:$0xff]
      %v291 = vld [vmem:[%s176 + $0x338] sm:$0xff]
      %v292 = vld [vmem:[%s176 + $0x340] sm:$0xff]
      %v293 = vld [vmem:[%s176 + $0x348] sm:$0xff]
      %v294 = vld [vmem:[%s176 + $0x350] sm:$0xff]
      %v295 = vld [vmem:[%s176 + $0x358] sm:$0xff]
      %v296 = vld [vmem:[%s176 + $0x360] sm:$0xff]
      %v297 = vld [vmem:[%s176 + $0x368] sm:$0xff]
      %v298 = vld [vmem:[%s176 + $0x370] sm:$0xff]
      %v299 = vld [vmem:[%s176 + $0x378] sm:$0xff]
      %v300 = vld [vmem:[%s176 + $0x380] sm:$0xff]
      %v301 = vld [vmem:[%s176 + $0x388] sm:$0xff]
      %v302 = vld [vmem:[%s176 + $0x390] sm:$0xff]
      %v303 = vld [vmem:[%s176 + $0x398] sm:$0xff]
      %v304 = vld [vmem:[%s176 + $0x3a0] sm:$0xff]
      %v305 = vld [vmem:[%s176 + $0x3a8] sm:$0xff]
      %v306 = vld [vmem:[%s176 + $0x3b0] sm:$0xff]
      %v307 = vld [vmem:[%s176 + $0x3b8] sm:$0xff]
      %v308 = vld [vmem:[%s176 + $0x3c0] sm:$0xff]
      %v309 = vld [vmem:[%s176 + $0x3c8] sm:$0xff]
      %v310 = vld [vmem:[%s176 + $0x3d0] sm:$0xff]
      %v311 = vld [vmem:[%s176 + $0x3d8] sm:$0xff]
      %v312 = vld [vmem:[%s176 + $0x3e0] sm:$0xff]
      %v313 = vld [vmem:[%s176 + $0x3e8] sm:$0xff]
      %v314 = vld [vmem:[%s176 + $0x3f0] sm:$0xff]
      %v315 = vld [vmem:[%s176 + $0x3f8] sm:$0xff]
      %v316 = vld [vmem:[%s1] sm:$0xff]
      %v317 = vld [vmem:[%s1 + $0x8] sm:$0xff]
      %v318 = vld [vmem:[%s1 + $0x10] sm:$0xff]
      %v319 = vld [vmem:[%s1 + $0x18] sm:$0xff]
      %v320 = vld [vmem:[%s1 + $0x20] sm:$0xff]
      %v321 = vld [vmem:[%s1 + $0x28] sm:$0xff]
      %v322 = vld [vmem:[%s1 + $0x30] sm:$0xff]
      %v323 = vld [vmem:[%s1 + $0x38] sm:$0xff]
      %v324 = vld [vmem:[%s1 + $0x40] sm:$0xff]
      %v325 = vld [vmem:[%s1 + $0x48] sm:$0xff]
      %v326 = vld [vmem:[%s1 + $0x50] sm:$0xff]
      %v327 = vld [vmem:[%s1 + $0x58] sm:$0xff]
      %v328 = vld [vmem:[%s1 + $0x60] sm:$0xff]
      %v329 = vld [vmem:[%s1 + $0x68] sm:$0xff]
      %v330 = vld [vmem:[%s1 + $0x70] sm:$0xff]
      %v331 = vld [vmem:[%s1 + $0x78] sm:$0xff]
      %v332 = vld [vmem:[%s1 + $0x80] sm:$0xff]
      %v333 = vld [vmem:[%s1 + $0x88] sm:$0xff]
      %v334 = vld [vmem:[%s1 + $0x90] sm:$0xff]
      %v335 = vld [vmem:[%s1 + $0x98] sm:$0xff]
      %v336 = vld [vmem:[%s1 + $0xa0] sm:$0xff]
      %v337 = vld [vmem:[%s1 + $0xa8] sm:$0xff]
      %v338 = vld [vmem:[%s1 + $0xb0] sm:$0xff]
      %v339 = vld [vmem:[%s1 + $0xb8] sm:$0xff]
      %v340 = vld [vmem:[%s1 + $0xc0] sm:$0xff]
      %v341 = vld [vmem:[%s1 + $0xc8] sm:$0xff]
      %v342 = vld [vmem:[%s1 + $0xd0] sm:$0xff]
      %vm343 = vcmask 719872
      %v345 = vsel %vm343, %v189, 0
      %v348 = vsel %vm343, %v191, 0
      %v351 = vsel %vm343, %v193, 0
      %v354 = vsel %vm343, %v195, 0
      %v357 = vsel %vm343, %v197, 0
      %v360 = vsel %vm343, %v199, 0
      %v363 = vsel %vm343, %v201, 0
      %v366 = vsel %vm343, %v203, 0
      %v369 = vsel %vm343, %v205, 0
      %v372 = vsel %vm343, %v207, 0
      %v375 = vsel %vm343, %v209, 0
      %v378 = vsel %vm343, %v211, 0
      %v381 = vsel %vm343, %v213, 0
      %v384 = vsel %vm343, %v215, 0
      %v387 = vsel %vm343, %v217, 0
      %v390 = vsel %vm343, %v219, 0
      %v393 = vsel %vm343, %v221, 0
      %v396 = vsel %vm343, %v223, 0
      %v399 = vsel %vm343, %v225, 0
      %v402 = vsel %vm343, %v227, 0
      %v405 = vsel %vm343, %v229, 0
      %v408 = vsel %vm343, %v231, 0
      %v411 = vsel %vm343, %v233, 0
      %v414 = vsel %vm343, %v235, 0
      %v417 = vsel %vm343, %v237, 0
      %v420 = vsel %vm343, %v239, 0
      %v423 = vsel %vm343, %v241, 0
      %v426 = vsel %vm343, %v243, 0
      %v429 = vsel %vm343, %v245, 0
      %v432 = vsel %vm343, %v247, 0
      %v435 = vsel %vm343, %v249, 0
      %v438 = vsel %vm343, %v251, 0
      %v441 = vsel %vm343, %v253, 0
      %v444 = vsel %vm343, %v255, 0
      %v447 = vsel %vm343, %v257, 0
      %v450 = vsel %vm343, %v259, 0
      %v453 = vsel %vm343, %v261, 0
      %v456 = vsel %vm343, %v263, 0
      %v459 = vsel %vm343, %v265, 0
      %v462 = vsel %vm343, %v267, 0
      %v465 = vsel %vm343, %v269, 0
      %v468 = vsel %vm343, %v271, 0
      %v471 = vsel %vm343, %v273, 0
      %v474 = vsel %vm343, %v275, 0
      %v477 = vsel %vm343, %v277, 0
      %v480 = vsel %vm343, %v279, 0
      %v483 = vsel %vm343, %v281, 0
      %v486 = vsel %vm343, %v283, 0
      %v489 = vsel %vm343, %v285, 0
      %v492 = vsel %vm343, %v287, 0
      %v495 = vsel %vm343, %v289, 0
      %v498 = vsel %vm343, %v291, 0
      %v501 = vsel %vm343, %v293, 0
      %v504 = vsel %vm343, %v295, 0
      %v507 = vsel %vm343, %v297, 0
      %v510 = vsel %vm343, %v299, 0
      %v513 = vsel %vm343, %v301, 0
      %v516 = vsel %vm343, %v303, 0
      %v519 = vsel %vm343, %v305, 0
      %v522 = vsel %vm343, %v307, 0
      %v525 = vsel %vm343, %v309, 0
      %v528 = vsel %vm343, %v311, 0
      %v531 = vsel %vm343, %v313, 0
      %v534 = vsel %vm343, %v315, 0
      %536 = vmatprep.subr.mxu0 0.0
      %537 = vmatpush1.msra.mxu0 %v331
      %538 = vmatprep.subr.mxu0 0.0
      %539 = vmatpush1.msra.mxu0 %v330
      %540 = vmatprep.subr.mxu0 0.0
      %541 = vmatpush1.msra.mxu0 %v329
      %542 = vmatprep.subr.mxu0 0.0
      %543 = vmatpush1.msra.mxu0 %v328
      %544 = vmatprep.subr.mxu0 0.0
      %545 = vmatpush1.msra.mxu0 %v327
      %546 = vmatprep.subr.mxu0 0.0
      %547 = vmatpush1.msra.mxu0 %v326
      %548 = vmatprep.subr.mxu0 0.0
      %549 = vmatpush1.msra.mxu0 %v325
      %550 = vmatprep.subr.mxu0 0.0
      %551 = vmatpush1.msra.mxu0 %v324
      %552 = vmatprep.subr.mxu0 0.0
      %553 = vmatpush1.msra.mxu0 %v323
      %554 = vmatprep.subr.mxu0 0.0
      %555 = vmatpush1.msra.mxu0 %v322
      %556 = vmatprep.subr.mxu0 0.0
      %557 = vmatpush1.msra.mxu0 %v321
      %558 = vmatprep.subr.mxu0 0.0
      %559 = vmatpush1.msra.mxu0 %v320
      %560 = vmatprep.subr.mxu0 0.0
      %561 = vmatpush1.msra.mxu0 %v319
      %562 = vmatprep.subr.mxu0 0.0
      %563 = vmatpush1.msra.mxu0 %v318
      %564 = vmatprep.subr.mxu0 0.0
      %565 = vmatpush1.msra.mxu0 %v317
      %566 = vmatprep.subr.mxu0 0.0
      %567 = vmatpush1.msra.mxu0 %v316
      %568 = vmatprep.subr.mxu0 0.0
      %569 = vmatpush2.msra.mxu0 0.0
      %570 = vmatprep.subr.mxu0 0.0
      %571 = vmatpush2.msra.mxu0 0.0
      %572 = vmatprep.subr.mxu0 0.0
      %573 = vmatpush2.msra.mxu0 0.0
      %574 = vmatprep.subr.mxu0 0.0
      %575 = vmatpush2.msra.mxu0 0.0
      %576 = vmatprep.subr.mxu0 0.0
      %577 = vmatpush2.msra.mxu0 0.0
      %578 = vmatprep.subr.mxu0 0.0
      %579 = vmatpush2.msra.mxu0 %v342
      %580 = vmatprep.subr.mxu0 0.0
      %581 = vmatpush2.msra.mxu0 %v341
      %582 = vmatprep.subr.mxu0 0.0
      %583 = vmatpush2.msra.mxu0 %v340
      %584 = vmatprep.subr.mxu0 0.0
      %585 = vmatpush2.msra.mxu0 %v339
      %586 = vmatprep.subr.mxu0 0.0
      %587 = vmatpush2.msra.mxu0 %v338
      %588 = vmatprep.subr.mxu0 0.0
      %589 = vmatpush2.msra.mxu0 %v337
      %590 = vmatprep.subr.mxu0 0.0
      %591 = vmatpush2.msra.mxu0 %v336
      %592 = vmatprep.subr.mxu0 0.0
      %593 = vmatpush2.msra.mxu0 %v335
      %594 = vmatprep.subr.mxu0 0.0
      %595 = vmatpush2.msra.mxu0 %v334
      %596 = vmatprep.subr.mxu0 0.0
      %597 = vmatpush2.msra.mxu0 %v333
      %598 = vmatprep.subr.mxu0 0.0
      %599 = vmatpush2.msra.mxu0 %v332
      %600 = vmatprep.mubr.f32.mxu0 %v345
      %601 = vmatmul.mubr.f32.gmra.mxu0 %v188
      %v602 = vpop.f32.mrf.mxu0
      %v603 = vadd.f32 0.0, %v602
      %v604 = vpop.f32.mrf.mxu0
      %605 = vmatprep.mubr.f32.mxu0 %v348
      %606 = vmatmul.mubr.f32.gmra.mxu0 %v190
      %v607 = vpop.f32.mrf.mxu0
      %v608 = vadd.f32 0.0, %v607
      %v609 = vpop.f32.mrf.mxu0
      %610 = vmatprep.mubr.f32.mxu0 %v351
      %611 = vmatmul.mubr.f32.gmra.mxu0 %v192
      %v612 = vpop.f32.mrf.mxu0
      %v613 = vadd.f32 0.0, %v612
      %v614 = vpop.f32.mrf.mxu0
      %615 = vmatprep.mubr.f32.mxu0 %v354
      %616 = vmatmul.mubr.f32.gmra.mxu0 %v194
      %v617 = vpop.f32.mrf.mxu0
      %v618 = vadd.f32 0.0, %v617
      %v619 = vpop.f32.mrf.mxu0
      %620 = vmatprep.mubr.f32.mxu0 %v357
      %621 = vmatmul.mubr.f32.gmra.mxu0 %v196
      %v622 = vpop.f32.mrf.mxu0
      %v623 = vadd.f32 0.0, %v622
      %v624 = vpop.f32.mrf.mxu0
      %625 = vmatprep.mubr.f32.mxu0 %v360
      %626 = vmatmul.mubr.f32.gmra.mxu0 %v198
      %v627 = vpop.f32.mrf.mxu0
      %v628 = vadd.f32 0.0, %v627
      %v629 = vpop.f32.mrf.mxu0
      %630 = vmatprep.mubr.f32.mxu0 %v363
      %631 = vmatmul.mubr.f32.gmra.mxu0 %v200
      %v632 = vpop.f32.mrf.mxu0
      %v633 = vadd.f32 0.0, %v632
      %v634 = vpop.f32.mrf.mxu0
      %635 = vmatprep.mubr.f32.mxu0 %v366
      %636 = vmatmul.mubr.f32.gmra.mxu0 %v202
      %v637 = vpop.f32.mrf.mxu0
      %v638 = vadd.f32 0.0, %v637
      %v639 = vpop.f32.mrf.mxu0
      %640 = vmatprep.mubr.f32.mxu0 %v369
      %641 = vmatmul.mubr.f32.gmra.mxu0 %v204
      %v642 = vpop.f32.mrf.mxu0
      %v643 = vadd.f32 0.0, %v642
      %v644 = vpop.f32.mrf.mxu0
      %645 = vmatprep.mubr.f32.mxu0 %v372
      %646 = vmatmul.mubr.f32.gmra.mxu0 %v206
      %v647 = vpop.f32.mrf.mxu0
      %v648 = vadd.f32 0.0, %v647
      %v649 = vpop.f32.mrf.mxu0
      %650 = vmatprep.mubr.f32.mxu0 %v375
      %651 = vmatmul.mubr.f32.gmra.mxu0 %v208
      %v652 = vpop.f32.mrf.mxu0
      %v653 = vadd.f32 0.0, %v652
      %v654 = vpop.f32.mrf.mxu0
      %655 = vmatprep.mubr.f32.mxu0 %v378
      %656 = vmatmul.mubr.f32.gmra.mxu0 %v210
      %v657 = vpop.f32.mrf.mxu0
      %v658 = vadd.f32 0.0, %v657
      %v659 = vpop.f32.mrf.mxu0
      %660 = vmatprep.mubr.f32.mxu0 %v381
      %661 = vmatmul.mubr.f32.gmra.mxu0 %v212
      %v662 = vpop.f32.mrf.mxu0
      %v663 = vadd.f32 0.0, %v662
      %v664 = vpop.f32.mrf.mxu0
      %665 = vmatprep.mubr.f32.mxu0 %v384
      %666 = vmatmul.mubr.f32.gmra.mxu0 %v214
      %v667 = vpop.f32.mrf.mxu0
      %v668 = vadd.f32 0.0, %v667
      %v669 = vpop.f32.mrf.mxu0
      %670 = vmatprep.mubr.f32.mxu0 %v387
      %671 = vmatmul.mubr.f32.gmra.mxu0 %v216
      %v672 = vpop.f32.mrf.mxu0
      %v673 = vadd.f32 0.0, %v672
      %v674 = vpop.f32.mrf.mxu0
      %675 = vmatprep.mubr.f32.mxu0 %v390
      %676 = vmatmul.mubr.f32.gmra.mxu0 %v218
      %v677 = vpop.f32.mrf.mxu0
      %v678 = vadd.f32 0.0, %v677
      %v679 = vpop.f32.mrf.mxu0
      %680 = vmatprep.mubr.f32.mxu0 %v393
      %681 = vmatmul.mubr.f32.gmra.mxu0 %v220
      %v682 = vpop.f32.mrf.mxu0
      %v683 = vadd.f32 0.0, %v682
      %v684 = vpop.f32.mrf.mxu0
      %685 = vmatprep.mubr.f32.mxu0 %v396
      %686 = vmatmul.mubr.f32.gmra.mxu0 %v222
      %v687 = vpop.f32.mrf.mxu0
      %v688 = vadd.f32 0.0, %v687
      %v689 = vpop.f32.mrf.mxu0
      %690 = vmatprep.mubr.f32.mxu0 %v399
      %691 = vmatmul.mubr.f32.gmra.mxu0 %v224
      %v692 = vpop.f32.mrf.mxu0
      %v693 = vadd.f32 0.0, %v692
      %v694 = vpop.f32.mrf.mxu0
      %695 = vmatprep.mubr.f32.mxu0 %v402
      %696 = vmatmul.mubr.f32.gmra.mxu0 %v226
      %v697 = vpop.f32.mrf.mxu0
      %v698 = vadd.f32 0.0, %v697
      %v699 = vpop.f32.mrf.mxu0
      %700 = vmatprep.mubr.f32.mxu0 %v405
      %701 = vmatmul.mubr.f32.gmra.mxu0 %v228
      %v702 = vpop.f32.mrf.mxu0
      %v703 = vadd.f32 0.0, %v702
      %v704 = vpop.f32.mrf.mxu0
      %705 = vmatprep.mubr.f32.mxu0 %v408
      %706 = vmatmul.mubr.f32.gmra.mxu0 %v230
      %v707 = vpop.f32.mrf.mxu0
      %v708 = vadd.f32 0.0, %v707
      %v709 = vpop.f32.mrf.mxu0
      %710 = vmatprep.mubr.f32.mxu0 %v411
      %711 = vmatmul.mubr.f32.gmra.mxu0 %v232
      %v712 = vpop.f32.mrf.mxu0
      %v713 = vadd.f32 0.0, %v712
      %v714 = vpop.f32.mrf.mxu0
      %715 = vmatprep.mubr.f32.mxu0 %v414
      %716 = vmatmul.mubr.f32.gmra.mxu0 %v234
      %v717 = vpop.f32.mrf.mxu0
      %v718 = vadd.f32 0.0, %v717
      %v719 = vpop.f32.mrf.mxu0
      %720 = vmatprep.mubr.f32.mxu0 %v417
      %721 = vmatmul.mubr.f32.gmra.mxu0 %v236
      %v722 = vpop.f32.mrf.mxu0
      %v723 = vadd.f32 0.0, %v722
      %v724 = vpop.f32.mrf.mxu0
      %725 = vmatprep.mubr.f32.mxu0 %v420
      %726 = vmatmul.mubr.f32.gmra.mxu0 %v238
      %v727 = vpop.f32.mrf.mxu0
      %v728 = vadd.f32 0.0, %v727
      %v729 = vpop.f32.mrf.mxu0
      %730 = vmatprep.mubr.f32.mxu0 %v423
      %731 = vmatmul.mubr.f32.gmra.mxu0 %v240
      %v732 = vpop.f32.mrf.mxu0
      %v733 = vadd.f32 0.0, %v732
      %v734 = vpop.f32.mrf.mxu0
      %735 = vmatprep.mubr.f32.mxu0 %v426
      %736 = vmatmul.mubr.f32.gmra.mxu0 %v242
      %v737 = vpop.f32.mrf.mxu0
      %v738 = vadd.f32 0.0, %v737
      %v739 = vpop.f32.mrf.mxu0
      %740 = vmatprep.mubr.f32.mxu0 %v429
      %741 = vmatmul.mubr.f32.gmra.mxu0 %v244
      %v742 = vpop.f32.mrf.mxu0
      %v743 = vadd.f32 0.0, %v742
      %v744 = vpop.f32.mrf.mxu0
      %745 = vmatprep.mubr.f32.mxu0 %v432
      %746 = vmatmul.mubr.f32.gmra.mxu0 %v246
      %v747 = vpop.f32.mrf.mxu0
      %v748 = vadd.f32 0.0, %v747
      %v749 = vpop.f32.mrf.mxu0
      %750 = vmatprep.mubr.f32.mxu0 %v435
      %751 = vmatmul.mubr.f32.gmra.mxu0 %v248
      %v752 = vpop.f32.mrf.mxu0
      %v753 = vadd.f32 0.0, %v752
      %v754 = vpop.f32.mrf.mxu0
      %755 = vmatprep.mubr.f32.mxu0 %v438
      %756 = vmatmul.mubr.f32.gmra.mxu0 %v250
      %v757 = vpop.f32.mrf.mxu0
      %v758 = vadd.f32 0.0, %v757
      %v759 = vpop.f32.mrf.mxu0
      %760 = vmatprep.mubr.f32.mxu0 %v441
      %761 = vmatmul.mubr.f32.gmra.mxu0 %v252
      %v762 = vpop.f32.mrf.mxu0
      %v763 = vadd.f32 0.0, %v762
      %v764 = vpop.f32.mrf.mxu0
      %765 = vmatprep.mubr.f32.mxu0 %v444
      %766 = vmatmul.mubr.f32.gmra.mxu0 %v254
      %v767 = vpop.f32.mrf.mxu0
      %v768 = vadd.f32 0.0, %v767
      %v769 = vpop.f32.mrf.mxu0
      %770 = vmatprep.mubr.f32.mxu0 %v447
      %771 = vmatmul.mubr.f32.gmra.mxu0 %v256
      %v772 = vpop.f32.mrf.mxu0
      %v773 = vadd.f32 0.0, %v772
      %v774 = vpop.f32.mrf.mxu0
      %775 = vmatprep.mubr.f32.mxu0 %v450
      %776 = vmatmul.mubr.f32.gmra.mxu0 %v258
      %v777 = vpop.f32.mrf.mxu0
      %v778 = vadd.f32 0.0, %v777
      %v779 = vpop.f32.mrf.mxu0
      %780 = vmatprep.mubr.f32.mxu0 %v453
      %781 = vmatmul.mubr.f32.gmra.mxu0 %v260
      %v782 = vpop.f32.mrf.mxu0
      %v783 = vadd.f32 0.0, %v782
      %v784 = vpop.f32.mrf.mxu0
      %785 = vmatprep.mubr.f32.mxu0 %v456
      %786 = vmatmul.mubr.f32.gmra.mxu0 %v262
      %v787 = vpop.f32.mrf.mxu0
      %v788 = vadd.f32 0.0, %v787
      %v789 = vpop.f32.mrf.mxu0
      %790 = vmatprep.mubr.f32.mxu0 %v459
      %791 = vmatmul.mubr.f32.gmra.mxu0 %v264
      %v792 = vpop.f32.mrf.mxu0
      %v793 = vadd.f32 0.0, %v792
      %v794 = vpop.f32.mrf.mxu0
      %795 = vmatprep.mubr.f32.mxu0 %v462
      %796 = vmatmul.mubr.f32.gmra.mxu0 %v266
      %v797 = vpop.f32.mrf.mxu0
      %v798 = vadd.f32 0.0, %v797
      %v799 = vpop.f32.mrf.mxu0
      %800 = vmatprep.mubr.f32.mxu0 %v465
      %801 = vmatmul.mubr.f32.gmra.mxu0 %v268
      %v802 = vpop.f32.mrf.mxu0
      %v803 = vadd.f32 0.0, %v802
      %v804 = vpop.f32.mrf.mxu0
      %805 = vmatprep.mubr.f32.mxu0 %v468
      %806 = vmatmul.mubr.f32.gmra.mxu0 %v270
      %v807 = vpop.f32.mrf.mxu0
      %v808 = vadd.f32 0.0, %v807
      %v809 = vpop.f32.mrf.mxu0
      %810 = vmatprep.mubr.f32.mxu0 %v471
      %811 = vmatmul.mubr.f32.gmra.mxu0 %v272
      %v812 = vpop.f32.mrf.mxu0
      %v813 = vadd.f32 0.0, %v812
      %v814 = vpop.f32.mrf.mxu0
      %815 = vmatprep.mubr.f32.mxu0 %v474
      %816 = vmatmul.mubr.f32.gmra.mxu0 %v274
      %v817 = vpop.f32.mrf.mxu0
      %v818 = vadd.f32 0.0, %v817
      %v819 = vpop.f32.mrf.mxu0
      %820 = vmatprep.mubr.f32.mxu0 %v477
      %821 = vmatmul.mubr.f32.gmra.mxu0 %v276
      %v822 = vpop.f32.mrf.mxu0
      %v823 = vadd.f32 0.0, %v822
      %v824 = vpop.f32.mrf.mxu0
      %825 = vmatprep.mubr.f32.mxu0 %v480
      %826 = vmatmul.mubr.f32.gmra.mxu0 %v278
      %v827 = vpop.f32.mrf.mxu0
      %v828 = vadd.f32 0.0, %v827
      %v829 = vpop.f32.mrf.mxu0
      %830 = vmatprep.mubr.f32.mxu0 %v483
      %831 = vmatmul.mubr.f32.gmra.mxu0 %v280
      %v832 = vpop.f32.mrf.mxu0
      %v833 = vadd.f32 0.0, %v832
      %v834 = vpop.f32.mrf.mxu0
      %835 = vmatprep.mubr.f32.mxu0 %v486
      %836 = vmatmul.mubr.f32.gmra.mxu0 %v282
      %v837 = vpop.f32.mrf.mxu0
      %v838 = vadd.f32 0.0, %v837
      %v839 = vpop.f32.mrf.mxu0
      %840 = vmatprep.mubr.f32.mxu0 %v489
      %841 = vmatmul.mubr.f32.gmra.mxu0 %v284
      %v842 = vpop.f32.mrf.mxu0
      %v843 = vadd.f32 0.0, %v842
      %v844 = vpop.f32.mrf.mxu0
      %845 = vmatprep.mubr.f32.mxu0 %v492
      %846 = vmatmul.mubr.f32.gmra.mxu0 %v286
      %v847 = vpop.f32.mrf.mxu0
      %v848 = vadd.f32 0.0, %v847
      %v849 = vpop.f32.mrf.mxu0
      %850 = vmatprep.mubr.f32.mxu0 %v495
      %851 = vmatmul.mubr.f32.gmra.mxu0 %v288
      %v852 = vpop.f32.mrf.mxu0
      %v853 = vadd.f32 0.0, %v852
      %v854 = vpop.f32.mrf.mxu0
      %855 = vmatprep.mubr.f32.mxu0 %v498
      %856 = vmatmul.mubr.f32.gmra.mxu0 %v290
      %v857 = vpop.f32.mrf.mxu0
      %v858 = vadd.f32 0.0, %v857
      %v859 = vpop.f32.mrf.mxu0
      %860 = vmatprep.mubr.f32.mxu0 %v501
      %861 = vmatmul.mubr.f32.gmra.mxu0 %v292
      %v862 = vpop.f32.mrf.mxu0
      %v863 = vadd.f32 0.0, %v862
      %v864 = vpop.f32.mrf.mxu0
      %865 = vmatprep.mubr.f32.mxu0 %v504
      %866 = vmatmul.mubr.f32.gmra.mxu0 %v294
      %v867 = vpop.f32.mrf.mxu0
      %v868 = vadd.f32 0.0, %v867
      %v869 = vpop.f32.mrf.mxu0
      %870 = vmatprep.mubr.f32.mxu0 %v507
      %871 = vmatmul.mubr.f32.gmra.mxu0 %v296
      %v872 = vpop.f32.mrf.mxu0
      %v873 = vadd.f32 0.0, %v872
      %v874 = vpop.f32.mrf.mxu0
      %875 = vmatprep.mubr.f32.mxu0 %v510
      %876 = vmatmul.mubr.f32.gmra.mxu0 %v298
      %v877 = vpop.f32.mrf.mxu0
      %v878 = vadd.f32 0.0, %v877
      %v879 = vpop.f32.mrf.mxu0
      %880 = vmatprep.mubr.f32.mxu0 %v513
      %881 = vmatmul.mubr.f32.gmra.mxu0 %v300
      %v882 = vpop.f32.mrf.mxu0
      %v883 = vadd.f32 0.0, %v882
      %v884 = vpop.f32.mrf.mxu0
      %885 = vmatprep.mubr.f32.mxu0 %v516
      %886 = vmatmul.mubr.f32.gmra.mxu0 %v302
      %v887 = vpop.f32.mrf.mxu0
      %v888 = vadd.f32 0.0, %v887
      %v889 = vpop.f32.mrf.mxu0
      %890 = vmatprep.mubr.f32.mxu0 %v519
      %891 = vmatmul.mubr.f32.gmra.mxu0 %v304
      %v892 = vpop.f32.mrf.mxu0
      %v893 = vadd.f32 0.0, %v892
      %v894 = vpop.f32.mrf.mxu0
      %895 = vmatprep.mubr.f32.mxu0 %v522
      %896 = vmatmul.mubr.f32.gmra.mxu0 %v306
      %v897 = vpop.f32.mrf.mxu0
      %v898 = vadd.f32 0.0, %v897
      %v899 = vpop.f32.mrf.mxu0
      %900 = vmatprep.mubr.f32.mxu0 %v525
      %901 = vmatmul.mubr.f32.gmra.mxu0 %v308
      %v902 = vpop.f32.mrf.mxu0
      %v903 = vadd.f32 0.0, %v902
      %v904 = vpop.f32.mrf.mxu0
      %905 = vmatprep.mubr.f32.mxu0 %v528
      %906 = vmatmul.mubr.f32.gmra.mxu0 %v310
      %v907 = vpop.f32.mrf.mxu0
      %v908 = vadd.f32 0.0, %v907
      %v909 = vpop.f32.mrf.mxu0
      %910 = vmatprep.mubr.f32.mxu0 %v531
      %911 = vmatmul.mubr.f32.gmra.mxu0 %v312
      %v912 = vpop.f32.mrf.mxu0
      %v913 = vadd.f32 0.0, %v912
      %v914 = vpop.f32.mrf.mxu0
      %915 = vmatprep.mubr.f32.mxu0 %v534
      %916 = vmatmul.mubr.f32.gmra.mxu0 %v314
      %v917 = vpop.f32.mrf.mxu0
      %v918 = vadd.f32 0.0, %v917
      %v919 = vpop.f32.mrf.mxu0
      %920 = vdwg.mxu0
      %vm921 = vcmask 64512
      %922 = vst.msk [vmem:[%s182] sm:$0xff] %vm921, %v603
      %923 = vst.msk [vmem:[%s182 + $0x8] sm:$0xff] %vm921, %v608
      %924 = vst.msk [vmem:[%s182 + $0x10] sm:$0xff] %vm921, %v613
      %925 = vst.msk [vmem:[%s182 + $0x18] sm:$0xff] %vm921, %v618
      %926 = vst.msk [vmem:[%s182 + $0x20] sm:$0xff] %vm921, %v623
      %927 = vst.msk [vmem:[%s182 + $0x28] sm:$0xff] %vm921, %v628
      %928 = vst.msk [vmem:[%s182 + $0x30] sm:$0xff] %vm921, %v633
      %929 = vst.msk [vmem:[%s182 + $0x38] sm:$0xff] %vm921, %v638
      %930 = vst.msk [vmem:[%s182 + $0x40] sm:$0xff] %vm921, %v643
      %931 = vst.msk [vmem:[%s182 + $0x48] sm:$0xff] %vm921, %v648
      %932 = vst.msk [vmem:[%s182 + $0x50] sm:$0xff] %vm921, %v653
      %933 = vst.msk [vmem:[%s182 + $0x58] sm:$0xff] %vm921, %v658
      %934 = vst.msk [vmem:[%s182 + $0x60] sm:$0xff] %vm921, %v663
      %935 = vst.msk [vmem:[%s182 + $0x68] sm:$0xff] %vm921, %v668
      %936 = vst.msk [vmem:[%s182 + $0x70] sm:$0xff] %vm921, %v673
      %937 = vst.msk [vmem:[%s182 + $0x78] sm:$0xff] %vm921, %v678
      %938 = vst.msk [vmem:[%s182 + $0x80] sm:$0xff] %vm921, %v683
      %939 = vst.msk [vmem:[%s182 + $0x88] sm:$0xff] %vm921, %v688
      %940 = vst.msk [vmem:[%s182 + $0x90] sm:$0xff] %vm921, %v693
      %941 = vst.msk [vmem:[%s182 + $0x98] sm:$0xff] %vm921, %v698
      %942 = vst.msk [vmem:[%s182 + $0xa0] sm:$0xff] %vm921, %v703
      %943 = vst.msk [vmem:[%s182 + $0xa8] sm:$0xff] %vm921, %v708
      %944 = vst.msk [vmem:[%s182 + $0xb0] sm:$0xff] %vm921, %v713
      %945 = vst.msk [vmem:[%s182 + $0xb8] sm:$0xff] %vm921, %v718
      %946 = vst.msk [vmem:[%s182 + $0xc0] sm:$0xff] %vm921, %v723
      %947 = vst.msk [vmem:[%s182 + $0xc8] sm:$0xff] %vm921, %v728
      %948 = vst.msk [vmem:[%s182 + $0xd0] sm:$0xff] %vm921, %v733
      %949 = vst.msk [vmem:[%s182 + $0xd8] sm:$0xff] %vm921, %v738
      %950 = vst.msk [vmem:[%s182 + $0xe0] sm:$0xff] %vm921, %v743
      %951 = vst.msk [vmem:[%s182 + $0xe8] sm:$0xff] %vm921, %v748
      %952 = vst.msk [vmem:[%s182 + $0xf0] sm:$0xff] %vm921, %v753
      %953 = vst.msk [vmem:[%s182 + $0xf8] sm:$0xff] %vm921, %v758
      %954 = vst.msk [vmem:[%s182 + $0x100] sm:$0xff] %vm921, %v763
      %955 = vst.msk [vmem:[%s182 + $0x108] sm:$0xff] %vm921, %v768
      %956 = vst.msk [vmem:[%s182 + $0x110] sm:$0xff] %vm921, %v773
      %957 = vst.msk [vmem:[%s182 + $0x118] sm:$0xff] %vm921, %v778
      %958 = vst.msk [vmem:[%s182 + $0x120] sm:$0xff] %vm921, %v783
      %959 = vst.msk [vmem:[%s182 + $0x128] sm:$0xff] %vm921, %v788
      %960 = vst.msk [vmem:[%s182 + $0x130] sm:$0xff] %vm921, %v793
      %961 = vst.msk [vmem:[%s182 + $0x138] sm:$0xff] %vm921, %v798
      %962 = vst.msk [vmem:[%s182 + $0x140] sm:$0xff] %vm921, %v803
      %963 = vst.msk [vmem:[%s182 + $0x148] sm:$0xff] %vm921, %v808
      %964 = vst.msk [vmem:[%s182 + $0x150] sm:$0xff] %vm921, %v813
      %965 = vst.msk [vmem:[%s182 + $0x158] sm:$0xff] %vm921, %v818
      %966 = vst.msk [vmem:[%s182 + $0x160] sm:$0xff] %vm921, %v823
      %967 = vst.msk [vmem:[%s182 + $0x168] sm:$0xff] %vm921, %v828
      %968 = vst.msk [vmem:[%s182 + $0x170] sm:$0xff] %vm921, %v833
      %969 = vst.msk [vmem:[%s182 + $0x178] sm:$0xff] %vm921, %v838
      %970 = vst.msk [vmem:[%s182 + $0x180] sm:$0xff] %vm921, %v843
      %971 = vst.msk [vmem:[%s182 + $0x188] sm:$0xff] %vm921, %v848
      %972 = vst.msk [vmem:[%s182 + $0x190] sm:$0xff] %vm921, %v853
      %973 = vst.msk [vmem:[%s182 + $0x198] sm:$0xff] %vm921, %v858
      %974 = vst.msk [vmem:[%s182 + $0x1a0] sm:$0xff] %vm921, %v863
      %975 = vst.msk [vmem:[%s182 + $0x1a8] sm:$0xff] %vm921, %v868
      %976 = vst.msk [vmem:[%s182 + $0x1b0] sm:$0xff] %vm921, %v873
      %977 = vst.msk [vmem:[%s182 + $0x1b8] sm:$0xff] %vm921, %v878
      %978 = vst.msk [vmem:[%s182 + $0x1c0] sm:$0xff] %vm921, %v883
      %979 = vst.msk [vmem:[%s182 + $0x1c8] sm:$0xff] %vm921, %v888
      %980 = vst.msk [vmem:[%s182 + $0x1d0] sm:$0xff] %vm921, %v893
      %981 = vst.msk [vmem:[%s182 + $0x1d8] sm:$0xff] %vm921, %v898
      %982 = vst.msk [vmem:[%s182 + $0x1e0] sm:$0xff] %vm921, %v903
      %983 = vst.msk [vmem:[%s182 + $0x1e8] sm:$0xff] %vm921, %v908
      %984 = vst.msk [vmem:[%s182 + $0x1f0] sm:$0xff] %vm921, %v913
      %985 = vst.msk [vmem:[%s182 + $0x1f8] sm:$0xff] %vm921, %v918
      %v986 = vsel %vm921, %v603, 0.0
      %v987 = vsel %vm921, %v608, 0.0
      %v988 = vadd.f32 %v986, %v987
      %v989 = vsel %vm921, %v613, 0.0
      %v990 = vadd.f32 %v988, %v989
      %v991 = vsel %vm921, %v618, 0.0
      %v992 = vadd.f32 %v990, %v991
      %v993 = vsel %vm921, %v623, 0.0
      %v994 = vadd.f32 %v992, %v993
      %v995 = vsel %vm921, %v628, 0.0
      %v996 = vadd.f32 %v994, %v995
      %v997 = vsel %vm921, %v633, 0.0
      %v998 = vadd.f32 %v996, %v997
      %v999 = vsel %vm921, %v638, 0.0
      %v1000 = vadd.f32 %v998, %v999
      %v1001 = vsel %vm921, %v643, 0.0
      %v1002 = vadd.f32 %v1000, %v1001
      %v1003 = vsel %vm921, %v648, 0.0
      %v1004 = vadd.f32 %v1002, %v1003
      %v1005 = vsel %vm921, %v653, 0.0
      %v1006 = vadd.f32 %v1004, %v1005
      %v1007 = vsel %vm921, %v658, 0.0
      %v1008 = vadd.f32 %v1006, %v1007
      %v1009 = vsel %vm921, %v663, 0.0
      %v1010 = vadd.f32 %v1008, %v1009
      %v1011 = vsel %vm921, %v668, 0.0
      %v1012 = vadd.f32 %v1010, %v1011
      %v1013 = vsel %vm921, %v673, 0.0
      %v1014 = vadd.f32 %v1012, %v1013
      %v1015 = vsel %vm921, %v678, 0.0
      %v1016 = vadd.f32 %v1014, %v1015
      %v1017 = vsel %vm921, %v683, 0.0
      %v1018 = vadd.f32 %v1016, %v1017
      %v1019 = vsel %vm921, %v688, 0.0
      %v1020 = vadd.f32 %v1018, %v1019
      %v1021 = vsel %vm921, %v693, 0.0
      %v1022 = vadd.f32 %v1020, %v1021
      %v1023 = vsel %vm921, %v698, 0.0
      %v1024 = vadd.f32 %v1022, %v1023
      %v1025 = vsel %vm921, %v703, 0.0
      %v1026 = vadd.f32 %v1024, %v1025
      %v1027 = vsel %vm921, %v708, 0.0
      %v1028 = vadd.f32 %v1026, %v1027
      %v1029 = vsel %vm921, %v713, 0.0
      %v1030 = vadd.f32 %v1028, %v1029
      %v1031 = vsel %vm921, %v718, 0.0
      %v1032 = vadd.f32 %v1030, %v1031
      %v1033 = vsel %vm921, %v723, 0.0
      %v1034 = vadd.f32 %v1032, %v1033
      %v1035 = vsel %vm921, %v728, 0.0
      %v1036 = vadd.f32 %v1034, %v1035
      %v1037 = vsel %vm921, %v733, 0.0
      %v1038 = vadd.f32 %v1036, %v1037
      %v1039 = vsel %vm921, %v738, 0.0
      %v1040 = vadd.f32 %v1038, %v1039
      %v1041 = vsel %vm921, %v743, 0.0
      %v1042 = vadd.f32 %v1040, %v1041
      %v1043 = vsel %vm921, %v748, 0.0
      %v1044 = vadd.f32 %v1042, %v1043
      %v1045 = vsel %vm921, %v753, 0.0
      %v1046 = vadd.f32 %v1044, %v1045
      %v1047 = vsel %vm921, %v758, 0.0
      %v1048 = vadd.f32 %v1046, %v1047
      %v1049 = vsel %vm921, %v763, 0.0
      %v1050 = vadd.f32 %v1048, %v1049
      %v1051 = vsel %vm921, %v768, 0.0
      %v1052 = vadd.f32 %v1050, %v1051
      %v1053 = vsel %vm921, %v773, 0.0
      %v1054 = vadd.f32 %v1052, %v1053
      %v1055 = vsel %vm921, %v778, 0.0
      %v1056 = vadd.f32 %v1054, %v1055
      %v1057 = vsel %vm921, %v783, 0.0
      %v1058 = vadd.f32 %v1056, %v1057
      %v1059 = vsel %vm921, %v788, 0.0
      %v1060 = vadd.f32 %v1058, %v1059
      %v1061 = vsel %vm921, %v793, 0.0
      %v1062 = vadd.f32 %v1060, %v1061
      %v1063 = vsel %vm921, %v798, 0.0
      %v1064 = vadd.f32 %v1062, %v1063
      %v1065 = vsel %vm921, %v803, 0.0
      %v1066 = vadd.f32 %v1064, %v1065
      %v1067 = vsel %vm921, %v808, 0.0
      %v1068 = vadd.f32 %v1066, %v1067
      %v1069 = vsel %vm921, %v813, 0.0
      %v1070 = vadd.f32 %v1068, %v1069
      %v1071 = vsel %vm921, %v818, 0.0
      %v1072 = vadd.f32 %v1070, %v1071
      %v1073 = vsel %vm921, %v823, 0.0
      %v1074 = vadd.f32 %v1072, %v1073
      %v1075 = vsel %vm921, %v828, 0.0
      %v1076 = vadd.f32 %v1074, %v1075
      %v1077 = vsel %vm921, %v833, 0.0
      %v1078 = vadd.f32 %v1076, %v1077
      %v1079 = vsel %vm921, %v838, 0.0
      %v1080 = vadd.f32 %v1078, %v1079
      %v1081 = vsel %vm921, %v843, 0.0
      %v1082 = vadd.f32 %v1080, %v1081
      %v1083 = vsel %vm921, %v848, 0.0
      %v1084 = vadd.f32 %v1082, %v1083
      %v1085 = vsel %vm921, %v853, 0.0
      %v1086 = vadd.f32 %v1084, %v1085
      %v1087 = vsel %vm921, %v858, 0.0
      %v1088 = vadd.f32 %v1086, %v1087
      %v1089 = vsel %vm921, %v863, 0.0
      %v1090 = vadd.f32 %v1088, %v1089
      %v1091 = vsel %vm921, %v868, 0.0
      %v1092 = vadd.f32 %v1090, %v1091
      %v1093 = vsel %vm921, %v873, 0.0
      %v1094 = vadd.f32 %v1092, %v1093
      %v1095 = vsel %vm921, %v878, 0.0
      %v1096 = vadd.f32 %v1094, %v1095
      %v1097 = vsel %vm921, %v883, 0.0
      %v1098 = vadd.f32 %v1096, %v1097
      %v1099 = vsel %vm921, %v888, 0.0
      %v1100 = vadd.f32 %v1098, %v1099
      %v1101 = vsel %vm921, %v893, 0.0
      %v1102 = vadd.f32 %v1100, %v1101
      %v1103 = vsel %vm921, %v898, 0.0
      %v1104 = vadd.f32 %v1102, %v1103
      %v1105 = vsel %vm921, %v903, 0.0
      %v1106 = vadd.f32 %v1104, %v1105
      %v1107 = vsel %vm921, %v908, 0.0
      %v1108 = vadd.f32 %v1106, %v1107
      %v1109 = vsel %vm921, %v913, 0.0
      %v1110 = vadd.f32 %v1108, %v1109
      %v1111 = vsel %vm921, %v918, 0.0
      %v1112 = vadd.f32 %v1110, %v1111
      %v1113 = vrot.slane %v1112, 4
      %v1114 = vadd.f32 %v1112, %v1113
      %v1115 = vrot.slane %v1114, 2
      %v1116 = vadd.f32 %v1114, %v1115
      %v1117 = vrot.slane %v1116, 1
      %v1118 = vadd.f32 %v1116, %v1117
      %v1119 = vmul.f32 %v603, %v603
      %v1120 = vmul.f32 %v608, %v608
      %v1121 = vmul.f32 %v613, %v613
      %v1122 = vmul.f32 %v618, %v618
      %v1123 = vmul.f32 %v623, %v623
      %v1124 = vmul.f32 %v628, %v628
      %v1125 = vmul.f32 %v633, %v633
      %v1126 = vmul.f32 %v638, %v638
      %v1127 = vmul.f32 %v643, %v643
      %v1128 = vmul.f32 %v648, %v648
      %v1129 = vmul.f32 %v653, %v653
      %v1130 = vmul.f32 %v658, %v658
      %v1131 = vmul.f32 %v663, %v663
      %v1132 = vmul.f32 %v668, %v668
      %v1133 = vmul.f32 %v673, %v673
      %v1134 = vmul.f32 %v678, %v678
      %v1135 = vmul.f32 %v683, %v683
      %v1136 = vmul.f32 %v688, %v688
      %v1137 = vmul.f32 %v693, %v693
      %v1138 = vmul.f32 %v698, %v698
      %v1139 = vmul.f32 %v703, %v703
      %v1140 = vmul.f32 %v708, %v708
      %v1141 = vmul.f32 %v713, %v713
      %v1142 = vmul.f32 %v718, %v718
      %v1143 = vmul.f32 %v723, %v723
      %v1144 = vmul.f32 %v728, %v728
      %v1145 = vmul.f32 %v733, %v733
      %v1146 = vmul.f32 %v738, %v738
      %v1147 = vmul.f32 %v743, %v743
      %v1148 = vmul.f32 %v748, %v748
      %v1149 = vmul.f32 %v753, %v753
      %v1150 = vmul.f32 %v758, %v758
      %v1151 = vmul.f32 %v763, %v763
      %v1152 = vmul.f32 %v768, %v768
      %v1153 = vmul.f32 %v773, %v773
      %v1154 = vmul.f32 %v778, %v778
      %v1155 = vmul.f32 %v783, %v783
      %v1156 = vmul.f32 %v788, %v788
      %v1157 = vmul.f32 %v793, %v793
      %v1158 = vmul.f32 %v798, %v798
      %v1159 = vmul.f32 %v803, %v803
      %v1160 = vmul.f32 %v808, %v808
      %v1161 = vmul.f32 %v813, %v813
      %v1162 = vmul.f32 %v818, %v818
      %v1163 = vmul.f32 %v823, %v823
      %v1164 = vmul.f32 %v828, %v828
      %v1165 = vmul.f32 %v833, %v833
      %v1166 = vmul.f32 %v838, %v838
      %v1167 = vmul.f32 %v843, %v843
      %v1168 = vmul.f32 %v848, %v848
      %v1169 = vmul.f32 %v853, %v853
      %v1170 = vmul.f32 %v858, %v858
      %v1171 = vmul.f32 %v863, %v863
      %v1172 = vmul.f32 %v868, %v868
      %v1173 = vmul.f32 %v873, %v873
      %v1174 = vmul.f32 %v878, %v878
      %v1175 = vmul.f32 %v883, %v883
      %v1176 = vmul.f32 %v888, %v888
      %v1177 = vmul.f32 %v893, %v893
      %v1178 = vmul.f32 %v898, %v898
      %v1179 = vmul.f32 %v903, %v903
      %v1180 = vmul.f32 %v908, %v908
      %v1181 = vmul.f32 %v913, %v913
      %v1182 = vmul.f32 %v918, %v918
      %v1183 = vsel %vm921, %v1119, 0.0
      %v1184 = vsel %vm921, %v1120, 0.0
      %v1185 = vadd.f32 %v1183, %v1184
      %v1186 = vsel %vm921, %v1121, 0.0
      %v1187 = vadd.f32 %v1185, %v1186
      %v1188 = vsel %vm921, %v1122, 0.0
      %v1189 = vadd.f32 %v1187, %v1188
      %v1190 = vsel %vm921, %v1123, 0.0
      %v1191 = vadd.f32 %v1189, %v1190
      %v1192 = vsel %vm921, %v1124, 0.0
      %v1193 = vadd.f32 %v1191, %v1192
      %v1194 = vsel %vm921, %v1125, 0.0
      %v1195 = vadd.f32 %v1193, %v1194
      %v1196 = vsel %vm921, %v1126, 0.0
      %v1197 = vadd.f32 %v1195, %v1196
      %v1198 = vsel %vm921, %v1127, 0.0
      %v1199 = vadd.f32 %v1197, %v1198
      %v1200 = vsel %vm921, %v1128, 0.0
      %v1201 = vadd.f32 %v1199, %v1200
      %v1202 = vsel %vm921, %v1129, 0.0
      %v1203 = vadd.f32 %v1201, %v1202
      %v1204 = vsel %vm921, %v1130, 0.0
      %v1205 = vadd.f32 %v1203, %v1204
      %v1206 = vsel %vm921, %v1131, 0.0
      %v1207 = vadd.f32 %v1205, %v1206
      %v1208 = vsel %vm921, %v1132, 0.0
      %v1209 = vadd.f32 %v1207, %v1208
      %v1210 = vsel %vm921, %v1133, 0.0
      %v1211 = vadd.f32 %v1209, %v1210
      %v1212 = vsel %vm921, %v1134, 0.0
      %v1213 = vadd.f32 %v1211, %v1212
      %v1214 = vsel %vm921, %v1135, 0.0
      %v1215 = vadd.f32 %v1213, %v1214
      %v1216 = vsel %vm921, %v1136, 0.0
      %v1217 = vadd.f32 %v1215, %v1216
      %v1218 = vsel %vm921, %v1137, 0.0
      %v1219 = vadd.f32 %v1217, %v1218
      %v1220 = vsel %vm921, %v1138, 0.0
      %v1221 = vadd.f32 %v1219, %v1220
      %v1222 = vsel %vm921, %v1139, 0.0
      %v1223 = vadd.f32 %v1221, %v1222
      %v1224 = vsel %vm921, %v1140, 0.0
      %v1225 = vadd.f32 %v1223, %v1224
      %v1226 = vsel %vm921, %v1141, 0.0
      %v1227 = vadd.f32 %v1225, %v1226
      %v1228 = vsel %vm921, %v1142, 0.0
      %v1229 = vadd.f32 %v1227, %v1228
      %v1230 = vsel %vm921, %v1143, 0.0
      %v1231 = vadd.f32 %v1229, %v1230
      %v1232 = vsel %vm921, %v1144, 0.0
      %v1233 = vadd.f32 %v1231, %v1232
      %v1234 = vsel %vm921, %v1145, 0.0
      %v1235 = vadd.f32 %v1233, %v1234
      %v1236 = vsel %vm921, %v1146, 0.0
      %v1237 = vadd.f32 %v1235, %v1236
      %v1238 = vsel %vm921, %v1147, 0.0
      %v1239 = vadd.f32 %v1237, %v1238
      %v1240 = vsel %vm921, %v1148, 0.0
      %v1241 = vadd.f32 %v1239, %v1240
      %v1242 = vsel %vm921, %v1149, 0.0
      %v1243 = vadd.f32 %v1241, %v1242
      %v1244 = vsel %vm921, %v1150, 0.0
      %v1245 = vadd.f32 %v1243, %v1244
      %v1246 = vsel %vm921, %v1151, 0.0
      %v1247 = vadd.f32 %v1245, %v1246
      %v1248 = vsel %vm921, %v1152, 0.0
      %v1249 = vadd.f32 %v1247, %v1248
      %v1250 = vsel %vm921, %v1153, 0.0
      %v1251 = vadd.f32 %v1249, %v1250
      %v1252 = vsel %vm921, %v1154, 0.0
      %v1253 = vadd.f32 %v1251, %v1252
      %v1254 = vsel %vm921, %v1155, 0.0
      %v1255 = vadd.f32 %v1253, %v1254
      %v1256 = vsel %vm921, %v1156, 0.0
      %v1257 = vadd.f32 %v1255, %v1256
      %v1258 = vsel %vm921, %v1157, 0.0
      %v1259 = vadd.f32 %v1257, %v1258
      %v1260 = vsel %vm921, %v1158, 0.0
      %v1261 = vadd.f32 %v1259, %v1260
      %v1262 = vsel %vm921, %v1159, 0.0
      %v1263 = vadd.f32 %v1261, %v1262
      %v1264 = vsel %vm921, %v1160, 0.0
      %v1265 = vadd.f32 %v1263, %v1264
      %v1266 = vsel %vm921, %v1161, 0.0
      %v1267 = vadd.f32 %v1265, %v1266
      %v1268 = vsel %vm921, %v1162, 0.0
      %v1269 = vadd.f32 %v1267, %v1268
      %v1270 = vsel %vm921, %v1163, 0.0
      %v1271 = vadd.f32 %v1269, %v1270
      %v1272 = vsel %vm921, %v1164, 0.0
      %v1273 = vadd.f32 %v1271, %v1272
      %v1274 = vsel %vm921, %v1165, 0.0
      %v1275 = vadd.f32 %v1273, %v1274
      %v1276 = vsel %vm921, %v1166, 0.0
      %v1277 = vadd.f32 %v1275, %v1276
      %v1278 = vsel %vm921, %v1167, 0.0
      %v1279 = vadd.f32 %v1277, %v1278
      %v1280 = vsel %vm921, %v1168, 0.0
      %v1281 = vadd.f32 %v1279, %v1280
      %v1282 = vsel %vm921, %v1169, 0.0
      %v1283 = vadd.f32 %v1281, %v1282
      %v1284 = vsel %vm921, %v1170, 0.0
      %v1285 = vadd.f32 %v1283, %v1284
      %v1286 = vsel %vm921, %v1171, 0.0
      %v1287 = vadd.f32 %v1285, %v1286
      %v1288 = vsel %vm921, %v1172, 0.0
      %v1289 = vadd.f32 %v1287, %v1288
      %v1290 = vsel %vm921, %v1173, 0.0
      %v1291 = vadd.f32 %v1289, %v1290
      %v1292 = vsel %vm921, %v1174, 0.0
      %v1293 = vadd.f32 %v1291, %v1292
      %v1294 = vsel %vm921, %v1175, 0.0
      %v1295 = vadd.f32 %v1293, %v1294
      %v1296 = vsel %vm921, %v1176, 0.0
      %v1297 = vadd.f32 %v1295, %v1296
      %v1298 = vsel %vm921, %v1177, 0.0
      %v1299 = vadd.f32 %v1297, %v1298
      %v1300 = vsel %vm921, %v1178, 0.0
      %v1301 = vadd.f32 %v1299, %v1300
      %v1302 = vsel %vm921, %v1179, 0.0
      %v1303 = vadd.f32 %v1301, %v1302
      %v1304 = vsel %vm921, %v1180, 0.0
      %v1305 = vadd.f32 %v1303, %v1304
      %v1306 = vsel %vm921, %v1181, 0.0
      %v1307 = vadd.f32 %v1305, %v1306
      %v1308 = vsel %vm921, %v1182, 0.0
      %v1309 = vadd.f32 %v1307, %v1308
      %v1310 = vrot.slane %v1309, 4
      %v1311 = vadd.f32 %v1309, %v1310
      %v1312 = vrot.slane %v1311, 2
      %v1313 = vadd.f32 %v1311, %v1312
      %v1314 = vrot.slane %v1313, 1
      %v1315 = vadd.f32 %v1313, %v1314
      %vm1316 = vcmask 1040384
      %v1317 = vsel %vm1316, %v1118, %v1315
      %vm1318 = vcmask 58368
      %1319 = vst.msk [vmem:[%s187] sm:$0x3] %vm1318, %v1317
      %s1320 = smul.u32 64, %s15
      %p1321 = scmp.lt.s32.totalorder %s1320, 127
      %s1322 = scalar_select %p1321, %s1320, 127
      %s1323 = smul.addr %s1322, 8
      %s1324 = scalar_lea.vmem %s2, %s1323
      %p1325 = scmp.lt.s32.totalorder %s15, 1
      %s1326 = scalar_select %p1325, %s15, 1
      %s1327 = smul.addr %s1326, 2
      %s1328 = scalar_lea.vmem %s3, %s1327
      // Predicated region
      $region29: #{unet_module_forward.8} parent=27 // pred_check
        %p1329 = pneg %p80
      $region30: #{unet_module_forward.8} parent=27 // pred_check_branch
        %1331 = sbr.rel (%p1329) target = $region32
      $region31: #{unet_module_forward.8} parent=27 // pred_region
        %s1332 = smul.u32 64, %s15
      $region32: #{unet_module_forward.8} parent=27 // pred_fallthru
        _
      // Predicated region
      $region33: #{unet_module_forward.8} parent=27 // pred_check
        %p1333 = pneg %p106
      $region34: #{unet_module_forward.8} parent=27 // pred_check_branch
        %1335 = sbr.rel (%p1333) target = $region36
      $region35: #{unet_module_forward.8} parent=27 // pred_region
        _
      $region36: #{unet_module_forward.8} parent=27 // pred_fallthru
        _
    $region28: #{unet_module_forward.8} parent=5 // pred_fallthru
      _
    %p1336 = scmp.le.s32.totalorder 2, %s10
    // Predicated region
    $region37: #{unet_module_forward.8} parent=5 // pred_check
      %p1337 = pneg %p1336
    $region38: #{unet_module_forward.8} parent=5 // pred_check_branch
      %1339 = sbr.rel (%p1337) target = $region40
    $region39: #{unet_module_forward.8} parent=5 // pred_region
      %s1340 = ssub.s32 %s10, 2
      // Predicated region
      $region41: #{unet_module_forward.8} parent=39 // pred_check
        %p1341 = pneg %p86
      $region42: #{unet_module_forward.8} parent=39 // pred_check_branch
        %1343 = sbr.rel (%p1341) target = $region44
      $region43: #{unet_module_forward.8} parent=39 // pred_region
        %s1344 = smul.u32 64, %s16
        %p1345 = scmp.lt.s32.totalorder %s1344, 127
        %s1346 = scalar_select %p1345, %s1344, 127
        %s1347 = smul.addr %s1346, 8
        %s1348 = scalar_lea.vmem %s2, %s1347
      $region44: #{unet_module_forward.8} parent=39 // pred_fallthru
        _
      // Predicated region
      $region45: #{unet_module_forward.8} parent=39 // pred_check
        %p1349 = pneg %p112
      $region46: #{unet_module_forward.8} parent=39 // pred_check_branch
        %1351 = sbr.rel (%p1349) target = $region48
      $region47: #{unet_module_forward.8} parent=39 // pred_region
        %p1352 = scmp.lt.s32.totalorder %s16, 1
        %s1353 = scalar_select %p1352, %s16, 1
        %s1354 = smul.addr %s1353, 2
        %s1355 = scalar_lea.vmem %s3, %s1354
      $region48: #{unet_module_forward.8} parent=39 // pred_fallthru
        _
    $region40: #{unet_module_forward.8} parent=5 // pred_fallthru
      _
  $region6: #{unet_module_forward.8} parent=0 // loop_footer
    %s14 = sadd.s32 1, %s10
  $region7: #{unet_module_forward.8} parent=0 // loop_footer_branch
    %9 = sbr.rel target = $region3
  $region8: #{unet_module_forward.8} parent=0 // loop_exit
    _

// kernel: unet_module_forward.9
$region0: #{unet_module_forward.9}
  #allocation0 [shape = 'u32[]', space=smem, size = 0x4, offset = 0x4, fixed_abs, tag = 'smem constant byte address 0x4 - core index']
  #allocation1 [shape = 'u32[144,128]{1,0:T(1,128)}', space=vmem, size = 0x12000, scoped, tag = 'internal scratch']
  %s0 = inlined_call_operand.vmem [shape: f32[64,128], index: 0, kind: input, shape index: {}]
  %s1 = inlined_call_operand.vmem [shape: f32[64,128], index: 1, kind: input, shape index: {}]
  %s2 = inlined_call_operand.vmem [shape: f32[1,128], index: 2, kind: input, shape index: {}]
  %s3 = inlined_call_operand.vmem [shape: f32[1,128], index: 3, kind: input, shape index: {}]
  %s4 = inlined_call_operand.vmem [shape: f32[1,128], index: 4, kind: input, shape index: {}]
  %s5 = inlined_call_operand.vmem [shape: f32[64,128], index: 5, kind: output, shape index: {}]
  %s6 = sld [smem:[#allocation0]]
  $region30: #{unet_module_forward.9} parent=0
    _
  %s8 = ssub.s32 1, %s6
  %s9 = scalar_select 0, %s8, %s6
  // Predicated region
  $region2: #{unet_module_forward.9} parent=0 // pred_check
    _
  $region3: #{unet_module_forward.9} parent=0 // pred_check_branch
    %11 = sbr.rel (0) target = $region5
  $region4: #{unet_module_forward.9} parent=0 // pred_region
    _
  $region5: #{unet_module_forward.9} parent=0 // pred_fallthru
    _
  // Predicated region
  $region6: #{unet_module_forward.9} parent=0 // pred_check
    _
  $region7: #{unet_module_forward.9} parent=0 // pred_check_branch
    %13 = sbr.rel (0) target = $region9
  $region8: #{unet_module_forward.9} parent=0 // pred_region
    _
  $region9: #{unet_module_forward.9} parent=0 // pred_fallthru
    _
  // Predicated region
  $region10: #{unet_module_forward.9} parent=0 // pred_check
    _
  $region11: #{unet_module_forward.9} parent=0 // pred_check_branch
    %15 = sbr.rel (0) target = $region13
  $region12: #{unet_module_forward.9} parent=0 // pred_region
    _
  $region13: #{unet_module_forward.9} parent=0 // pred_fallthru
    _
  // Predicated region
  $region14: #{unet_module_forward.9} parent=0 // pred_check
    _
  $region15: #{unet_module_forward.9} parent=0 // pred_check_branch
    %17 = sbr.rel (0) target = $region17
  $region16: #{unet_module_forward.9} parent=0 // pred_region
    _
  $region17: #{unet_module_forward.9} parent=0 // pred_fallthru
    _
  // Predicated region
  $region18: #{unet_module_forward.9} parent=0 // pred_check
    _
  $region19: #{unet_module_forward.9} parent=0 // pred_check_branch
    %19 = sbr.rel (0) target = $region21
  $region20: #{unet_module_forward.9} parent=0 // pred_region
    _
  $region21: #{unet_module_forward.9} parent=0 // pred_fallthru
    _
  %v20 = vld [vmem:[%s0] sm:$0xff]
  %v21 = vld [vmem:[%s0 + $0x8] sm:$0xff]
  %v22 = vld [vmem:[%s0 + $0x10] sm:$0xff]
  %v23 = vld [vmem:[%s0 + $0x18] sm:$0xff]
  %v24 = vld [vmem:[%s0 + $0x20] sm:$0xff]
  %v25 = vld [vmem:[%s0 + $0x28] sm:$0xff]
  %v26 = vld [vmem:[%s0 + $0x30] sm:$0xff]
  %v27 = vld [vmem:[%s0 + $0x38] sm:$0xff]
  %v28 = vld [vmem:[%s2] sm:$0x1]
  %v30 = vlaneseq
  %v31 = vshrl.u32 %v30, 7
  %v32 = vsub.s32 0, %v31
  %v33 = vrot.slane %v28, %v32
  %v35 = vmul.f32 %v20, %v33
  %v36 = vmul.f32 %v21, %v33
  %v37 = vmul.f32 %v22, %v33
  %v38 = vmul.f32 %v23, %v33
  %v39 = vmul.f32 %v24, %v33
  %v40 = vmul.f32 %v25, %v33
  %v41 = vmul.f32 %v26, %v33
  %v42 = vmul.f32 %v27, %v33
  %v43 = vld [vmem:[%s3] sm:$0x1]
  %v45 = vlaneseq
  %v46 = vshrl.u32 %v45, 7
  %v47 = vsub.s32 0, %v46
  %v48 = vrot.slane %v43, %v47
  %v50 = vadd.f32 %v35, %v48
  %v51 = vadd.f32 %v36, %v48
  %v52 = vadd.f32 %v37, %v48
  %v53 = vadd.f32 %v38, %v48
  %v54 = vadd.f32 %v39, %v48
  %v55 = vadd.f32 %v40, %v48
  %v56 = vadd.f32 %v41, %v48
  %v57 = vadd.f32 %v42, %v48
  %vm58 = vcmp.ge.f32.partialorder %v50, 0.0
  %vm59 = vcmp.ge.f32.partialorder %v51, 0.0
  %vm60 = vcmp.ge.f32.partialorder %v52, 0.0
  %vm61 = vcmp.ge.f32.partialorder %v53, 0.0
  %vm62 = vcmp.ge.f32.partialorder %v54, 0.0
  %vm63 = vcmp.ge.f32.partialorder %v55, 0.0
  %vm64 = vcmp.ge.f32.partialorder %v56, 0.0
  %vm65 = vcmp.ge.f32.partialorder %v57, 0.0
  %v66 = vld [vmem:[%s4] sm:$0x1]
  %v68 = vlaneseq
  %v69 = vshrl.u32 %v68, 7
  %v70 = vsub.s32 0, %v69
  %v71 = vrot.slane %v66, %v70
  %v73 = vmul.f32 %v71, %v50
  %v74 = vmul.f32 %v71, %v51
  %v75 = vmul.f32 %v71, %v52
  %v76 = vmul.f32 %v71, %v53
  %v77 = vmul.f32 %v71, %v54
  %v78 = vmul.f32 %v71, %v55
  %v79 = vmul.f32 %v71, %v56
  %v80 = vmul.f32 %v71, %v57
  %v81 = vsel %vm58, %v50, %v73
  %v82 = vsel %vm59, %v51, %v74
  %v83 = vsel %vm60, %v52, %v75
  %v84 = vsel %vm61, %v53, %v76
  %v85 = vsel %vm62, %v54, %v77
  %v86 = vsel %vm63, %v55, %v78
  %v87 = vsel %vm64, %v56, %v79
  %v88 = vsel %vm65, %v57, %v80
  %v89 = vld [vmem:[%s1] sm:$0xff]
  %v90 = vld [vmem:[%s1 + $0x8] sm:$0xff]
  %v91 = vld [vmem:[%s1 + $0x10] sm:$0xff]
  %v92 = vld [vmem:[%s1 + $0x18] sm:$0xff]
  %v93 = vld [vmem:[%s1 + $0x20] sm:$0xff]
  %v94 = vld [vmem:[%s1 + $0x28] sm:$0xff]
  %v95 = vld [vmem:[%s1 + $0x30] sm:$0xff]
  %v96 = vld [vmem:[%s1 + $0x38] sm:$0xff]
  %v97 = vadd.f32 %v81, %v89
  %v98 = vadd.f32 %v82, %v90
  %v99 = vadd.f32 %v83, %v91
  %v100 = vadd.f32 %v84, %v92
  %v101 = vadd.f32 %v85, %v93
  %v102 = vadd.f32 %v86, %v94
  %v103 = vadd.f32 %v87, %v95
  %v104 = vadd.f32 %v88, %v96
  %105 = vst [vmem:[%s5] sm:$0xff] %v97
  %106 = vst [vmem:[%s5 + $0x8] sm:$0xff] %v98
  %107 = vst [vmem:[%s5 + $0x10] sm:$0xff] %v99
  %108 = vst [vmem:[%s5 + $0x18] sm:$0xff] %v100
  %109 = vst [vmem:[%s5 + $0x20] sm:$0xff] %v101
  %110 = vst [vmem:[%s5 + $0x28] sm:$0xff] %v102
  %111 = vst [vmem:[%s5 + $0x30] sm:$0xff] %v103
  %112 = vst [vmem:[%s5 + $0x38] sm:$0xff] %v104
  // Predicated region
  $region22: #{unet_module_forward.9} parent=0 // pred_check
    _
  $region23: #{unet_module_forward.9} parent=0 // pred_check_branch
    %114 = sbr.rel (0) target = $region25
  $region24: #{unet_module_forward.9} parent=0 // pred_region
    _
  $region25: #{unet_module_forward.9} parent=0 // pred_fallthru
    _
  // Predicated region
  $region26: #{unet_module_forward.9} parent=0 // pred_check
    _
  $region27: #{unet_module_forward.9} parent=0 // pred_check_branch
    %116 = sbr.rel (0) target = $region29
  $region28: #{unet_module_forward.9} parent=0 // pred_region
    _
  $region29: #{unet_module_forward.9} parent=0 // pred_fallthru
    _

// kernel: unet_module_forward.10
$region0: #{unet_module_forward.10}
  #allocation0 [shape = 'u32[]', space=smem, size = 0x4, offset = 0x4, fixed_abs, tag = 'smem constant byte address 0x4 - core index']
  #allocation1 [shape = 'u32[144,128]{1,0:T(1,128)}', space=vmem, size = 0x12000, scoped, tag = 'internal scratch']
  %s0 = inlined_call_operand.vmem [shape: f32[128,216], index: 0, kind: input, shape index: {}]
  %s1 = inlined_call_operand.vmem [shape: f32[216,8], index: 1, kind: input, shape index: {}]
  %s2 = inlined_call_operand.vmem [shape: f32[128,8], index: 2, kind: output, shape index: {0}]
  %s3 = inlined_call_operand.vmem [shape: f32[1,2,8], index: 3, kind: output, shape index: {1}]
  %4 = xla_tuple %s2, %s3
  %s5 = sld [smem:[#allocation0]]
  $region26: #{unet_module_forward.10} parent=0
    _
  %s7 = ssub.s32 1, %s5
  %s8 = scalar_select 0, %s7, %s5
  // Predicated region
  $region2: #{unet_module_forward.10} parent=0 // pred_check
    _
  $region3: #{unet_module_forward.10} parent=0 // pred_check_branch
    %10 = sbr.rel (0) target = $region5
  $region4: #{unet_module_forward.10} parent=0 // pred_region
    _
  $region5: #{unet_module_forward.10} parent=0 // pred_fallthru
    _
  // Predicated region
  $region6: #{unet_module_forward.10} parent=0 // pred_check
    _
  $region7: #{unet_module_forward.10} parent=0 // pred_check_branch
    %12 = sbr.rel (0) target = $region9
  $region8: #{unet_module_forward.10} parent=0 // pred_region
    _
  $region9: #{unet_module_forward.10} parent=0 // pred_fallthru
    _
  %v13 = vld [vmem:[%s0] sm:$0xff]
  %v14 = vld [vmem:[%s0 + $0x8] sm:$0xff]
  %v15 = vld [vmem:[%s0 + $0x10] sm:$0xff]
  %v16 = vld [vmem:[%s0 + $0x18] sm:$0xff]
  %v17 = vld [vmem:[%s0 + $0x20] sm:$0xff]
  %v18 = vld [vmem:[%s0 + $0x28] sm:$0xff]
  %v19 = vld [vmem:[%s0 + $0x30] sm:$0xff]
  %v20 = vld [vmem:[%s0 + $0x38] sm:$0xff]
  %v21 = vld [vmem:[%s0 + $0x40] sm:$0xff]
  %v22 = vld [vmem:[%s0 + $0x48] sm:$0xff]
  %v23 = vld [vmem:[%s0 + $0x50] sm:$0xff]
  %v24 = vld [vmem:[%s0 + $0x58] sm:$0xff]
  %v25 = vld [vmem:[%s0 + $0x60] sm:$0xff]
  %v26 = vld [vmem:[%s0 + $0x68] sm:$0xff]
  %v27 = vld [vmem:[%s0 + $0x70] sm:$0xff]
  %v28 = vld [vmem:[%s0 + $0x78] sm:$0xff]
  %v29 = vld [vmem:[%s0 + $0x80] sm:$0xff]
  %v30 = vld [vmem:[%s0 + $0x88] sm:$0xff]
  %v31 = vld [vmem:[%s0 + $0x90] sm:$0xff]
  %v32 = vld [vmem:[%s0 + $0x98] sm:$0xff]
  %v33 = vld [vmem:[%s0 + $0xa0] sm:$0xff]
  %v34 = vld [vmem:[%s0 + $0xa8] sm:$0xff]
  %v35 = vld [vmem:[%s0 + $0xb0] sm:$0xff]
  %v36 = vld [vmem:[%s0 + $0xb8] sm:$0xff]
  %v37 = vld [vmem:[%s0 + $0xc0] sm:$0xff]
  %v38 = vld [vmem:[%s0 + $0xc8] sm:$0xff]
  %v39 = vld [vmem:[%s0 + $0xd0] sm:$0xff]
  %v40 = vld [vmem:[%s0 + $0xd8] sm:$0xff]
  %v41 = vld [vmem:[%s0 + $0xe0] sm:$0xff]
  %v42 = vld [vmem:[%s0 + $0xe8] sm:$0xff]
  %v43 = vld [vmem:[%s0 + $0xf0] sm:$0xff]
  %v44 = vld [vmem:[%s0 + $0xf8] sm:$0xff]
  %v45 = vld [vmem:[%s1] sm:$0xff]
  %v46 = vld [vmem:[%s1 + $0x8] sm:$0xff]
  %v47 = vld [vmem:[%s1 + $0x10] sm:$0xff]
  %v48 = vld [vmem:[%s1 + $0x18] sm:$0xff]
  %v49 = vld [vmem:[%s1 + $0x20] sm:$0xff]
  %v50 = vld [vmem:[%s1 + $0x28] sm:$0xff]
  %v51 = vld [vmem:[%s1 + $0x30] sm:$0xff]
  %v52 = vld [vmem:[%s1 + $0x38] sm:$0xff]
  %v53 = vld [vmem:[%s1 + $0x40] sm:$0xff]
  %v54 = vld [vmem:[%s1 + $0x48] sm:$0xff]
  %v55 = vld [vmem:[%s1 + $0x50] sm:$0xff]
  %v56 = vld [vmem:[%s1 + $0x58] sm:$0xff]
  %v57 = vld [vmem:[%s1 + $0x60] sm:$0xff]
  %v58 = vld [vmem:[%s1 + $0x68] sm:$0xff]
  %v59 = vld [vmem:[%s1 + $0x70] sm:$0xff]
  %v60 = vld [vmem:[%s1 + $0x78] sm:$0xff]
  %v61 = vld [vmem:[%s1 + $0x80] sm:$0xff]
  %v62 = vld [vmem:[%s1 + $0x88] sm:$0xff]
  %v63 = vld [vmem:[%s1 + $0x90] sm:$0xff]
  %v64 = vld [vmem:[%s1 + $0x98] sm:$0xff]
  %v65 = vld [vmem:[%s1 + $0xa0] sm:$0xff]
  %v66 = vld [vmem:[%s1 + $0xa8] sm:$0xff]
  %v67 = vld [vmem:[%s1 + $0xb0] sm:$0xff]
  %v68 = vld [vmem:[%s1 + $0xb8] sm:$0xff]
  %v69 = vld [vmem:[%s1 + $0xc0] sm:$0xff]
  %v70 = vld [vmem:[%s1 + $0xc8] sm:$0xff]
  %v71 = vld [vmem:[%s1 + $0xd0] sm:$0xff]
  %vm72 = vcmask 719872
  %v74 = vsel %vm72, %v14, 0
  %v77 = vsel %vm72, %v16, 0
  %v80 = vsel %vm72, %v18, 0
  %v83 = vsel %vm72, %v20, 0
  %v86 = vsel %vm72, %v22, 0
  %v89 = vsel %vm72, %v24, 0
  %v92 = vsel %vm72, %v26, 0
  %v95 = vsel %vm72, %v28, 0
  %v98 = vsel %vm72, %v30, 0
  %v101 = vsel %vm72, %v32, 0
  %v104 = vsel %vm72, %v34, 0
  %v107 = vsel %vm72, %v36, 0
  %v110 = vsel %vm72, %v38, 0
  %v113 = vsel %vm72, %v40, 0
  %v116 = vsel %vm72, %v42, 0
  %v119 = vsel %vm72, %v44, 0
  %121 = vmatprep.subr.mxu0 0.0
  %122 = vmatpush1.msra.mxu0 %v60
  %123 = vmatprep.subr.mxu0 0.0
  %124 = vmatpush1.msra.mxu0 %v59
  %125 = vmatprep.subr.mxu0 0.0
  %126 = vmatpush1.msra.mxu0 %v58
  %127 = vmatprep.subr.mxu0 0.0
  %128 = vmatpush1.msra.mxu0 %v57
  %129 = vmatprep.subr.mxu0 0.0
  %130 = vmatpush1.msra.mxu0 %v56
  %131 = vmatprep.subr.mxu0 0.0
  %132 = vmatpush1.msra.mxu0 %v55
  %133 = vmatprep.subr.mxu0 0.0
  %134 = vmatpush1.msra.mxu0 %v54
  %135 = vmatprep.subr.mxu0 0.0
  %136 = vmatpush1.msra.mxu0 %v53
  %137 = vmatprep.subr.mxu0 0.0
  %138 = vmatpush1.msra.mxu0 %v52
  %139 = vmatprep.subr.mxu0 0.0
  %140 = vmatpush1.msra.mxu0 %v51
  %141 = vmatprep.subr.mxu0 0.0
  %142 = vmatpush1.msra.mxu0 %v50
  %143 = vmatprep.subr.mxu0 0.0
  %144 = vmatpush1.msra.mxu0 %v49
  %145 = vmatprep.subr.mxu0 0.0
  %146 = vmatpush1.msra.mxu0 %v48
  %147 = vmatprep.subr.mxu0 0.0
  %148 = vmatpush1.msra.mxu0 %v47
  %149 = vmatprep.subr.mxu0 0.0
  %150 = vmatpush1.msra.mxu0 %v46
  %151 = vmatprep.subr.mxu0 0.0
  %152 = vmatpush1.msra.mxu0 %v45
  %153 = vmatprep.subr.mxu0 0.0
  %154 = vmatpush2.msra.mxu0 0.0
  %155 = vmatprep.subr.mxu0 0.0
  %156 = vmatpush2.msra.mxu0 0.0
  %157 = vmatprep.subr.mxu0 0.0
  %158 = vmatpush2.msra.mxu0 0.0
  %159 = vmatprep.subr.mxu0 0.0
  %160 = vmatpush2.msra.mxu0 0.0
  %161 = vmatprep.subr.mxu0 0.0
  %162 = vmatpush2.msra.mxu0 0.0
  %163 = vmatprep.subr.mxu0 0.0
  %164 = vmatpush2.msra.mxu0 %v71
  %165 = vmatprep.subr.mxu0 0.0
  %166 = vmatpush2.msra.mxu0 %v70
  %167 = vmatprep.subr.mxu0 0.0
  %168 = vmatpush2.msra.mxu0 %v69
  %169 = vmatprep.subr.mxu0 0.0
  %170 = vmatpush2.msra.mxu0 %v68
  %171 = vmatprep.subr.mxu0 0.0
  %172 = vmatpush2.msra.mxu0 %v67
  %173 = vmatprep.subr.mxu0 0.0
  %174 = vmatpush2.msra.mxu0 %v66
  %175 = vmatprep.subr.mxu0 0.0
  %176 = vmatpush2.msra.mxu0 %v65
  %177 = vmatprep.subr.mxu0 0.0
  %178 = vmatpush2.msra.mxu0 %v64
  %179 = vmatprep.subr.mxu0 0.0
  %180 = vmatpush2.msra.mxu0 %v63
  %181 = vmatprep.subr.mxu0 0.0
  %182 = vmatpush2.msra.mxu0 %v62
  %183 = vmatprep.subr.mxu0 0.0
  %184 = vmatpush2.msra.mxu0 %v61
  %185 = vmatprep.mubr.f32.mxu0 %v74
  %186 = vmatmul.mubr.f32.gmra.mxu0 %v13
  %v187 = vpop.f32.mrf.mxu0
  %v188 = vadd.f32 0.0, %v187
  %v189 = vpop.f32.mrf.mxu0
  %190 = vmatprep.mubr.f32.mxu0 %v77
  %191 = vmatmul.mubr.f32.gmra.mxu0 %v15
  %v192 = vpop.f32.mrf.mxu0
  %v193 = vadd.f32 0.0, %v192
  %v194 = vpop.f32.mrf.mxu0
  %195 = vmatprep.mubr.f32.mxu0 %v80
  %196 = vmatmul.mubr.f32.gmra.mxu0 %v17
  %v197 = vpop.f32.mrf.mxu0
  %v198 = vadd.f32 0.0, %v197
  %v199 = vpop.f32.mrf.mxu0
  %200 = vmatprep.mubr.f32.mxu0 %v83
  %201 = vmatmul.mubr.f32.gmra.mxu0 %v19
  %v202 = vpop.f32.mrf.mxu0
  %v203 = vadd.f32 0.0, %v202
  %v204 = vpop.f32.mrf.mxu0
  %205 = vmatprep.mubr.f32.mxu0 %v86
  %206 = vmatmul.mubr.f32.gmra.mxu0 %v21
  %v207 = vpop.f32.mrf.mxu0
  %v208 = vadd.f32 0.0, %v207
  %v209 = vpop.f32.mrf.mxu0
  %210 = vmatprep.mubr.f32.mxu0 %v89
  %211 = vmatmul.mubr.f32.gmra.mxu0 %v23
  %v212 = vpop.f32.mrf.mxu0
  %v213 = vadd.f32 0.0, %v212
  %v214 = vpop.f32.mrf.mxu0
  %215 = vmatprep.mubr.f32.mxu0 %v92
  %216 = vmatmul.mubr.f32.gmra.mxu0 %v25
  %v217 = vpop.f32.mrf.mxu0
  %v218 = vadd.f32 0.0, %v217
  %v219 = vpop.f32.mrf.mxu0
  %220 = vmatprep.mubr.f32.mxu0 %v95
  %221 = vmatmul.mubr.f32.gmra.mxu0 %v27
  %v222 = vpop.f32.mrf.mxu0
  %v223 = vadd.f32 0.0, %v222
  %v224 = vpop.f32.mrf.mxu0
  %225 = vmatprep.mubr.f32.mxu0 %v98
  %226 = vmatmul.mubr.f32.gmra.mxu0 %v29
  %v227 = vpop.f32.mrf.mxu0
  %v228 = vadd.f32 0.0, %v227
  %v229 = vpop.f32.mrf.mxu0
  %230 = vmatprep.mubr.f32.mxu0 %v101
  %231 = vmatmul.mubr.f32.gmra.mxu0 %v31
  %v232 = vpop.f32.mrf.mxu0
  %v233 = vadd.f32 0.0, %v232
  %v234 = vpop.f32.mrf.mxu0
  %235 = vmatprep.mubr.f32.mxu0 %v104
  %236 = vmatmul.mubr.f32.gmra.mxu0 %v33
  %v237 = vpop.f32.mrf.mxu0
  %v238 = vadd.f32 0.0, %v237
  %v239 = vpop.f32.mrf.mxu0
  %240 = vmatprep.mubr.f32.mxu0 %v107
  %241 = vmatmul.mubr.f32.gmra.mxu0 %v35
  %v242 = vpop.f32.mrf.mxu0
  %v243 = vadd.f32 0.0, %v242
  %v244 = vpop.f32.mrf.mxu0
  %245 = vmatprep.mubr.f32.mxu0 %v110
  %246 = vmatmul.mubr.f32.gmra.mxu0 %v37
  %v247 = vpop.f32.mrf.mxu0
  %v248 = vadd.f32 0.0, %v247
  %v249 = vpop.f32.mrf.mxu0
  %250 = vmatprep.mubr.f32.mxu0 %v113
  %251 = vmatmul.mubr.f32.gmra.mxu0 %v39
  %v252 = vpop.f32.mrf.mxu0
  %v253 = vadd.f32 0.0, %v252
  %v254 = vpop.f32.mrf.mxu0
  %255 = vmatprep.mubr.f32.mxu0 %v116
  %256 = vmatmul.mubr.f32.gmra.mxu0 %v41
  %v257 = vpop.f32.mrf.mxu0
  %v258 = vadd.f32 0.0, %v257
  %v259 = vpop.f32.mrf.mxu0
  %260 = vmatprep.mubr.f32.mxu0 %v119
  %261 = vmatmul.mubr.f32.gmra.mxu0 %v43
  %v262 = vpop.f32.mrf.mxu0
  %v263 = vadd.f32 0.0, %v262
  %v264 = vpop.f32.mrf.mxu0
  %265 = vdwg.mxu0
  %vm266 = vcmask 64512
  %267 = vst.msk [vmem:[%s2] sm:$0xff] %vm266, %v188
  %268 = vst.msk [vmem:[%s2 + $0x8] sm:$0xff] %vm266, %v193
  %269 = vst.msk [vmem:[%s2 + $0x10] sm:$0xff] %vm266, %v198
  %270 = vst.msk [vmem:[%s2 + $0x18] sm:$0xff] %vm266, %v203
  %271 = vst.msk [vmem:[%s2 + $0x20] sm:$0xff] %vm266, %v208
  %272 = vst.msk [vmem:[%s2 + $0x28] sm:$0xff] %vm266, %v213
  %273 = vst.msk [vmem:[%s2 + $0x30] sm:$0xff] %vm266, %v218
  %274 = vst.msk [vmem:[%s2 + $0x38] sm:$0xff] %vm266, %v223
  %275 = vst.msk [vmem:[%s2 + $0x40] sm:$0xff] %vm266, %v228
  %276 = vst.msk [vmem:[%s2 + $0x48] sm:$0xff] %vm266, %v233
  %277 = vst.msk [vmem:[%s2 + $0x50] sm:$0xff] %vm266, %v238
  %278 = vst.msk [vmem:[%s2 + $0x58] sm:$0xff] %vm266, %v243
  %279 = vst.msk [vmem:[%s2 + $0x60] sm:$0xff] %vm266, %v248
  %280 = vst.msk [vmem:[%s2 + $0x68] sm:$0xff] %vm266, %v253
  %281 = vst.msk [vmem:[%s2 + $0x70] sm:$0xff] %vm266, %v258
  %282 = vst.msk [vmem:[%s2 + $0x78] sm:$0xff] %vm266, %v263
  %v283 = vsel %vm266, %v188, 0.0
  %v284 = vsel %vm266, %v193, 0.0
  %v285 = vadd.f32 %v283, %v284
  %v286 = vsel %vm266, %v198, 0.0
  %v287 = vadd.f32 %v285, %v286
  %v288 = vsel %vm266, %v203, 0.0
  %v289 = vadd.f32 %v287, %v288
  %v290 = vsel %vm266, %v208, 0.0
  %v291 = vadd.f32 %v289, %v290
  %v292 = vsel %vm266, %v213, 0.0
  %v293 = vadd.f32 %v291, %v292
  %v294 = vsel %vm266, %v218, 0.0
  %v295 = vadd.f32 %v293, %v294
  %v296 = vsel %vm266, %v223, 0.0
  %v297 = vadd.f32 %v295, %v296
  %v298 = vsel %vm266, %v228, 0.0
  %v299 = vadd.f32 %v297, %v298
  %v300 = vsel %vm266, %v233, 0.0
  %v301 = vadd.f32 %v299, %v300
  %v302 = vsel %vm266, %v238, 0.0
  %v303 = vadd.f32 %v301, %v302
  %v304 = vsel %vm266, %v243, 0.0
  %v305 = vadd.f32 %v303, %v304
  %v306 = vsel %vm266, %v248, 0.0
  %v307 = vadd.f32 %v305, %v306
  %v308 = vsel %vm266, %v253, 0.0
  %v309 = vadd.f32 %v307, %v308
  %v310 = vsel %vm266, %v258, 0.0
  %v311 = vadd.f32 %v309, %v310
  %v312 = vsel %vm266, %v263, 0.0
  %v313 = vadd.f32 %v311, %v312
  %v314 = vrot.slane %v313, 4
  %v315 = vadd.f32 %v313, %v314
  %v316 = vrot.slane %v315, 2
  %v317 = vadd.f32 %v315, %v316
  %v318 = vrot.slane %v317, 1
  %v319 = vadd.f32 %v317, %v318
  %v320 = vmul.f32 %v188, %v188
  %v321 = vmul.f32 %v193, %v193
  %v322 = vmul.f32 %v198, %v198
  %v323 = vmul.f32 %v203, %v203
  %v324 = vmul.f32 %v208, %v208
  %v325 = vmul.f32 %v213, %v213
  %v326 = vmul.f32 %v218, %v218
  %v327 = vmul.f32 %v223, %v223
  %v328 = vmul.f32 %v228, %v228
  %v329 = vmul.f32 %v233, %v233
  %v330 = vmul.f32 %v238, %v238
  %v331 = vmul.f32 %v243, %v243
  %v332 = vmul.f32 %v248, %v248
  %v333 = vmul.f32 %v253, %v253
  %v334 = vmul.f32 %v258, %v258
  %v335 = vmul.f32 %v263, %v263
  %v336 = vsel %vm266, %v320, 0.0
  %v337 = vsel %vm266, %v321, 0.0
  %v338 = vadd.f32 %v336, %v337
  %v339 = vsel %vm266, %v322, 0.0
  %v340 = vadd.f32 %v338, %v339
  %v341 = vsel %vm266, %v323, 0.0
  %v342 = vadd.f32 %v340, %v341
  %v343 = vsel %vm266, %v324, 0.0
  %v344 = vadd.f32 %v342, %v343
  %v345 = vsel %vm266, %v325, 0.0
  %v346 = vadd.f32 %v344, %v345
  %v347 = vsel %vm266, %v326, 0.0
  %v348 = vadd.f32 %v346, %v347
  %v349 = vsel %vm266, %v327, 0.0
  %v350 = vadd.f32 %v348, %v349
  %v351 = vsel %vm266, %v328, 0.0
  %v352 = vadd.f32 %v350, %v351
  %v353 = vsel %vm266, %v329, 0.0
  %v354 = vadd.f32 %v352, %v353
  %v355 = vsel %vm266, %v330, 0.0
  %v356 = vadd.f32 %v354, %v355
  %v357 = vsel %vm266, %v331, 0.0
  %v358 = vadd.f32 %v356, %v357
  %v359 = vsel %vm266, %v332, 0.0
  %v360 = vadd.f32 %v358, %v359
  %v361 = vsel %vm266, %v333, 0.0
  %v362 = vadd.f32 %v360, %v361
  %v363 = vsel %vm266, %v334, 0.0
  %v364 = vadd.f32 %v362, %v363
  %v365 = vsel %vm266, %v335, 0.0
  %v366 = vadd.f32 %v364, %v365
  %v367 = vrot.slane %v366, 4
  %v368 = vadd.f32 %v366, %v367
  %v369 = vrot.slane %v368, 2
  %v370 = vadd.f32 %v368, %v369
  %v371 = vrot.slane %v370, 1
  %v372 = vadd.f32 %v370, %v371
  %vm373 = vcmask 1040384
  %v374 = vsel %vm373, %v319, %v372
  %vm375 = vcmask 58368
  %376 = vst.msk [vmem:[%s3] sm:$0x3] %vm375, %v374
  // Predicated region
  $region10: #{unet_module_forward.10} parent=0 // pred_check
    _
  $region11: #{unet_module_forward.10} parent=0 // pred_check_branch
    %378 = sbr.rel (0) target = $region13
  $region12: #{unet_module_forward.10} parent=0 // pred_region
    _
  $region13: #{unet_module_forward.10} parent=0 // pred_fallthru
    _
  // Predicated region
  $region14: #{unet_module_forward.10} parent=0 // pred_check
    _
  $region15: #{unet_module_forward.10} parent=0 // pred_check_branch
    %380 = sbr.rel (0) target = $region17
  $region16: #{unet_module_forward.10} parent=0 // pred_region
    _
  $region17: #{unet_module_forward.10} parent=0 // pred_fallthru
    _
  // Predicated region
  $region18: #{unet_module_forward.10} parent=0 // pred_check
    _
  $region19: #{unet_module_forward.10} parent=0 // pred_check_branch
    %382 = sbr.rel (0) target = $region21
  $region20: #{unet_module_forward.10} parent=0 // pred_region
    _
  $region21: #{unet_module_forward.10} parent=0 // pred_fallthru
    _
  // Predicated region
  $region22: #{unet_module_forward.10} parent=0 // pred_check
    _
  $region23: #{unet_module_forward.10} parent=0 // pred_check_branch
    %384 = sbr.rel (0) target = $region25
  $region24: #{unet_module_forward.10} parent=0 // pred_region
    _
  $region25: #{unet_module_forward.10} parent=0 // pred_fallthru
    _

// kernel: unet_module_forward.11
$region0: #{unet_module_forward.11}
  #allocation0 [shape = 'u32[]', space=smem, size = 0x4, offset = 0x4, fixed_abs, tag = 'smem constant byte address 0x4 - core index']
  #allocation1 [shape = 'u32[144,128]{1,0:T(1,128)}', space=vmem, size = 0x12000, scoped, tag = 'internal scratch']
  %s0 = inlined_call_operand.vmem [shape: f32[8,128], index: 0, kind: input, shape index: {}]
  %s1 = inlined_call_operand.vmem [shape: f32[1,128], index: 1, kind: input, shape index: {}]
  %s2 = inlined_call_operand.vmem [shape: f32[1,128], index: 2, kind: input, shape index: {}]
  %s3 = inlined_call_operand.vmem [shape: f32[1,128], index: 3, kind: input, shape index: {}]
  %s4 = inlined_call_operand.vmem [shape: f32[8,128], index: 4, kind: output, shape index: {}]
  %s5 = sld [smem:[#allocation0]]
  $region26: #{unet_module_forward.11} parent=0
    _
  %s7 = ssub.s32 1, %s5
  %s8 = scalar_select 0, %s7, %s5
  // Predicated region
  $region2: #{unet_module_forward.11} parent=0 // pred_check
    _
  $region3: #{unet_module_forward.11} parent=0 // pred_check_branch
    %10 = sbr.rel (0) target = $region5
  $region4: #{unet_module_forward.11} parent=0 // pred_region
    _
  $region5: #{unet_module_forward.11} parent=0 // pred_fallthru
    _
  // Predicated region
  $region6: #{unet_module_forward.11} parent=0 // pred_check
    _
  $region7: #{unet_module_forward.11} parent=0 // pred_check_branch
    %12 = sbr.rel (0) target = $region9
  $region8: #{unet_module_forward.11} parent=0 // pred_region
    _
  $region9: #{unet_module_forward.11} parent=0 // pred_fallthru
    _
  // Predicated region
  $region10: #{unet_module_forward.11} parent=0 // pred_check
    _
  $region11: #{unet_module_forward.11} parent=0 // pred_check_branch
    %14 = sbr.rel (0) target = $region13
  $region12: #{unet_module_forward.11} parent=0 // pred_region
    _
  $region13: #{unet_module_forward.11} parent=0 // pred_fallthru
    _
  // Predicated region
  $region14: #{unet_module_forward.11} parent=0 // pred_check
    _
  $region15: #{unet_module_forward.11} parent=0 // pred_check_branch
    %16 = sbr.rel (0) target = $region17
  $region16: #{unet_module_forward.11} parent=0 // pred_region
    _
  $region17: #{unet_module_forward.11} parent=0 // pred_fallthru
    _
  %v17 = vld [vmem:[%s0] sm:$0xff]
  %v18 = vld [vmem:[%s1] sm:$0x1]
  %v20 = vlaneseq
  %v21 = vshrl.u32 %v20, 7
  %v22 = vsub.s32 0, %v21
  %v23 = vrot.slane %v18, %v22
  %v25 = vmul.f32 %v17, %v23
  %v26 = vld [vmem:[%s2] sm:$0x1]
  %v28 = vlaneseq
  %v29 = vshrl.u32 %v28, 7
  %v30 = vsub.s32 0, %v29
  %v31 = vrot.slane %v26, %v30
  %v33 = vadd.f32 %v25, %v31
  %vm34 = vcmp.ge.f32.partialorder %v33, 0.0
  %v35 = vld [vmem:[%s3] sm:$0x1]
  %v37 = vlaneseq
  %v38 = vshrl.u32 %v37, 7
  %v39 = vsub.s32 0, %v38
  %v40 = vrot.slane %v35, %v39
  %v42 = vmul.f32 %v40, %v33
  %v43 = vsel %vm34, %v33, %v42
  %44 = vst [vmem:[%s4] sm:$0xff] %v43
  // Predicated region
  $region18: #{unet_module_forward.11} parent=0 // pred_check
    _
  $region19: #{unet_module_forward.11} parent=0 // pred_check_branch
    %46 = sbr.rel (0) target = $region21
  $region20: #{unet_module_forward.11} parent=0 // pred_region
    _
  $region21: #{unet_module_forward.11} parent=0 // pred_fallthru
    _
  // Predicated region
  $region22: #{unet_module_forward.11} parent=0 // pred_check
    _
  $region23: #{unet_module_forward.11} parent=0 // pred_check_branch
    %48 = sbr.rel (0) target = $region25
  $region24: #{unet_module_forward.11} parent=0 // pred_region
    _
  $region25: #{unet_module_forward.11} parent=0 // pred_fallthru
    _

</llo_original>
